<compile_context>
chip_gen: v7x
topology: tpu7x:2x2x1
jax: 0.10.0
libtpu: 0.0.40
codegen_flags: <defaults>
</compile_context>

<pallas_src>
import functools

import jax
import jax.numpy as jnp
from jax import lax
from jax.experimental import pallas as pl
from jax.experimental.pallas import tpu as pltpu


def _round_up(x, m):
    return (x + m - 1) // m * m


def _pick_row_tile(m, cap=512):
    """Largest multiple of 8 that divides m and is <= cap (m is mult. of 8)."""
    best = 8
    for cand in range(8, min(cap, m) + 1, 8):
        if m % cand == 0:
            best = cand
    return best


def _pick_vocab_tile(vp):
    if vp % 512 == 0:
        return 512
    if vp % 256 == 0:
        return 256
    return 128


# -----------------------------------------------------------------------------
# Stage 1: LSTM stack kernel, gridded over layers.
# -----------------------------------------------------------------------------
def _make_lstm_kernel(S, Bp, Ep, Hp, unroll):
    """Refs: x (S,Bp,Ep) bf16, w_ih (1,IPmax,4Hp) bf16, w_hh (1,Hp,4Hp) bf16,
    b (1,1,4Hp) f32, out (S,Bp,Hp) bf16 [resident across layer axis],
    xproj scratch (S,Bp,4Hp) bf16.  Gate order [i,f,g,o]; gate k lives in
    lanes [k*Hp,(k+1)*Hp)."""
    G = 4 * Hp

    def kernel(x_ref, w_ih_ref, w_hh_ref, b_ref, out_ref, xproj_ref):
        layer = pl.program_id(0)
        bias = b_ref[0]                                      # (1, G) fp32

        # Hoisted input-to-hidden projection: one big bf16 MXU matmul over all
        # timesteps.  Layer 0 reads x; deeper layers read the resident output
        # ref (= previous layer's hidden states).
        @pl.when(layer == 0)
        def _():
            xin = x_ref[...].reshape(S * Bp, Ep)             # bf16
            w = w_ih_ref[0, :Ep, :]                          # (Ep, G) bf16
            proj = jnp.dot(xin, w, preferred_element_type=jnp.float32) + bias
            xproj_ref[...] = proj.reshape(S, Bp, G).astype(xproj_ref.dtype)

        @pl.when(layer > 0)
        def _():
            xin = out_ref[...].reshape(S * Bp, Hp)           # bf16
            w = w_ih_ref[0, :Hp, :]                          # (Hp, G) bf16
            proj = jnp.dot(xin, w, preferred_element_type=jnp.float32) + bias
            xproj_ref[...] = proj.reshape(S, Bp, G).astype(xproj_ref.dtype)

        w_hh = w_hh_ref[0]                                   # (Hp, G) bf16

        # Serial recurrence: only h @ w_hh on the MXU; gate math / c / h fp32.
        def step(t, carry):
            h, c = carry                                     # fp32 (Bp, Hp)
            gates = xproj_ref[t].astype(jnp.float32) + jnp.dot(
                h.astype(jnp.bfloat16), w_hh,
                preferred_element_type=jnp.float32)          # (Bp, G)
            i_g = jax.nn.sigmoid(gates[:, 0 * Hp:1 * Hp])
            f_g = jax.nn.sigmoid(gates[:, 1 * Hp:2 * Hp])
            g_g = jnp.tanh(gates[:, 2 * Hp:3 * Hp])
            o_g = jax.nn.sigmoid(gates[:, 3 * Hp:4 * Hp])
            c = f_g * c + i_g * g_g
            h = o_g * jnp.tanh(c)
            out_ref[t] = h.astype(out_ref.dtype)             # lane-dense store
            return (h, c)

        h0 = jnp.zeros((Bp, Hp), jnp.float32)
        c0 = jnp.zeros((Bp, Hp), jnp.float32)
        lax.fori_loop(0, S, step, (h0, c0), unroll=unroll)

    return kernel


# -----------------------------------------------------------------------------
# Stage 2: tiled vocab projection (vocab-outer grid -> fc weight fetched once).
# -----------------------------------------------------------------------------
def _fc_kernel(h_ref, w_ref, b_ref, o_ref):
    o_ref[...] = (jnp.dot(h_ref[...], w_ref[...],
                          preferred_element_type=jnp.float32) + b_ref[...])


# -----------------------------------------------------------------------------
# Weight packing helpers (host/XLA side, outside the kernels).
# -----------------------------------------------------------------------------
def _pack_gate_matrix(w, H, Hp, in_dim, in_pad):
    """(4H, in) PyTorch gate matrix -> (in_pad, 4Hp) bf16, transposed, each
    gate zero-padded H -> Hp so gate k occupies lanes [k*Hp, (k+1)*Hp)."""
    w4 = w.reshape(4, H, in_dim)
    w4 = jnp.pad(w4, ((0, 0), (0, Hp - H), (0, in_pad - in_dim)))
    return w4.reshape(4 * Hp, in_pad).T.astype(jnp.bfloat16)


def _pack_gate_bias(b, H, Hp):
    b4 = b.reshape(4, H)
    b4 = jnp.pad(b4, ((0, 0), (0, Hp - H)))
    return b4.reshape(1, 4 * Hp)                              # fp32


# -----------------------------------------------------------------------------
# Parameter init (shapes mirror the PyTorch module; bias = b_ih + b_hh).
# -----------------------------------------------------------------------------
def init_params(key, vocab_size, embed_size, hidden_size, num_layers):
    keys = jax.random.split(key, 3 + 4 * num_layers)
    k_iter = iter(keys)

    params = {}
    params["embed"] = jax.random.normal(
        next(k_iter), (vocab_size, embed_size), jnp.float32)

    bound = 1.0 / jnp.sqrt(hidden_size).astype(jnp.float32)
    layers = []
    for layer in range(num_layers):
        in_dim = embed_size if layer == 0 else hidden_size
        w_ih = jax.random.uniform(
            next(k_iter), (4 * hidden_size, in_dim), jnp.float32, -bound, bound)
        w_hh = jax.random.uniform(
            next(k_iter), (4 * hidden_size, hidden_size), jnp.float32, -bound, bound)
        b_ih = jax.random.uniform(
            next(k_iter), (1, 4 * hidden_size), jnp.float32, -bound, bound)
        b_hh = jax.random.uniform(
            next(k_iter), (1, 4 * hidden_size), jnp.float32, -bound, bound)
        layers.append((w_ih, w_hh, b_ih + b_hh))
    params["lstm"] = layers

    params["fc_w"] = jax.random.uniform(
        next(k_iter), (vocab_size, hidden_size), jnp.float32, -bound, bound)
    params["fc_b"] = jax.random.uniform(
        next(k_iter), (1, vocab_size), jnp.float32, -bound, bound)
    return params


# -----------------------------------------------------------------------------
# Forward pass.
# -----------------------------------------------------------------------------
@functools.partial(jax.jit, static_argnames=("num_layers",))
def caption_generator_forward(features, captions, params, num_layers):
    """features: (B, E) f32, captions: (B, T) int32 -> logits (B, T+1, V) f32."""
    B, E = features.shape
    T = captions.shape[1]
    S = T + 1
    V, H = params["fc_w"].shape

    # Hardware-aligned padded dims: batch -> 8 sublanes; feature / hidden /
    # vocab -> 128 lanes (gate slices and output stores are full vregs).
    Bp = _round_up(B, 8)
    Ep = _round_up(E, 128)
    Hp = _round_up(H, 128)
    Vp = _round_up(V, 128)
    IPmax = max(Ep, Hp)
    G = 4 * Hp

    # ---- Glue: embedding gather + prepend image features as timestep 0. ----
    emb = jnp.take(params["embed"], captions, axis=0)          # (B, T, E)
    x = jnp.concatenate([features[:, None, :], emb], axis=1)   # (B, S, E)
    x = jnp.transpose(x, (1, 0, 2)).astype(jnp.float32)        # (S, B, E)
    x = jnp.pad(x, ((0, 0), (0, Bp - B), (0, Ep - E)))         # (S, Bp, Ep)
    x = x.astype(jnp.bfloat16)                                 # matmul LHS only

    # ---- Packed, stacked, pre-transposed gate-aligned LSTM weights. ----
    w_ih_list, w_hh_list, b_list = [], [], []
    for layer, (w_ih, w_hh, b) in enumerate(params["lstm"]):
        in_dim = E if layer == 0 else H
        w_ih_list.append(_pack_gate_matrix(w_ih, H, Hp, in_dim, IPmax))
        w_hh_list.append(_pack_gate_matrix(w_hh, H, Hp, H, Hp))
        b_list.append(_pack_gate_bias(b, H, Hp))
    w_ih_all = jnp.stack(w_ih_list)                            # (L, IPmax, G) bf16
    w_hh_all = jnp.stack(w_hh_list)                            # (L, Hp, G)    bf16
    b_all = jnp.stack(b_list)                                  # (L, 1, G)     f32

    # Bound vreg pressure: full unroll only while h/c fit comfortably in vregs.
    state_vregs = (Bp // 8) * (Hp // 128)
    unroll = True if state_vregs <= 4 else min(S, 4)

    hs = pl.pallas_call(
        _make_lstm_kernel(S, Bp, Ep, Hp, unroll),
        out_shape=jax.ShapeDtypeStruct((S, Bp, Hp), jnp.bfloat16),
        grid=(num_layers,),
        in_specs=[
            pl.BlockSpec((S, Bp, Ep), lambda l: (0, 0, 0)),    # x (resident)
            pl.BlockSpec((1, IPmax, G), lambda l: (l, 0, 0)),  # w_ih[l]
            pl.BlockSpec((1, Hp, G), lambda l: (l, 0, 0)),     # w_hh[l]
            pl.BlockSpec((1, 1, G), lambda l: (l, 0, 0)),      # bias[l]
        ],
        out_specs=pl.BlockSpec((S, Bp, Hp), lambda l: (0, 0, 0)),  # resident
        scratch_shapes=[pltpu.VMEM((S, Bp, G), jnp.bfloat16)],
        compiler_params=pltpu.CompilerParams(
            dimension_semantics=("arbitrary",),
            vmem_limit_bytes=40 * 1024 * 1024),
    )(x, w_ih_all, w_hh_all, b_all)                            # (S, Bp, Hp) bf16

    # ---- Stage 2: vocab projection. TM divides S*Bp -> no pad/copy of hs. ----
    M = S * Bp
    TM = _pick_row_tile(M, cap=512)
    TN = _pick_vocab_tile(Vp)

    hs2 = hs.reshape(M, Hp)                                    # bf16, no copy
    w_fc_t = jnp.pad(params["fc_w"],
                     ((0, Vp - V), (0, Hp - H))).T.astype(jnp.bfloat16)  # (Hp, Vp)
    b_fc = jnp.pad(params["fc_b"], ((0, 0), (0, Vp - V)))      # (1, Vp) f32

    cost = pl.CostEstimate(
        flops=2 * M * Hp * Vp,
        transcendentals=0,
        bytes_accessed=2 * M * Hp + 2 * Hp * Vp + 4 * Vp + 4 * M * Vp)

    logits_flat = pl.pallas_call(
        _fc_kernel,
        out_shape=jax.ShapeDtypeStruct((M, Vp), jnp.float32),
        # Vocab is the OUTER axis: the (Hp, TN) weight tile's index only
        # changes on the slow axis, so each weight tile is fetched once.
        grid=(Vp // TN, M // TM),
        in_specs=[
            pl.BlockSpec((TM, Hp), lambda j, i: (i, 0)),
            pl.BlockSpec((Hp, TN), lambda j, i: (0, j)),
            pl.BlockSpec((1, TN), lambda j, i: (0, j)),
        ],
        out_specs=pl.BlockSpec((TM, TN), lambda j, i: (i, j)),
        compiler_params=pltpu.CompilerParams(
            dimension_semantics=("parallel", "parallel"),
            vmem_limit_bytes=40 * 1024 * 1024),
        cost_estimate=cost,
    )(hs2, w_fc_t, b_fc)                                       # (M, Vp) f32

    logits = logits_flat.reshape(S, Bp, Vp)[:, :B, :V]         # (S, B, V)
    return jnp.transpose(logits, (1, 0, 2))                    # (B, S, V)


# -----------------------------------------------------------------------------
# Plain-JAX fp32 reference (mirrors the PyTorch module) for a correctness check.
# -----------------------------------------------------------------------------
def _reference_forward(features, captions, params, num_layers):
    emb = jnp.take(params["embed"], captions, axis=0)
    x = jnp.concatenate([features[:, None, :], emb], axis=1).astype(jnp.float32)
    B, S, _ = x.shape
    H = params["fc_w"].shape[1]
    for (w_ih, w_hh, b) in params["lstm"]:
        h = jnp.zeros((B, H), jnp.float32)
        c = jnp.zeros((B, H), jnp.float32)
        outs = []
        for t in range(S):
            gates = x[:, t, :] @ w_ih.T + h @ w_hh.T + b
            i_g = jax.nn.sigmoid(gates[:, 0 * H:1 * H])
            f_g = jax.nn.sigmoid(gates[:, 1 * H:2 * H])
            g_g = jnp.tanh(gates[:, 2 * H:3 * H])
            o_g = jax.nn.sigmoid(gates[:, 3 * H:4 * H])
            c = f_g * c + i_g * g_g
            h = o_g * jnp.tanh(c)
            outs.append(h[:, None, :])
        x = jnp.concatenate(outs, axis=1)
    return x @ params["fc_w"].T + params["fc_b"]


if __name__ == "__main__":
    vocab_size, embed_size, hidden_size, num_layers = 64, 32, 32, 2
    B, T = 2, 8

    key = jax.random.PRNGKey(0)
    k_params, k_feat, k_cap = jax.random.split(key, 3)

    params = init_params(k_params, vocab_size, embed_size, hidden_size, num_layers)
    features = jax.random.normal(k_feat, (B, embed_size), jnp.float32)
    captions = jax.random.randint(k_cap, (B, T), 0, vocab_size, jnp.int32)

    logits = caption_generator_forward(features, captions, params, num_layers)
    logits = jax.block_until_ready(logits)

    assert logits.shape == (B, T + 1, vocab_size)
    assert bool(jnp.all(jnp.isfinite(logits)))

    # bf16 matmul operands (fp32 accumulation) -> small deviation vs fp32 ref.
    ref = _reference_forward(features, captions, params, num_layers)
    err = float(jnp.max(jnp.abs(logits - ref)))
    assert err < 5e-2, f"mismatch vs reference: {err}"

    print("KERNEL_OK")
</pallas_src>

<mosaic_0001>
module attributes {stable_mosaic.version = 11 : i64} {
  func.func @kernel(%arg0: i32, %arg1: memref<9x8x128xbf16, #tpu.memory_space<vmem>>, %arg2: memref<1x128x512xbf16, #tpu.memory_space<vmem>>, %arg3: memref<1x128x512xbf16, #tpu.memory_space<vmem>>, %arg4: memref<1x1x512xf32, #tpu.memory_space<vmem>>, %arg5: memref<9x8x128xbf16, #tpu.memory_space<vmem>>, %arg6: memref<9x8x512xbf16, #tpu.memory_space<vmem>>) attributes {dimension_semantics = [#tpu.dimension_semantics<arbitrary>], iteration_bounds = array<i64: 2>, scalar_prefetch = 0 : i64, scratch_operands = 1 : i64, tpu.core_type = #tpu.core_type<tc>, window_params = [{pipeline_mode = #tpu.pipeline_mode<synchronous>, transform_indices = @transform_0, window_bounds = array<i64: 9, 8, 128>}, {transform_indices = @transform_1, window_bounds = array<i64: 1, 128, 512>}, {transform_indices = @transform_2, window_bounds = array<i64: 1, 128, 512>}, {transform_indices = @transform_3, window_bounds = array<i64: 1, 1, 512>}, {pipeline_mode = #tpu.pipeline_mode<synchronous>, transform_indices = @transform_4, window_bounds = array<i64: 9, 8, 128>}]} {
    %c0 = arith.constant 0 : index
    %c0_0 = arith.constant 0 : index
    %c0_1 = arith.constant 0 : index
    %0 = vector.load %arg4[%c0, %c0_0, %c0_1] : memref<1x1x512xf32, #tpu.memory_space<vmem>>, vector<1x1x512xf32>
    %1 = vector.shape_cast %0 : vector<1x1x512xf32> to vector<1x512xf32>
    %c0_i32 = arith.constant 0 : i32
    %2 = arith.cmpi eq, %arg0, %c0_i32 : i32
    %3 = arith.extui %2 : i1 to i32
    %c0_i32_2 = arith.constant 0 : i32
    %4 = arith.cmpi ne, %3, %c0_i32_2 : i32
    scf.if %4 {
      %c0_82 = arith.constant 0 : index
      %c0_83 = arith.constant 0 : index
      %c0_84 = arith.constant 0 : index
      %345 = vector.load %arg1[%c0_82, %c0_83, %c0_84] : memref<9x8x128xbf16, #tpu.memory_space<vmem>>, vector<9x8x128xbf16>
      %346 = vector.shape_cast %345 : vector<9x8x128xbf16> to vector<72x128xbf16>
      %c0_85 = arith.constant 0 : index
      %c0_86 = arith.constant 0 : index
      %c0_87 = arith.constant 0 : index
      %347 = vector.load %arg2[%c0_85, %c0_86, %c0_87] : memref<1x128x512xbf16, #tpu.memory_space<vmem>>, vector<1x128x512xbf16>
      %348 = vector.shape_cast %347 : vector<1x128x512xbf16> to vector<128x512xbf16>
      %cst_88 = arith.constant dense<0.000000e+00> : vector<72x512xf32>
      %349 = tpu.matmul %346, %348, %cst_88 {dimension_numbers = #tpu.dot_dimension_numbers<[1], [0], [0], [1], [0, 0, 1, 1], [], []>} : vector<72x128xbf16>, vector<128x512xbf16>, vector<72x512xf32> -> vector<72x512xf32>
      %350 = vector.broadcast %1 : vector<1x512xf32> to vector<72x512xf32>
      %351 = arith.addf %349, %350 : vector<72x512xf32>
      %352 = vector.shape_cast %351 : vector<72x512xf32> to vector<9x8x512xf32>
      %353 = arith.truncf %352 : vector<9x8x512xf32> to vector<9x8x512xbf16>
      %c0_89 = arith.constant 0 : index
      %c0_90 = arith.constant 0 : index
      %c0_91 = arith.constant 0 : index
      %354 = vector.load %arg6[%c0_89, %c0_90, %c0_91] : memref<9x8x512xbf16, #tpu.memory_space<vmem>>, vector<9x8x512xbf16>
      tpu.vector_store %arg6[%c0_89, %c0_90, %c0_91], %353 {strides = array<i32>} : memref<9x8x512xbf16, #tpu.memory_space<vmem>>, vector<9x8x512xbf16>,
    } else {
    }
    %c0_i32_3 = arith.constant 0 : i32
    %5 = arith.cmpi sgt, %arg0, %c0_i32_3 : i32
    %6 = arith.extui %5 : i1 to i32
    %c0_i32_4 = arith.constant 0 : i32
    %7 = arith.cmpi ne, %6, %c0_i32_4 : i32
    scf.if %7 {
      %c0_82 = arith.constant 0 : index
      %c0_83 = arith.constant 0 : index
      %c0_84 = arith.constant 0 : index
      %345 = vector.load %arg5[%c0_82, %c0_83, %c0_84] : memref<9x8x128xbf16, #tpu.memory_space<vmem>>, vector<9x8x128xbf16>
      %346 = vector.shape_cast %345 : vector<9x8x128xbf16> to vector<72x128xbf16>
      %c0_85 = arith.constant 0 : index
      %c0_86 = arith.constant 0 : index
      %c0_87 = arith.constant 0 : index
      %347 = vector.load %arg2[%c0_85, %c0_86, %c0_87] : memref<1x128x512xbf16, #tpu.memory_space<vmem>>, vector<1x128x512xbf16>
      %348 = vector.shape_cast %347 : vector<1x128x512xbf16> to vector<128x512xbf16>
      %cst_88 = arith.constant dense<0.000000e+00> : vector<72x512xf32>
      %349 = tpu.matmul %346, %348, %cst_88 {dimension_numbers = #tpu.dot_dimension_numbers<[1], [0], [0], [1], [0, 0, 1, 1], [], []>} : vector<72x128xbf16>, vector<128x512xbf16>, vector<72x512xf32> -> vector<72x512xf32>
      %350 = vector.broadcast %1 : vector<1x512xf32> to vector<72x512xf32>
      %351 = arith.addf %349, %350 : vector<72x512xf32>
      %352 = vector.shape_cast %351 : vector<72x512xf32> to vector<9x8x512xf32>
      %353 = arith.truncf %352 : vector<9x8x512xf32> to vector<9x8x512xbf16>
      %c0_89 = arith.constant 0 : index
      %c0_90 = arith.constant 0 : index
      %c0_91 = arith.constant 0 : index
      %354 = vector.load %arg6[%c0_89, %c0_90, %c0_91] : memref<9x8x512xbf16, #tpu.memory_space<vmem>>, vector<9x8x512xbf16>
      tpu.vector_store %arg6[%c0_89, %c0_90, %c0_91], %353 {strides = array<i32>} : memref<9x8x512xbf16, #tpu.memory_space<vmem>>, vector<9x8x512xbf16>,
    } else {
    }
    %c0_5 = arith.constant 0 : index
    %c0_6 = arith.constant 0 : index
    %c0_7 = arith.constant 0 : index
    %8 = vector.load %arg3[%c0_5, %c0_6, %c0_7] : memref<1x128x512xbf16, #tpu.memory_space<vmem>>, vector<1x128x512xbf16>
    %9 = vector.shape_cast %8 : vector<1x128x512xbf16> to vector<128x512xbf16>
    %cst = arith.constant 0.000000e+00 : f32
    %10 = vector.broadcast %cst : f32 to vector<8x128xf32>
    %cst_8 = arith.constant 0.000000e+00 : f32
    %11 = vector.broadcast %cst_8 : f32 to vector<8x128xf32>
    %c0_i32_9 = arith.constant 0 : i32
    %12 = arith.index_cast %c0_i32_9 : i32 to index
    %c0_10 = arith.constant 0 : index
    %c0_11 = arith.constant 0 : index
    %13 = vector.load %arg6[%12, %c0_10, %c0_11] : memref<9x8x512xbf16, #tpu.memory_space<vmem>>, vector<1x8x512xbf16>
    %14 = vector.shape_cast %13 : vector<1x8x512xbf16> to vector<8x512xbf16>
    %15 = arith.extf %14 : vector<8x512xbf16> to vector<8x512xf32>
    %16 = arith.truncf %10 : vector<8x128xf32> to vector<8x128xbf16>
    %cst_12 = arith.constant dense<0.000000e+00> : vector<8x512xf32>
    %17 = tpu.matmul %16, %9, %cst_12 {dimension_numbers = #tpu.dot_dimension_numbers<[1], [0], [0], [1], [0, 0, 1, 1], [], []>} : vector<8x128xbf16>, vector<128x512xbf16>, vector<8x512xf32> -> vector<8x512xf32>
    %18 = arith.addf %15, %17 : vector<8x512xf32>
    %19 = vector.extract_strided_slice %18 {offsets = [0, 0], sizes = [8, 128], strides = [1, 1]} : vector<8x512xf32> to vector<8x128xf32>
    %20 = arith.negf %19 : vector<8x128xf32>
    %21 = math.exp %20 : vector<8x128xf32>
    %cst_13 = arith.constant 1.000000e+00 : f32
    %22 = vector.broadcast %cst_13 : f32 to vector<8x128xf32>
    %23 = arith.addf %22, %21 : vector<8x128xf32>
    %24 = arith.divf %22, %23 : vector<8x128xf32>
    %25 = vector.extract_strided_slice %18 {offsets = [0, 128], sizes = [8, 128], strides = [1, 1]} : vector<8x512xf32> to vector<8x128xf32>
    %26 = arith.negf %25 : vector<8x128xf32>
    %27 = math.exp %26 : vector<8x128xf32>
    %cst_14 = arith.constant 1.000000e+00 : f32
    %28 = vector.broadcast %cst_14 : f32 to vector<8x128xf32>
    %29 = arith.addf %28, %27 : vector<8x128xf32>
    %30 = arith.divf %28, %29 : vector<8x128xf32>
    %31 = vector.extract_strided_slice %18 {offsets = [0, 256], sizes = [8, 128], strides = [1, 1]} : vector<8x512xf32> to vector<8x128xf32>
    %32 = math.tanh %31 : vector<8x128xf32>
    %33 = vector.extract_strided_slice %18 {offsets = [0, 384], sizes = [8, 128], strides = [1, 1]} : vector<8x512xf32> to vector<8x128xf32>
    %34 = arith.negf %33 : vector<8x128xf32>
    %35 = math.exp %34 : vector<8x128xf32>
    %cst_15 = arith.constant 1.000000e+00 : f32
    %36 = vector.broadcast %cst_15 : f32 to vector<8x128xf32>
    %37 = arith.addf %36, %35 : vector<8x128xf32>
    %38 = arith.divf %36, %37 : vector<8x128xf32>
    %39 = arith.mulf %30, %11 : vector<8x128xf32>
    %40 = arith.mulf %24, %32 : vector<8x128xf32>
    %41 = arith.addf %39, %40 : vector<8x128xf32>
    %42 = math.tanh %41 : vector<8x128xf32>
    %43 = arith.mulf %38, %42 : vector<8x128xf32>
    %44 = arith.truncf %43 : vector<8x128xf32> to vector<8x128xbf16>
    %45 = arith.index_cast %c0_i32_9 : i32 to index
    %c0_16 = arith.constant 0 : index
    %c0_17 = arith.constant 0 : index
    %46 = vector.load %arg5[%45, %c0_16, %c0_17] : memref<9x8x128xbf16, #tpu.memory_space<vmem>>, vector<1x8x128xbf16>
    %47 = vector.shape_cast %46 : vector<1x8x128xbf16> to vector<8x128xbf16>
    %48 = vector.shape_cast %44 : vector<8x128xbf16> to vector<1x8x128xbf16>
    tpu.vector_store %arg5[%45, %c0_16, %c0_17], %48 {strides = array<i32>} : memref<9x8x128xbf16, #tpu.memory_space<vmem>>, vector<1x8x128xbf16>,
    %c1_i32 = arith.constant 1 : i32
    %49 = arith.index_cast %c1_i32 : i32 to index
    %c0_18 = arith.constant 0 : index
    %c0_19 = arith.constant 0 : index
    %50 = vector.load %arg6[%49, %c0_18, %c0_19] : memref<9x8x512xbf16, #tpu.memory_space<vmem>>, vector<1x8x512xbf16>
    %51 = vector.shape_cast %50 : vector<1x8x512xbf16> to vector<8x512xbf16>
    %52 = arith.extf %51 : vector<8x512xbf16> to vector<8x512xf32>
    %53 = arith.truncf %43 : vector<8x128xf32> to vector<8x128xbf16>
    %cst_20 = arith.constant dense<0.000000e+00> : vector<8x512xf32>
    %54 = tpu.matmul %53, %9, %cst_20 {dimension_numbers = #tpu.dot_dimension_numbers<[1], [0], [0], [1], [0, 0, 1, 1], [], []>} : vector<8x128xbf16>, vector<128x512xbf16>, vector<8x512xf32> -> vector<8x512xf32>
    %55 = arith.addf %52, %54 : vector<8x512xf32>
    %56 = vector.extract_strided_slice %55 {offsets = [0, 0], sizes = [8, 128], strides = [1, 1]} : vector<8x512xf32> to vector<8x128xf32>
    %57 = arith.negf %56 : vector<8x128xf32>
    %58 = math.exp %57 : vector<8x128xf32>
    %cst_21 = arith.constant 1.000000e+00 : f32
    %59 = vector.broadcast %cst_21 : f32 to vector<8x128xf32>
    %60 = arith.addf %59, %58 : vector<8x128xf32>
    %61 = arith.divf %59, %60 : vector<8x128xf32>
    %62 = vector.extract_strided_slice %55 {offsets = [0, 128], sizes = [8, 128], strides = [1, 1]} : vector<8x512xf32> to vector<8x128xf32>
    %63 = arith.negf %62 : vector<8x128xf32>
    %64 = math.exp %63 : vector<8x128xf32>
    %cst_22 = arith.constant 1.000000e+00 : f32
    %65 = vector.broadcast %cst_22 : f32 to vector<8x128xf32>
    %66 = arith.addf %65, %64 : vector<8x128xf32>
    %67 = arith.divf %65, %66 : vector<8x128xf32>
    %68 = vector.extract_strided_slice %55 {offsets = [0, 256], sizes = [8, 128], strides = [1, 1]} : vector<8x512xf32> to vector<8x128xf32>
    %69 = math.tanh %68 : vector<8x128xf32>
    %70 = vector.extract_strided_slice %55 {offsets = [0, 384], sizes = [8, 128], strides = [1, 1]} : vector<8x512xf32> to vector<8x128xf32>
    %71 = arith.negf %70 : vector<8x128xf32>
    %72 = math.exp %71 : vector<8x128xf32>
    %cst_23 = arith.constant 1.000000e+00 : f32
    %73 = vector.broadcast %cst_23 : f32 to vector<8x128xf32>
    %74 = arith.addf %73, %72 : vector<8x128xf32>
    %75 = arith.divf %73, %74 : vector<8x128xf32>
    %76 = arith.mulf %67, %41 : vector<8x128xf32>
    %77 = arith.mulf %61, %69 : vector<8x128xf32>
    %78 = arith.addf %76, %77 : vector<8x128xf32>
    %79 = math.tanh %78 : vector<8x128xf32>
    %80 = arith.mulf %75, %79 : vector<8x128xf32>
    %81 = arith.truncf %80 : vector<8x128xf32> to vector<8x128xbf16>
    %82 = arith.index_cast %c1_i32 : i32 to index
    %c0_24 = arith.constant 0 : index
    %c0_25 = arith.constant 0 : index
    %83 = vector.load %arg5[%82, %c0_24, %c0_25] : memref<9x8x128xbf16, #tpu.memory_space<vmem>>, vector<1x8x128xbf16>
    %84 = vector.shape_cast %83 : vector<1x8x128xbf16> to vector<8x128xbf16>
    %85 = vector.shape_cast %81 : vector<8x128xbf16> to vector<1x8x128xbf16>
    tpu.vector_store %arg5[%82, %c0_24, %c0_25], %85 {strides = array<i32>} : memref<9x8x128xbf16, #tpu.memory_space<vmem>>, vector<1x8x128xbf16>,
    %c2_i32 = arith.constant 2 : i32
    %86 = arith.index_cast %c2_i32 : i32 to index
    %c0_26 = arith.constant 0 : index
    %c0_27 = arith.constant 0 : index
    %87 = vector.load %arg6[%86, %c0_26, %c0_27] : memref<9x8x512xbf16, #tpu.memory_space<vmem>>, vector<1x8x512xbf16>
    %88 = vector.shape_cast %87 : vector<1x8x512xbf16> to vector<8x512xbf16>
    %89 = arith.extf %88 : vector<8x512xbf16> to vector<8x512xf32>
    %90 = arith.truncf %80 : vector<8x128xf32> to vector<8x128xbf16>
    %cst_28 = arith.constant dense<0.000000e+00> : vector<8x512xf32>
    %91 = tpu.matmul %90, %9, %cst_28 {dimension_numbers = #tpu.dot_dimension_numbers<[1], [0], [0], [1], [0, 0, 1, 1], [], []>} : vector<8x128xbf16>, vector<128x512xbf16>, vector<8x512xf32> -> vector<8x512xf32>
    %92 = arith.addf %89, %91 : vector<8x512xf32>
    %93 = vector.extract_strided_slice %92 {offsets = [0, 0], sizes = [8, 128], strides = [1, 1]} : vector<8x512xf32> to vector<8x128xf32>
    %94 = arith.negf %93 : vector<8x128xf32>
    %95 = math.exp %94 : vector<8x128xf32>
    %cst_29 = arith.constant 1.000000e+00 : f32
    %96 = vector.broadcast %cst_29 : f32 to vector<8x128xf32>
    %97 = arith.addf %96, %95 : vector<8x128xf32>
    %98 = arith.divf %96, %97 : vector<8x128xf32>
    %99 = vector.extract_strided_slice %92 {offsets = [0, 128], sizes = [8, 128], strides = [1, 1]} : vector<8x512xf32> to vector<8x128xf32>
    %100 = arith.negf %99 : vector<8x128xf32>
    %101 = math.exp %100 : vector<8x128xf32>
    %cst_30 = arith.constant 1.000000e+00 : f32
    %102 = vector.broadcast %cst_30 : f32 to vector<8x128xf32>
    %103 = arith.addf %102, %101 : vector<8x128xf32>
    %104 = arith.divf %102, %103 : vector<8x128xf32>
    %105 = vector.extract_strided_slice %92 {offsets = [0, 256], sizes = [8, 128], strides = [1, 1]} : vector<8x512xf32> to vector<8x128xf32>
    %106 = math.tanh %105 : vector<8x128xf32>
    %107 = vector.extract_strided_slice %92 {offsets = [0, 384], sizes = [8, 128], strides = [1, 1]} : vector<8x512xf32> to vector<8x128xf32>
    %108 = arith.negf %107 : vector<8x128xf32>
    %109 = math.exp %108 : vector<8x128xf32>
    %cst_31 = arith.constant 1.000000e+00 : f32
    %110 = vector.broadcast %cst_31 : f32 to vector<8x128xf32>
    %111 = arith.addf %110, %109 : vector<8x128xf32>
    %112 = arith.divf %110, %111 : vector<8x128xf32>
    %113 = arith.mulf %104, %78 : vector<8x128xf32>
    %114 = arith.mulf %98, %106 : vector<8x128xf32>
    %115 = arith.addf %113, %114 : vector<8x128xf32>
    %116 = math.tanh %115 : vector<8x128xf32>
    %117 = arith.mulf %112, %116 : vector<8x128xf32>
    %118 = arith.truncf %117 : vector<8x128xf32> to vector<8x128xbf16>
    %119 = arith.index_cast %c2_i32 : i32 to index
    %c0_32 = arith.constant 0 : index
    %c0_33 = arith.constant 0 : index
    %120 = vector.load %arg5[%119, %c0_32, %c0_33] : memref<9x8x128xbf16, #tpu.memory_space<vmem>>, vector<1x8x128xbf16>
    %121 = vector.shape_cast %120 : vector<1x8x128xbf16> to vector<8x128xbf16>
    %122 = vector.shape_cast %118 : vector<8x128xbf16> to vector<1x8x128xbf16>
    tpu.vector_store %arg5[%119, %c0_32, %c0_33], %122 {strides = array<i32>} : memref<9x8x128xbf16, #tpu.memory_space<vmem>>, vector<1x8x128xbf16>,
    %c3_i32 = arith.constant 3 : i32
    %123 = arith.index_cast %c3_i32 : i32 to index
    %c0_34 = arith.constant 0 : index
    %c0_35 = arith.constant 0 : index
    %124 = vector.load %arg6[%123, %c0_34, %c0_35] : memref<9x8x512xbf16, #tpu.memory_space<vmem>>, vector<1x8x512xbf16>
    %125 = vector.shape_cast %124 : vector<1x8x512xbf16> to vector<8x512xbf16>
    %126 = arith.extf %125 : vector<8x512xbf16> to vector<8x512xf32>
    %127 = arith.truncf %117 : vector<8x128xf32> to vector<8x128xbf16>
    %cst_36 = arith.constant dense<0.000000e+00> : vector<8x512xf32>
    %128 = tpu.matmul %127, %9, %cst_36 {dimension_numbers = #tpu.dot_dimension_numbers<[1], [0], [0], [1], [0, 0, 1, 1], [], []>} : vector<8x128xbf16>, vector<128x512xbf16>, vector<8x512xf32> -> vector<8x512xf32>
    %129 = arith.addf %126, %128 : vector<8x512xf32>
    %130 = vector.extract_strided_slice %129 {offsets = [0, 0], sizes = [8, 128], strides = [1, 1]} : vector<8x512xf32> to vector<8x128xf32>
    %131 = arith.negf %130 : vector<8x128xf32>
    %132 = math.exp %131 : vector<8x128xf32>
    %cst_37 = arith.constant 1.000000e+00 : f32
    %133 = vector.broadcast %cst_37 : f32 to vector<8x128xf32>
    %134 = arith.addf %133, %132 : vector<8x128xf32>
    %135 = arith.divf %133, %134 : vector<8x128xf32>
    %136 = vector.extract_strided_slice %129 {offsets = [0, 128], sizes = [8, 128], strides = [1, 1]} : vector<8x512xf32> to vector<8x128xf32>
    %137 = arith.negf %136 : vector<8x128xf32>
    %138 = math.exp %137 : vector<8x128xf32>
    %cst_38 = arith.constant 1.000000e+00 : f32
    %139 = vector.broadcast %cst_38 : f32 to vector<8x128xf32>
    %140 = arith.addf %139, %138 : vector<8x128xf32>
    %141 = arith.divf %139, %140 : vector<8x128xf32>
    %142 = vector.extract_strided_slice %129 {offsets = [0, 256], sizes = [8, 128], strides = [1, 1]} : vector<8x512xf32> to vector<8x128xf32>
    %143 = math.tanh %142 : vector<8x128xf32>
    %144 = vector.extract_strided_slice %129 {offsets = [0, 384], sizes = [8, 128], strides = [1, 1]} : vector<8x512xf32> to vector<8x128xf32>
    %145 = arith.negf %144 : vector<8x128xf32>
    %146 = math.exp %145 : vector<8x128xf32>
    %cst_39 = arith.constant 1.000000e+00 : f32
    %147 = vector.broadcast %cst_39 : f32 to vector<8x128xf32>
    %148 = arith.addf %147, %146 : vector<8x128xf32>
    %149 = arith.divf %147, %148 : vector<8x128xf32>
    %150 = arith.mulf %141, %115 : vector<8x128xf32>
    %151 = arith.mulf %135, %143 : vector<8x128xf32>
    %152 = arith.addf %150, %151 : vector<8x128xf32>
    %153 = math.tanh %152 : vector<8x128xf32>
    %154 = arith.mulf %149, %153 : vector<8x128xf32>
    %155 = arith.truncf %154 : vector<8x128xf32> to vector<8x128xbf16>
    %156 = arith.index_cast %c3_i32 : i32 to index
    %c0_40 = arith.constant 0 : index
    %c0_41 = arith.constant 0 : index
    %157 = vector.load %arg5[%156, %c0_40, %c0_41] : memref<9x8x128xbf16, #tpu.memory_space<vmem>>, vector<1x8x128xbf16>
    %158 = vector.shape_cast %157 : vector<1x8x128xbf16> to vector<8x128xbf16>
    %159 = vector.shape_cast %155 : vector<8x128xbf16> to vector<1x8x128xbf16>
    tpu.vector_store %arg5[%156, %c0_40, %c0_41], %159 {strides = array<i32>} : memref<9x8x128xbf16, #tpu.memory_space<vmem>>, vector<1x8x128xbf16>,
    %c4_i32 = arith.constant 4 : i32
    %160 = arith.index_cast %c4_i32 : i32 to index
    %c0_42 = arith.constant 0 : index
    %c0_43 = arith.constant 0 : index
    %161 = vector.load %arg6[%160, %c0_42, %c0_43] : memref<9x8x512xbf16, #tpu.memory_space<vmem>>, vector<1x8x512xbf16>
    %162 = vector.shape_cast %161 : vector<1x8x512xbf16> to vector<8x512xbf16>
    %163 = arith.extf %162 : vector<8x512xbf16> to vector<8x512xf32>
    %164 = arith.truncf %154 : vector<8x128xf32> to vector<8x128xbf16>
    %cst_44 = arith.constant dense<0.000000e+00> : vector<8x512xf32>
    %165 = tpu.matmul %164, %9, %cst_44 {dimension_numbers = #tpu.dot_dimension_numbers<[1], [0], [0], [1], [0, 0, 1, 1], [], []>} : vector<8x128xbf16>, vector<128x512xbf16>, vector<8x512xf32> -> vector<8x512xf32>
    %166 = arith.addf %163, %165 : vector<8x512xf32>
    %167 = vector.extract_strided_slice %166 {offsets = [0, 0], sizes = [8, 128], strides = [1, 1]} : vector<8x512xf32> to vector<8x128xf32>
    %168 = arith.negf %167 : vector<8x128xf32>
    %169 = math.exp %168 : vector<8x128xf32>
    %cst_45 = arith.constant 1.000000e+00 : f32
    %170 = vector.broadcast %cst_45 : f32 to vector<8x128xf32>
    %171 = arith.addf %170, %169 : vector<8x128xf32>
    %172 = arith.divf %170, %171 : vector<8x128xf32>
    %173 = vector.extract_strided_slice %166 {offsets = [0, 128], sizes = [8, 128], strides = [1, 1]} : vector<8x512xf32> to vector<8x128xf32>
    %174 = arith.negf %173 : vector<8x128xf32>
    %175 = math.exp %174 : vector<8x128xf32>
    %cst_46 = arith.constant 1.000000e+00 : f32
    %176 = vector.broadcast %cst_46 : f32 to vector<8x128xf32>
    %177 = arith.addf %176, %175 : vector<8x128xf32>
    %178 = arith.divf %176, %177 : vector<8x128xf32>
    %179 = vector.extract_strided_slice %166 {offsets = [0, 256], sizes = [8, 128], strides = [1, 1]} : vector<8x512xf32> to vector<8x128xf32>
    %180 = math.tanh %179 : vector<8x128xf32>
    %181 = vector.extract_strided_slice %166 {offsets = [0, 384], sizes = [8, 128], strides = [1, 1]} : vector<8x512xf32> to vector<8x128xf32>
    %182 = arith.negf %181 : vector<8x128xf32>
    %183 = math.exp %182 : vector<8x128xf32>
    %cst_47 = arith.constant 1.000000e+00 : f32
    %184 = vector.broadcast %cst_47 : f32 to vector<8x128xf32>
    %185 = arith.addf %184, %183 : vector<8x128xf32>
    %186 = arith.divf %184, %185 : vector<8x128xf32>
    %187 = arith.mulf %178, %152 : vector<8x128xf32>
    %188 = arith.mulf %172, %180 : vector<8x128xf32>
    %189 = arith.addf %187, %188 : vector<8x128xf32>
    %190 = math.tanh %189 : vector<8x128xf32>
    %191 = arith.mulf %186, %190 : vector<8x128xf32>
    %192 = arith.truncf %191 : vector<8x128xf32> to vector<8x128xbf16>
    %193 = arith.index_cast %c4_i32 : i32 to index
    %c0_48 = arith.constant 0 : index
    %c0_49 = arith.constant 0 : index
    %194 = vector.load %arg5[%193, %c0_48, %c0_49] : memref<9x8x128xbf16, #tpu.memory_space<vmem>>, vector<1x8x128xbf16>
    %195 = vector.shape_cast %194 : vector<1x8x128xbf16> to vector<8x128xbf16>
    %196 = vector.shape_cast %192 : vector<8x128xbf16> to vector<1x8x128xbf16>
    tpu.vector_store %arg5[%193, %c0_48, %c0_49], %196 {strides = array<i32>} : memref<9x8x128xbf16, #tpu.memory_space<vmem>>, vector<1x8x128xbf16>,
    %c5_i32 = arith.constant 5 : i32
    %197 = arith.index_cast %c5_i32 : i32 to index
    %c0_50 = arith.constant 0 : index
    %c0_51 = arith.constant 0 : index
    %198 = vector.load %arg6[%197, %c0_50, %c0_51] : memref<9x8x512xbf16, #tpu.memory_space<vmem>>, vector<1x8x512xbf16>
    %199 = vector.shape_cast %198 : vector<1x8x512xbf16> to vector<8x512xbf16>
    %200 = arith.extf %199 : vector<8x512xbf16> to vector<8x512xf32>
    %201 = arith.truncf %191 : vector<8x128xf32> to vector<8x128xbf16>
    %cst_52 = arith.constant dense<0.000000e+00> : vector<8x512xf32>
    %202 = tpu.matmul %201, %9, %cst_52 {dimension_numbers = #tpu.dot_dimension_numbers<[1], [0], [0], [1], [0, 0, 1, 1], [], []>} : vector<8x128xbf16>, vector<128x512xbf16>, vector<8x512xf32> -> vector<8x512xf32>
    %203 = arith.addf %200, %202 : vector<8x512xf32>
    %204 = vector.extract_strided_slice %203 {offsets = [0, 0], sizes = [8, 128], strides = [1, 1]} : vector<8x512xf32> to vector<8x128xf32>
    %205 = arith.negf %204 : vector<8x128xf32>
    %206 = math.exp %205 : vector<8x128xf32>
    %cst_53 = arith.constant 1.000000e+00 : f32
    %207 = vector.broadcast %cst_53 : f32 to vector<8x128xf32>
    %208 = arith.addf %207, %206 : vector<8x128xf32>
    %209 = arith.divf %207, %208 : vector<8x128xf32>
    %210 = vector.extract_strided_slice %203 {offsets = [0, 128], sizes = [8, 128], strides = [1, 1]} : vector<8x512xf32> to vector<8x128xf32>
    %211 = arith.negf %210 : vector<8x128xf32>
    %212 = math.exp %211 : vector<8x128xf32>
    %cst_54 = arith.constant 1.000000e+00 : f32
    %213 = vector.broadcast %cst_54 : f32 to vector<8x128xf32>
    %214 = arith.addf %213, %212 : vector<8x128xf32>
    %215 = arith.divf %213, %214 : vector<8x128xf32>
    %216 = vector.extract_strided_slice %203 {offsets = [0, 256], sizes = [8, 128], strides = [1, 1]} : vector<8x512xf32> to vector<8x128xf32>
    %217 = math.tanh %216 : vector<8x128xf32>
    %218 = vector.extract_strided_slice %203 {offsets = [0, 384], sizes = [8, 128], strides = [1, 1]} : vector<8x512xf32> to vector<8x128xf32>
    %219 = arith.negf %218 : vector<8x128xf32>
    %220 = math.exp %219 : vector<8x128xf32>
    %cst_55 = arith.constant 1.000000e+00 : f32
    %221 = vector.broadcast %cst_55 : f32 to vector<8x128xf32>
    %222 = arith.addf %221, %220 : vector<8x128xf32>
    %223 = arith.divf %221, %222 : vector<8x128xf32>
    %224 = arith.mulf %215, %189 : vector<8x128xf32>
    %225 = arith.mulf %209, %217 : vector<8x128xf32>
    %226 = arith.addf %224, %225 : vector<8x128xf32>
    %227 = math.tanh %226 : vector<8x128xf32>
    %228 = arith.mulf %223, %227 : vector<8x128xf32>
    %229 = arith.truncf %228 : vector<8x128xf32> to vector<8x128xbf16>
    %230 = arith.index_cast %c5_i32 : i32 to index
    %c0_56 = arith.constant 0 : index
    %c0_57 = arith.constant 0 : index
    %231 = vector.load %arg5[%230, %c0_56, %c0_57] : memref<9x8x128xbf16, #tpu.memory_space<vmem>>, vector<1x8x128xbf16>
    %232 = vector.shape_cast %231 : vector<1x8x128xbf16> to vector<8x128xbf16>
    %233 = vector.shape_cast %229 : vector<8x128xbf16> to vector<1x8x128xbf16>
    tpu.vector_store %arg5[%230, %c0_56, %c0_57], %233 {strides = array<i32>} : memref<9x8x128xbf16, #tpu.memory_space<vmem>>, vector<1x8x128xbf16>,
    %c6_i32 = arith.constant 6 : i32
    %234 = arith.index_cast %c6_i32 : i32 to index
    %c0_58 = arith.constant 0 : index
    %c0_59 = arith.constant 0 : index
    %235 = vector.load %arg6[%234, %c0_58, %c0_59] : memref<9x8x512xbf16, #tpu.memory_space<vmem>>, vector<1x8x512xbf16>
    %236 = vector.shape_cast %235 : vector<1x8x512xbf16> to vector<8x512xbf16>
    %237 = arith.extf %236 : vector<8x512xbf16> to vector<8x512xf32>
    %238 = arith.truncf %228 : vector<8x128xf32> to vector<8x128xbf16>
    %cst_60 = arith.constant dense<0.000000e+00> : vector<8x512xf32>
    %239 = tpu.matmul %238, %9, %cst_60 {dimension_numbers = #tpu.dot_dimension_numbers<[1], [0], [0], [1], [0, 0, 1, 1], [], []>} : vector<8x128xbf16>, vector<128x512xbf16>, vector<8x512xf32> -> vector<8x512xf32>
    %240 = arith.addf %237, %239 : vector<8x512xf32>
    %241 = vector.extract_strided_slice %240 {offsets = [0, 0], sizes = [8, 128], strides = [1, 1]} : vector<8x512xf32> to vector<8x128xf32>
    %242 = arith.negf %241 : vector<8x128xf32>
    %243 = math.exp %242 : vector<8x128xf32>
    %cst_61 = arith.constant 1.000000e+00 : f32
    %244 = vector.broadcast %cst_61 : f32 to vector<8x128xf32>
    %245 = arith.addf %244, %243 : vector<8x128xf32>
    %246 = arith.divf %244, %245 : vector<8x128xf32>
    %247 = vector.extract_strided_slice %240 {offsets = [0, 128], sizes = [8, 128], strides = [1, 1]} : vector<8x512xf32> to vector<8x128xf32>
    %248 = arith.negf %247 : vector<8x128xf32>
    %249 = math.exp %248 : vector<8x128xf32>
    %cst_62 = arith.constant 1.000000e+00 : f32
    %250 = vector.broadcast %cst_62 : f32 to vector<8x128xf32>
    %251 = arith.addf %250, %249 : vector<8x128xf32>
    %252 = arith.divf %250, %251 : vector<8x128xf32>
    %253 = vector.extract_strided_slice %240 {offsets = [0, 256], sizes = [8, 128], strides = [1, 1]} : vector<8x512xf32> to vector<8x128xf32>
    %254 = math.tanh %253 : vector<8x128xf32>
    %255 = vector.extract_strided_slice %240 {offsets = [0, 384], sizes = [8, 128], strides = [1, 1]} : vector<8x512xf32> to vector<8x128xf32>
    %256 = arith.negf %255 : vector<8x128xf32>
    %257 = math.exp %256 : vector<8x128xf32>
    %cst_63 = arith.constant 1.000000e+00 : f32
    %258 = vector.broadcast %cst_63 : f32 to vector<8x128xf32>
    %259 = arith.addf %258, %257 : vector<8x128xf32>
    %260 = arith.divf %258, %259 : vector<8x128xf32>
    %261 = arith.mulf %252, %226 : vector<8x128xf32>
    %262 = arith.mulf %246, %254 : vector<8x128xf32>
    %263 = arith.addf %261, %262 : vector<8x128xf32>
    %264 = math.tanh %263 : vector<8x128xf32>
    %265 = arith.mulf %260, %264 : vector<8x128xf32>
    %266 = arith.truncf %265 : vector<8x128xf32> to vector<8x128xbf16>
    %267 = arith.index_cast %c6_i32 : i32 to index
    %c0_64 = arith.constant 0 : index
    %c0_65 = arith.constant 0 : index
    %268 = vector.load %arg5[%267, %c0_64, %c0_65] : memref<9x8x128xbf16, #tpu.memory_space<vmem>>, vector<1x8x128xbf16>
    %269 = vector.shape_cast %268 : vector<1x8x128xbf16> to vector<8x128xbf16>
    %270 = vector.shape_cast %266 : vector<8x128xbf16> to vector<1x8x128xbf16>
    tpu.vector_store %arg5[%267, %c0_64, %c0_65], %270 {strides = array<i32>} : memref<9x8x128xbf16, #tpu.memory_space<vmem>>, vector<1x8x128xbf16>,
    %c7_i32 = arith.constant 7 : i32
    %271 = arith.index_cast %c7_i32 : i32 to index
    %c0_66 = arith.constant 0 : index
    %c0_67 = arith.constant 0 : index
    %272 = vector.load %arg6[%271, %c0_66, %c0_67] : memref<9x8x512xbf16, #tpu.memory_space<vmem>>, vector<1x8x512xbf16>
    %273 = vector.shape_cast %272 : vector<1x8x512xbf16> to vector<8x512xbf16>
    %274 = arith.extf %273 : vector<8x512xbf16> to vector<8x512xf32>
    %275 = arith.truncf %265 : vector<8x128xf32> to vector<8x128xbf16>
    %cst_68 = arith.constant dense<0.000000e+00> : vector<8x512xf32>
    %276 = tpu.matmul %275, %9, %cst_68 {dimension_numbers = #tpu.dot_dimension_numbers<[1], [0], [0], [1], [0, 0, 1, 1], [], []>} : vector<8x128xbf16>, vector<128x512xbf16>, vector<8x512xf32> -> vector<8x512xf32>
    %277 = arith.addf %274, %276 : vector<8x512xf32>
    %278 = vector.extract_strided_slice %277 {offsets = [0, 0], sizes = [8, 128], strides = [1, 1]} : vector<8x512xf32> to vector<8x128xf32>
    %279 = arith.negf %278 : vector<8x128xf32>
    %280 = math.exp %279 : vector<8x128xf32>
    %cst_69 = arith.constant 1.000000e+00 : f32
    %281 = vector.broadcast %cst_69 : f32 to vector<8x128xf32>
    %282 = arith.addf %281, %280 : vector<8x128xf32>
    %283 = arith.divf %281, %282 : vector<8x128xf32>
    %284 = vector.extract_strided_slice %277 {offsets = [0, 128], sizes = [8, 128], strides = [1, 1]} : vector<8x512xf32> to vector<8x128xf32>
    %285 = arith.negf %284 : vector<8x128xf32>
    %286 = math.exp %285 : vector<8x128xf32>
    %cst_70 = arith.constant 1.000000e+00 : f32
    %287 = vector.broadcast %cst_70 : f32 to vector<8x128xf32>
    %288 = arith.addf %287, %286 : vector<8x128xf32>
    %289 = arith.divf %287, %288 : vector<8x128xf32>
    %290 = vector.extract_strided_slice %277 {offsets = [0, 256], sizes = [8, 128], strides = [1, 1]} : vector<8x512xf32> to vector<8x128xf32>
    %291 = math.tanh %290 : vector<8x128xf32>
    %292 = vector.extract_strided_slice %277 {offsets = [0, 384], sizes = [8, 128], strides = [1, 1]} : vector<8x512xf32> to vector<8x128xf32>
    %293 = arith.negf %292 : vector<8x128xf32>
    %294 = math.exp %293 : vector<8x128xf32>
    %cst_71 = arith.constant 1.000000e+00 : f32
    %295 = vector.broadcast %cst_71 : f32 to vector<8x128xf32>
    %296 = arith.addf %295, %294 : vector<8x128xf32>
    %297 = arith.divf %295, %296 : vector<8x128xf32>
    %298 = arith.mulf %289, %263 : vector<8x128xf32>
    %299 = arith.mulf %283, %291 : vector<8x128xf32>
    %300 = arith.addf %298, %299 : vector<8x128xf32>
    %301 = math.tanh %300 : vector<8x128xf32>
    %302 = arith.mulf %297, %301 : vector<8x128xf32>
    %303 = arith.truncf %302 : vector<8x128xf32> to vector<8x128xbf16>
    %304 = arith.index_cast %c7_i32 : i32 to index
    %c0_72 = arith.constant 0 : index
    %c0_73 = arith.constant 0 : index
    %305 = vector.load %arg5[%304, %c0_72, %c0_73] : memref<9x8x128xbf16, #tpu.memory_space<vmem>>, vector<1x8x128xbf16>
    %306 = vector.shape_cast %305 : vector<1x8x128xbf16> to vector<8x128xbf16>
    %307 = vector.shape_cast %303 : vector<8x128xbf16> to vector<1x8x128xbf16>
    tpu.vector_store %arg5[%304, %c0_72, %c0_73], %307 {strides = array<i32>} : memref<9x8x128xbf16, #tpu.memory_space<vmem>>, vector<1x8x128xbf16>,
    %c8_i32 = arith.constant 8 : i32
    %308 = arith.index_cast %c8_i32 : i32 to index
    %c0_74 = arith.constant 0 : index
    %c0_75 = arith.constant 0 : index
    %309 = vector.load %arg6[%308, %c0_74, %c0_75] : memref<9x8x512xbf16, #tpu.memory_space<vmem>>, vector<1x8x512xbf16>
    %310 = vector.shape_cast %309 : vector<1x8x512xbf16> to vector<8x512xbf16>
    %311 = arith.extf %310 : vector<8x512xbf16> to vector<8x512xf32>
    %312 = arith.truncf %302 : vector<8x128xf32> to vector<8x128xbf16>
    %cst_76 = arith.constant dense<0.000000e+00> : vector<8x512xf32>
    %313 = tpu.matmul %312, %9, %cst_76 {dimension_numbers = #tpu.dot_dimension_numbers<[1], [0], [0], [1], [0, 0, 1, 1], [], []>} : vector<8x128xbf16>, vector<128x512xbf16>, vector<8x512xf32> -> vector<8x512xf32>
    %314 = arith.addf %311, %313 : vector<8x512xf32>
    %315 = vector.extract_strided_slice %314 {offsets = [0, 0], sizes = [8, 128], strides = [1, 1]} : vector<8x512xf32> to vector<8x128xf32>
    %316 = arith.negf %315 : vector<8x128xf32>
    %317 = math.exp %316 : vector<8x128xf32>
    %cst_77 = arith.constant 1.000000e+00 : f32
    %318 = vector.broadcast %cst_77 : f32 to vector<8x128xf32>
    %319 = arith.addf %318, %317 : vector<8x128xf32>
    %320 = arith.divf %318, %319 : vector<8x128xf32>
    %321 = vector.extract_strided_slice %314 {offsets = [0, 128], sizes = [8, 128], strides = [1, 1]} : vector<8x512xf32> to vector<8x128xf32>
    %322 = arith.negf %321 : vector<8x128xf32>
    %323 = math.exp %322 : vector<8x128xf32>
    %cst_78 = arith.constant 1.000000e+00 : f32
    %324 = vector.broadcast %cst_78 : f32 to vector<8x128xf32>
    %325 = arith.addf %324, %323 : vector<8x128xf32>
    %326 = arith.divf %324, %325 : vector<8x128xf32>
    %327 = vector.extract_strided_slice %314 {offsets = [0, 256], sizes = [8, 128], strides = [1, 1]} : vector<8x512xf32> to vector<8x128xf32>
    %328 = math.tanh %327 : vector<8x128xf32>
    %329 = vector.extract_strided_slice %314 {offsets = [0, 384], sizes = [8, 128], strides = [1, 1]} : vector<8x512xf32> to vector<8x128xf32>
    %330 = arith.negf %329 : vector<8x128xf32>
    %331 = math.exp %330 : vector<8x128xf32>
    %cst_79 = arith.constant 1.000000e+00 : f32
    %332 = vector.broadcast %cst_79 : f32 to vector<8x128xf32>
    %333 = arith.addf %332, %331 : vector<8x128xf32>
    %334 = arith.divf %332, %333 : vector<8x128xf32>
    %335 = arith.mulf %326, %300 : vector<8x128xf32>
    %336 = arith.mulf %320, %328 : vector<8x128xf32>
    %337 = arith.addf %335, %336 : vector<8x128xf32>
    %338 = math.tanh %337 : vector<8x128xf32>
    %339 = arith.mulf %334, %338 : vector<8x128xf32>
    %340 = arith.truncf %339 : vector<8x128xf32> to vector<8x128xbf16>
    %341 = arith.index_cast %c8_i32 : i32 to index
    %c0_80 = arith.constant 0 : index
    %c0_81 = arith.constant 0 : index
    %342 = vector.load %arg5[%341, %c0_80, %c0_81] : memref<9x8x128xbf16, #tpu.memory_space<vmem>>, vector<1x8x128xbf16>
    %343 = vector.shape_cast %342 : vector<1x8x128xbf16> to vector<8x128xbf16>
    %344 = vector.shape_cast %340 : vector<8x128xbf16> to vector<1x8x128xbf16>
    tpu.vector_store %arg5[%341, %c0_80, %c0_81], %344 {strides = array<i32>} : memref<9x8x128xbf16, #tpu.memory_space<vmem>>, vector<1x8x128xbf16>,
    %c9_i32 = arith.constant 9 : i32
    return
  }
  func.func @transform_0(%arg0: i32) -> (i32, i32, i32) {
    %c0_i32 = arith.constant 0 : i32
    %c0_i32_0 = arith.constant 0 : i32
    %c0_i32_1 = arith.constant 0 : i32
    %c0_i32_2 = arith.constant 0 : i32
    return %c0_i32, %c0_i32_0, %c0_i32_1 : i32, i32, i32
  }
  func.func @transform_1(%arg0: i32) -> (i32, i32, i32) {
    %c0_i32 = arith.constant 0 : i32
    %c0_i32_0 = arith.constant 0 : i32
    %c0_i32_1 = arith.constant 0 : i32
    return %arg0, %c0_i32, %c0_i32_0 : i32, i32, i32
  }
  func.func @transform_2(%arg0: i32) -> (i32, i32, i32) {
    %c0_i32 = arith.constant 0 : i32
    %c0_i32_0 = arith.constant 0 : i32
    %c0_i32_1 = arith.constant 0 : i32
    return %arg0, %c0_i32, %c0_i32_0 : i32, i32, i32
  }
  func.func @transform_3(%arg0: i32) -> (i32, i32, i32) {
    %c0_i32 = arith.constant 0 : i32
    %c0_i32_0 = arith.constant 0 : i32
    %c0_i32_1 = arith.constant 0 : i32
    return %arg0, %c0_i32, %c0_i32_0 : i32, i32, i32
  }
  func.func @transform_4(%arg0: i32) -> (i32, i32, i32) {
    %c0_i32 = arith.constant 0 : i32
    %c0_i32_0 = arith.constant 0 : i32
    %c0_i32_1 = arith.constant 0 : i32
    %c0_i32_2 = arith.constant 0 : i32
    return %c0_i32, %c0_i32_0, %c0_i32_1 : i32, i32, i32
  }
}

module attributes {stable_mosaic.version = 11 : i64} {
  func.func @_fc_kernel(%arg0: i32, %arg1: i32, %arg2: memref<72x128xbf16, #tpu.memory_space<vmem>>, %arg3: memref<128x128xbf16, #tpu.memory_space<vmem>>, %arg4: memref<1x128xf32, #tpu.memory_space<vmem>>, %arg5: memref<72x128xf32, #tpu.memory_space<vmem>>) attributes {dimension_semantics = [#tpu.dimension_semantics<parallel>, #tpu.dimension_semantics<parallel>], iteration_bounds = array<i64: 1, 1>, scalar_prefetch = 0 : i64, scratch_operands = 0 : i64, tpu.core_type = #tpu.core_type<tc>, window_params = [{transform_indices = @transform_0, window_bounds = array<i64: 72, 128>}, {transform_indices = @transform_1, window_bounds = array<i64: 128, 128>}, {transform_indices = @transform_2, window_bounds = array<i64: 1, 128>}, {transform_indices = @transform_3, window_bounds = array<i64: 72, 128>}]} {
    %c0 = arith.constant 0 : index
    %c0_0 = arith.constant 0 : index
    %0 = vector.load %arg2[%c0, %c0_0] : memref<72x128xbf16, #tpu.memory_space<vmem>>, vector<72x128xbf16>
    %c0_1 = arith.constant 0 : index
    %c0_2 = arith.constant 0 : index
    %1 = vector.load %arg3[%c0_1, %c0_2] : memref<128x128xbf16, #tpu.memory_space<vmem>>, vector<128x128xbf16>
    %cst = arith.constant dense<0.000000e+00> : vector<72x128xf32>
    %2 = tpu.matmul %0, %1, %cst {dimension_numbers = #tpu.dot_dimension_numbers<[1], [0], [0], [1], [0, 0, 1, 1], [], []>} : vector<72x128xbf16>, vector<128x128xbf16>, vector<72x128xf32> -> vector<72x128xf32>
    %c0_3 = arith.constant 0 : index
    %c0_4 = arith.constant 0 : index
    %3 = vector.load %arg4[%c0_3, %c0_4] : memref<1x128xf32, #tpu.memory_space<vmem>>, vector<1x128xf32>
    %4 = vector.broadcast %3 : vector<1x128xf32> to vector<72x128xf32>
    %5 = arith.addf %2, %4 : vector<72x128xf32>
    %c0_5 = arith.constant 0 : index
    %c0_6 = arith.constant 0 : index
    %6 = vector.load %arg5[%c0_5, %c0_6] : memref<72x128xf32, #tpu.memory_space<vmem>>, vector<72x128xf32>
    tpu.vector_store %arg5[%c0_5, %c0_6], %5 {strides = array<i32>} : memref<72x128xf32, #tpu.memory_space<vmem>>, vector<72x128xf32>,
    return
  }
  func.func @transform_0(%arg0: i32, %arg1: i32) -> (i32, i32) {
    %c0_i32 = arith.constant 0 : i32
    %c0_i32_0 = arith.constant 0 : i32
    return %arg1, %c0_i32 : i32, i32
  }
  func.func @transform_1(%arg0: i32, %arg1: i32) -> (i32, i32) {
    %c0_i32 = arith.constant 0 : i32
    %c0_i32_0 = arith.constant 0 : i32
    return %c0_i32, %arg0 : i32, i32
  }
  func.func @transform_2(%arg0: i32, %arg1: i32) -> (i32, i32) {
    %c0_i32 = arith.constant 0 : i32
    %c0_i32_0 = arith.constant 0 : i32
    return %c0_i32, %arg0 : i32, i32
  }
  func.func @transform_3(%arg0: i32, %arg1: i32) -> (i32, i32) {
    %c0_i32 = arith.constant 0 : i32
    return %arg1, %arg0 : i32, i32
  }
}

</mosaic_0001>

<llo_original>
// kernel: caption_generator_forward.3
$region0: #{caption_generator_forward.3}
  #allocation0 [shape = 'u32[]', space=smem, size = 0x4, offset = 0x4, fixed_abs, tag = 'smem constant byte address 0x4 - core index']
  #allocation1 [shape = 'u32[144,128]{1,0:T(1,128)}', space=vmem, size = 0x12000, scoped, tag = 'internal scratch']
  %s0 = inlined_call_operand.vmem [shape: bf16[72,128], index: 0, kind: input, shape index: {}]
  %s1 = inlined_call_operand.vmem [shape: bf16[128,128], index: 1, kind: input, shape index: {}]
  %s2 = inlined_call_operand.vmem [shape: f32[1,128], index: 2, kind: input, shape index: {}]
  %s3 = inlined_call_operand.vmem [shape: f32[72,128], index: 3, kind: output, shape index: {}]
  %s4 = sld [smem:[#allocation0]]
  $region22: #{caption_generator_forward.3} parent=0
    _
  %s6 = ssub.s32 1, %s4
  %s7 = scalar_select 0, %s6, %s4
  // Predicated region
  $region2: #{caption_generator_forward.3} parent=0 // pred_check
    _
  $region3: #{caption_generator_forward.3} parent=0 // pred_check_branch
    %9 = sbr.rel (0) target = $region5
  $region4: #{caption_generator_forward.3} parent=0 // pred_region
    _
  $region5: #{caption_generator_forward.3} parent=0 // pred_fallthru
    _
  // Predicated region
  $region6: #{caption_generator_forward.3} parent=0 // pred_check
    _
  $region7: #{caption_generator_forward.3} parent=0 // pred_check_branch
    %11 = sbr.rel (0) target = $region9
  $region8: #{caption_generator_forward.3} parent=0 // pred_region
    _
  $region9: #{caption_generator_forward.3} parent=0 // pred_fallthru
    _
  // Predicated region
  $region10: #{caption_generator_forward.3} parent=0 // pred_check
    _
  $region11: #{caption_generator_forward.3} parent=0 // pred_check_branch
    %13 = sbr.rel (0) target = $region13
  $region12: #{caption_generator_forward.3} parent=0 // pred_region
    _
  $region13: #{caption_generator_forward.3} parent=0 // pred_fallthru
    _
  %v15 = vld [vmem:[%s0] sm:$0xf]
  %v16 = vld [vmem:[%s0 + $0x4] sm:$0xf]
  %v17 = vld [vmem:[%s0 + $0x8] sm:$0xf]
  %v18 = vld [vmem:[%s0 + $0xc] sm:$0xf]
  %v19 = vld [vmem:[%s0 + $0x10] sm:$0xf]
  %v20 = vld [vmem:[%s0 + $0x14] sm:$0xf]
  %v21 = vld [vmem:[%s0 + $0x18] sm:$0xf]
  %v22 = vld [vmem:[%s0 + $0x1c] sm:$0xf]
  %v23 = vld [vmem:[%s0 + $0x20] sm:$0xf]
  %v24 = vld [vmem:[%s1] sm:$0xf]
  %v25 = vld [vmem:[%s1 + $0x4] sm:$0xf]
  %v26 = vld [vmem:[%s1 + $0x8] sm:$0xf]
  %v27 = vld [vmem:[%s1 + $0xc] sm:$0xf]
  %v28 = vld [vmem:[%s1 + $0x10] sm:$0xf]
  %v29 = vld [vmem:[%s1 + $0x14] sm:$0xf]
  %v30 = vld [vmem:[%s1 + $0x18] sm:$0xf]
  %v31 = vld [vmem:[%s1 + $0x1c] sm:$0xf]
  %v32 = vld [vmem:[%s1 + $0x20] sm:$0xf]
  %v33 = vld [vmem:[%s1 + $0x24] sm:$0xf]
  %v34 = vld [vmem:[%s1 + $0x28] sm:$0xf]
  %v35 = vld [vmem:[%s1 + $0x2c] sm:$0xf]
  %v36 = vld [vmem:[%s1 + $0x30] sm:$0xf]
  %v37 = vld [vmem:[%s1 + $0x34] sm:$0xf]
  %v38 = vld [vmem:[%s1 + $0x38] sm:$0xf]
  %v39 = vld [vmem:[%s1 + $0x3c] sm:$0xf]
  %v40 = vld [vmem:[%s2] sm:$0x1]
  %v42 = vlaneseq
  %v43 = vshrl.u32 %v42, 7
  %v44 = vsub.s32 0, %v43
  %v45 = vrot.slane %v40, %v44
  %v56 = vunpack.c.l.b16 %v15
  %v57 = vunpack.c.l.b16 %v16
  %v58 = vunpack.c.l.b16 %v17
  %v59 = vunpack.c.l.b16 %v18
  %v60 = vunpack.c.l.b16 %v19
  %v61 = vunpack.c.l.b16 %v20
  %v62 = vunpack.c.l.b16 %v21
  %v63 = vunpack.c.l.b16 %v22
  %v64 = vunpack.c.l.b16 %v23
  %v65 = vpack.c.b16 %v57, %v56
  %v66 = vpack.c.b16 %v59, %v58
  %v67 = vpack.c.b16 %v61, %v60
  %v68 = vpack.c.b16 %v63, %v62
  %v69 = vpack.c.b16 %v64, %v64
  %v91 = vunpack.c.l.b16 %v24
  %v92 = vunpack.c.l.b16 %v25
  %v93 = vunpack.c.l.b16 %v26
  %v94 = vunpack.c.l.b16 %v27
  %v95 = vunpack.c.l.b16 %v28
  %v96 = vunpack.c.l.b16 %v29
  %v97 = vunpack.c.l.b16 %v30
  %v98 = vunpack.c.l.b16 %v31
  %v99 = vunpack.c.l.b16 %v32
  %v100 = vunpack.c.l.b16 %v33
  %v101 = vunpack.c.l.b16 %v34
  %v102 = vunpack.c.l.b16 %v35
  %v103 = vunpack.c.l.b16 %v36
  %v104 = vunpack.c.l.b16 %v37
  %v105 = vunpack.c.l.b16 %v38
  %v106 = vunpack.c.l.b16 %v39
  %v107 = vpack.c.b16 %v92, %v91
  %v108 = vpack.c.b16 %v94, %v93
  %v109 = vpack.c.b16 %v96, %v95
  %v110 = vpack.c.b16 %v98, %v97
  %v111 = vpack.c.b16 %v100, %v99
  %v112 = vpack.c.b16 %v102, %v101
  %v113 = vpack.c.b16 %v104, %v103
  %v114 = vpack.c.b16 %v106, %v105
  %123 = vmatprep.subr.bf16.mxu0 0
  %124 = vmatpush1.bf16.msra.mxu0 %v107
  %125 = vmatprep.subr.bf16.mxu0 0
  %126 = vmatpush1.bf16.msra.mxu0 %v108
  %127 = vmatprep.subr.bf16.mxu0 0
  %128 = vmatpush1.bf16.msra.mxu0 %v109
  %129 = vmatprep.subr.bf16.mxu0 0
  %130 = vmatpush1.bf16.msra.mxu0 %v110
  %131 = vmatprep.subr.bf16.mxu0 0
  %132 = vmatpush1.bf16.msra.mxu0 %v111
  %133 = vmatprep.subr.bf16.mxu0 0
  %134 = vmatpush1.bf16.msra.mxu0 %v112
  %135 = vmatprep.subr.bf16.mxu0 0
  %136 = vmatpush1.bf16.msra.mxu0 %v113
  %137 = vmatprep.subr.bf16.mxu0 0
  %138 = vmatpush1.bf16.msra.mxu0 %v114
  %139 = vmatprep.subr.bf16.mxu0 0
  %140 = vmatpush1.bf16.msra.mxu0 0
  %141 = vmatprep.subr.bf16.mxu0 0
  %142 = vmatpush1.bf16.msra.mxu0 0
  %143 = vmatprep.subr.bf16.mxu0 0
  %144 = vmatpush1.bf16.msra.mxu0 0
  %145 = vmatprep.subr.bf16.mxu0 0
  %146 = vmatpush1.bf16.msra.mxu0 0
  %147 = vmatprep.subr.bf16.mxu0 0
  %148 = vmatpush1.bf16.msra.mxu0 0
  %149 = vmatprep.subr.bf16.mxu0 0
  %150 = vmatpush1.bf16.msra.mxu0 0
  %151 = vmatprep.subr.bf16.mxu0 0
  %152 = vmatpush1.bf16.msra.mxu0 0
  %153 = vmatprep.subr.bf16.mxu0 0
  %154 = vmatpush1.bf16.msra.mxu0 0
  %155 = vmatprep.mubr.bf16.mxu0 0
  %156 = vmatmul.mubr.bf16.gmra.mrb[0].mxu0 %v65
  %v157 = vpop.f32.mrb[0].mxu0
  %v158 = vadd.f32 %v45, %v157
  %v159 = vpop.f32.mrb[0].mxu0
  %v160 = vpop.f32.mrb[0].mxu0
  %v161 = vadd.f32 %v45, %v160
  %v162 = vpop.f32.mrb[0].mxu0
  %163 = vmatprep.mubr.bf16.mxu0 0
  %164 = vmatmul.mubr.bf16.gmra.mrb[0].mxu0 %v66
  %v165 = vpop.f32.mrb[0].mxu0
  %v166 = vadd.f32 %v45, %v165
  %v167 = vpop.f32.mrb[0].mxu0
  %v168 = vpop.f32.mrb[0].mxu0
  %v169 = vadd.f32 %v45, %v168
  %v170 = vpop.f32.mrb[0].mxu0
  %171 = vmatprep.mubr.bf16.mxu0 0
  %172 = vmatmul.mubr.bf16.gmra.mrb[0].mxu0 %v67
  %v173 = vpop.f32.mrb[0].mxu0
  %v174 = vadd.f32 %v45, %v173
  %v175 = vpop.f32.mrb[0].mxu0
  %v176 = vpop.f32.mrb[0].mxu0
  %v177 = vadd.f32 %v45, %v176
  %v178 = vpop.f32.mrb[0].mxu0
  %179 = vmatprep.mubr.bf16.mxu0 0
  %180 = vmatmul.mubr.bf16.gmra.mrb[0].mxu0 %v68
  %v181 = vpop.f32.mrb[0].mxu0
  %v182 = vadd.f32 %v45, %v181
  %v183 = vpop.f32.mrb[0].mxu0
  %v184 = vpop.f32.mrb[0].mxu0
  %v185 = vadd.f32 %v45, %v184
  %v186 = vpop.f32.mrb[0].mxu0
  %187 = vmatprep.mubr.bf16.mxu0 0
  %188 = vmatmul.mubr.bf16.gmra.mrb[0].mxu0 %v69
  %v189 = vpop.f32.mrb[0].mxu0
  %v190 = vadd.f32 %v45, %v189
  %v191 = vpop.f32.mrb[0].mxu0
  %v192 = vpop.f32.mrb[0].mxu0
  %v193 = vpop.f32.mrb[0].mxu0
  %194 = vdwg.mxu0
  %195 = vst [vmem:[%s3] sm:$0xff] %v158
  %196 = vst [vmem:[%s3 + $0x8] sm:$0xff] %v161
  %197 = vst [vmem:[%s3 + $0x10] sm:$0xff] %v166
  %198 = vst [vmem:[%s3 + $0x18] sm:$0xff] %v169
  %199 = vst [vmem:[%s3 + $0x20] sm:$0xff] %v174
  %200 = vst [vmem:[%s3 + $0x28] sm:$0xff] %v177
  %201 = vst [vmem:[%s3 + $0x30] sm:$0xff] %v182
  %202 = vst [vmem:[%s3 + $0x38] sm:$0xff] %v185
  %203 = vst [vmem:[%s3 + $0x40] sm:$0xff] %v190
  // Predicated region
  $region14: #{caption_generator_forward.3} parent=0 // pred_check
    _
  $region15: #{caption_generator_forward.3} parent=0 // pred_check_branch
    %205 = sbr.rel (0) target = $region17
  $region16: #{caption_generator_forward.3} parent=0 // pred_region
    _
  $region17: #{caption_generator_forward.3} parent=0 // pred_fallthru
    _
  // Predicated region
  $region18: #{caption_generator_forward.3} parent=0 // pred_check
    _
  $region19: #{caption_generator_forward.3} parent=0 // pred_check_branch
    %207 = sbr.rel (0) target = $region21
  $region20: #{caption_generator_forward.3} parent=0 // pred_region
    _
  $region21: #{caption_generator_forward.3} parent=0 // pred_fallthru
    _

// kernel: caption_generator_forward.2
$region0: #{caption_generator_forward.2}
  #allocation0 [shape = 'u32[]', space=smem, size = 0x4, offset = 0x4, fixed_abs, tag = 'smem constant byte address 0x4 - core index']
  #allocation1 [shape = 'u32[144,128]{1,0:T(1,128)}', space=vmem, size = 0x12000, scoped, tag = 'internal scratch']
  #allocation2 [shape = 'bf16[9,8,512]{2,1,0:T(8,128)(2,1)}', space=vmem, size = 0x12000, scoped, tag = 'scratch operand']
  %s0 = inlined_call_operand.vmem [shape: bf16[9,8,128], index: 0, kind: input, shape index: {}]
  %s1 = inlined_call_operand.vmem [shape: bf16[2,128,512], index: 1, kind: input, shape index: {}]
  %s2 = inlined_call_operand.vmem [shape: bf16[2,128,512], index: 2, kind: input, shape index: {}]
  %s3 = inlined_call_operand.vmem [shape: f32[2,1,512], index: 3, kind: input, shape index: {}]
  %s4 = inlined_call_operand.vmem [shape: bf16[9,8,128], index: 4, kind: output, shape index: {}]
  %s5 = sld [smem:[#allocation0]]
  $region57: #{caption_generator_forward.2} parent=0
    _
  %s7 = ssub.s32 1, %s5
  %s8 = scalar_select 0, %s7, %s5
  loop: start=0, step=1, limit=4
  $region2: #{caption_generator_forward.2} parent=0 // loop_pre_header
    _
  $region3: #{caption_generator_forward.2} parent=0 // loop_header
    %s10 = sphi 0, %s14
    %p11 = scmp.ge.s32.totalorder %s10, 4
    %s18 = sphi 0, %s18
    %s20 = sphi 0, %s18
    %s21 = sphi 0, %s20
    %s35 = sphi 0, %s21
    %s41 = sphi 0, %s43
    %s44 = sphi 0, %s41
    %s45 = sphi 0, %s44
    %s61 = sphi 0, %s45
    %s67 = sphi 0, %s69
    %s70 = sphi 0, %s67
    %s71 = sphi 0, %s70
    %s87 = sphi 0, %s71
    %s93 = sphi 0, %s95
    %s96 = sphi 0, %s93
    %s97 = sphi 0, %s96
    %s113 = sphi 0, %s97
    %s117 = sphi 0, %s117
    %s119 = sphi 0, %s117
    %s120 = sphi 0, %s119
    %s134 = sphi 0, %s120
  $region4: #{caption_generator_forward.2} parent=0 // loop_header_branch
    %13 = sbr.rel (%p11) target = $region8
  $region5: #{caption_generator_forward.2} parent=0 // loop_body
    %s15 = ssub.s32 %s10, 1
    %s16 = ssub.s32 %s10, 2
    %s17 = sadd.s32 %s10, 1
    %s19 = sadd.s32 %s18, 1
    %p22 = scmp.eq.s32.totalorder %s10, 1
    %p23 = scmp.ne.s32.totalorder %s18, %s20
    %p24 = scmp.eq.s32.totalorder %s10, 0
    %p25 = por %p23, %p24
    %p26 = scmp.ne.s32.totalorder %s18, %s20
    %p27 = scmp.eq.s32.totalorder %s15, 1
    %p28 = por %p26, %p27
    %p29 = scmp.ne.s32.totalorder %s20, %s21
    %p30 = scmp.eq.s32.totalorder %s15, 0
    %p31 = por %p29, %p30
    %p32 = scmp.ne.s32.totalorder %s20, %s21
    %p33 = scmp.eq.s32.totalorder %s16, 1
    %p34 = por %p32, %p33
    %p36 = scmp.ne.s32.totalorder %s21, %s35
    %p37 = scmp.eq.s32.totalorder %s16, 0
    %p38 = por %p36, %p37
    %s39 = ssub.s32 %s10, %s17
    %p40 = scmp.eq.s32.totalorder %s39, 0
    %s42 = sadd.s32 %s41, 1
    %s43 = scalar_select %p40, %s41, %s42
    %p46 = pneg %p40
    %p47 = scmp.eq.s32.totalorder %s10, 1
    %p48 = por %p46, %p47
    %p49 = scmp.ne.s32.totalorder %s41, %s44
    %p50 = scmp.eq.s32.totalorder %s10, 0
    %p51 = por %p49, %p50
    %p52 = scmp.ne.s32.totalorder %s41, %s44
    %p53 = scmp.eq.s32.totalorder %s15, 1
    %p54 = por %p52, %p53
    %p55 = scmp.ne.s32.totalorder %s44, %s45
    %p56 = scmp.eq.s32.totalorder %s15, 0
    %p57 = por %p55, %p56
    %p58 = scmp.ne.s32.totalorder %s44, %s45
    %p59 = scmp.eq.s32.totalorder %s16, 1
    %p60 = por %p58, %p59
    %p62 = scmp.ne.s32.totalorder %s45, %s61
    %p63 = scmp.eq.s32.totalorder %s16, 0
    %p64 = por %p62, %p63
    %s65 = ssub.s32 %s10, %s17
    %p66 = scmp.eq.s32.totalorder %s65, 0
    %s68 = sadd.s32 %s67, 1
    %s69 = scalar_select %p66, %s67, %s68
    %p72 = pneg %p66
    %p73 = scmp.eq.s32.totalorder %s10, 1
    %p74 = por %p72, %p73
    %p75 = scmp.ne.s32.totalorder %s67, %s70
    %p76 = scmp.eq.s32.totalorder %s10, 0
    %p77 = por %p75, %p76
    %p78 = scmp.ne.s32.totalorder %s67, %s70
    %p79 = scmp.eq.s32.totalorder %s15, 1
    %p80 = por %p78, %p79
    %p81 = scmp.ne.s32.totalorder %s70, %s71
    %p82 = scmp.eq.s32.totalorder %s15, 0
    %p83 = por %p81, %p82
    %p84 = scmp.ne.s32.totalorder %s70, %s71
    %p85 = scmp.eq.s32.totalorder %s16, 1
    %p86 = por %p84, %p85
    %p88 = scmp.ne.s32.totalorder %s71, %s87
    %p89 = scmp.eq.s32.totalorder %s16, 0
    %p90 = por %p88, %p89
    %s91 = ssub.s32 %s10, %s17
    %p92 = scmp.eq.s32.totalorder %s91, 0
    %s94 = sadd.s32 %s93, 1
    %s95 = scalar_select %p92, %s93, %s94
    %p98 = pneg %p92
    %p99 = scmp.eq.s32.totalorder %s10, 1
    %p100 = por %p98, %p99
    %p101 = scmp.ne.s32.totalorder %s93, %s96
    %p102 = scmp.eq.s32.totalorder %s10, 0
    %p103 = por %p101, %p102
    %p104 = scmp.ne.s32.totalorder %s93, %s96
    %p105 = scmp.eq.s32.totalorder %s15, 1
    %p106 = por %p104, %p105
    %p107 = scmp.ne.s32.totalorder %s96, %s97
    %p108 = scmp.eq.s32.totalorder %s15, 0
    %p109 = por %p107, %p108
    %p110 = scmp.ne.s32.totalorder %s96, %s97
    %p111 = scmp.eq.s32.totalorder %s16, 1
    %p112 = por %p110, %p111
    %p114 = scmp.ne.s32.totalorder %s97, %s113
    %p115 = scmp.eq.s32.totalorder %s16, 0
    %p116 = por %p114, %p115
    %s118 = sadd.s32 %s117, 1
    %p121 = scmp.eq.s32.totalorder %s10, 1
    %p122 = scmp.ne.s32.totalorder %s117, %s119
    %p123 = scmp.eq.s32.totalorder %s10, 0
    %p124 = por %p122, %p123
    %p125 = scmp.ne.s32.totalorder %s117, %s119
    %p126 = scmp.eq.s32.totalorder %s15, 1
    %p127 = por %p125, %p126
    %p128 = scmp.ne.s32.totalorder %s119, %s120
    %p129 = scmp.eq.s32.totalorder %s15, 0
    %p130 = por %p128, %p129
    %p131 = scmp.ne.s32.totalorder %s119, %s120
    %p132 = scmp.eq.s32.totalorder %s16, 1
    %p133 = por %p131, %p132
    %p135 = scmp.ne.s32.totalorder %s120, %s134
    %p136 = scmp.eq.s32.totalorder %s16, 0
    %p137 = por %p135, %p136
    %p138 = scmp.le.s32.totalorder 1, %s10
    %p139 = scmp.lt.s32.totalorder %s10, 3
    %p140 = pnand %p138, %p139
    %p141 = pneg %p140
    // Predicated region
    $region9: #{caption_generator_forward.2} parent=5 // pred_check
      _
    $region10: #{caption_generator_forward.2} parent=5 // pred_check_branch
      %143 = sbr.rel (%p140) target = $region12
    $region11: #{caption_generator_forward.2} parent=5 // pred_region
      %s144 = ssub.s32 %s10, 1
      // Predicated region
      $region13: #{caption_generator_forward.2} parent=11 // pred_check
        %p145 = pneg %p31
      $region14: #{caption_generator_forward.2} parent=11 // pred_check_branch
        %147 = sbr.rel (%p145) target = $region16
      $region15: #{caption_generator_forward.2} parent=11 // pred_region
        _
      $region16: #{caption_generator_forward.2} parent=11 // pred_fallthru
        _
    $region12: #{caption_generator_forward.2} parent=5 // pred_fallthru
      _
    %p148 = scmp.lt.s32.totalorder %s10, 2
    // Predicated region
    $region17: #{caption_generator_forward.2} parent=5 // pred_check
      %p149 = pneg %p148
    $region18: #{caption_generator_forward.2} parent=5 // pred_check_branch
      %151 = sbr.rel (%p149) target = $region20
    $region19: #{caption_generator_forward.2} parent=5 // pred_region
      // Predicated region
      $region21: #{caption_generator_forward.2} parent=19 // pred_check
        %p152 = pneg %p51
      $region22: #{caption_generator_forward.2} parent=19 // pred_check_branch
        %154 = sbr.rel (%p152) target = $region24
      $region23: #{caption_generator_forward.2} parent=19 // pred_region
        %p155 = scmp.lt.s32.totalorder %s10, 1
        %s156 = scalar_select %p155, %s10, 1
        %s157 = smul.addr %s156, 64
        %s158 = smul.addr %s157, 4
        %s159 = scalar_lea.vmem %s1, %s158
      $region24: #{caption_generator_forward.2} parent=19 // pred_fallthru
        _
      // Predicated region
      $region25: #{caption_generator_forward.2} parent=19 // pred_check
        %p160 = pneg %p77
      $region26: #{caption_generator_forward.2} parent=19 // pred_check_branch
        %162 = sbr.rel (%p160) target = $region28
      $region27: #{caption_generator_forward.2} parent=19 // pred_region
        %p163 = scmp.lt.s32.totalorder %s10, 1
        %s164 = scalar_select %p163, %s10, 1
        %s165 = smul.addr %s164, 64
        %s166 = smul.addr %s165, 4
        %s167 = scalar_lea.vmem %s2, %s166
      $region28: #{caption_generator_forward.2} parent=19 // pred_fallthru
        _
      // Predicated region
      $region29: #{caption_generator_forward.2} parent=19 // pred_check
        %p168 = pneg %p103
      $region30: #{caption_generator_forward.2} parent=19 // pred_check_branch
        %170 = sbr.rel (%p168) target = $region32
      $region31: #{caption_generator_forward.2} parent=19 // pred_region
        %p171 = scmp.lt.s32.totalorder %s10, 1
        %s172 = scalar_select %p171, %s10, 1
        %s173 = smul.addr %s172, 4
        %s174 = scalar_lea.vmem %s3, %s173
      $region32: #{caption_generator_forward.2} parent=19 // pred_fallthru
        _
    $region20: #{caption_generator_forward.2} parent=5 // pred_fallthru
      _
    %p175 = scmp.le.s32.totalorder 1, %s10
    %p176 = scmp.lt.s32.totalorder %s10, 3
    %p177 = pnand %p175, %p176
    %p178 = pneg %p177
    // Predicated region
    $region33: #{caption_generator_forward.2} parent=5 // pred_check
      _
    $region34: #{caption_generator_forward.2} parent=5 // pred_check_branch
      %180 = sbr.rel (%p177) target = $region36
    $region35: #{caption_generator_forward.2} parent=5 // pred_region
      %s181 = ssub.s32 %s10, 1
      %p182 = pneg %p31
      %p183 = pneg %p28
      %p184 = scmp.lt.s32.totalorder %s15, 1
      %s185 = scalar_select %p184, %s15, 1
      %s186 = smul.addr %s185, 64
      %s187 = smul.addr %s186, 4
      %s188 = scalar_lea.vmem %s1, %s187
      %p189 = pneg %p57
      %p190 = pneg %p54
      %p191 = scmp.lt.s32.totalorder %s15, 1
      %s192 = scalar_select %p191, %s15, 1
      %s193 = smul.addr %s192, 64
      %s194 = smul.addr %s193, 4
      %s195 = scalar_lea.vmem %s2, %s194
      %p196 = pneg %p83
      %p197 = pneg %p80
      %p198 = scmp.lt.s32.totalorder %s15, 1
      %s199 = scalar_select %p198, %s15, 1
      %s200 = smul.addr %s199, 4
      %s201 = scalar_lea.vmem %s3, %s200
      %p202 = pneg %p109
      %p203 = pneg %p106
      %p204 = pneg %p130
      %p205 = pneg %p127
      %p206 = scmp.lt.s32.totalorder %s15, 1
      %s207 = scalar_select %p206, %s15, 1
      %s208 = smul.addr %s207, 64
      %s209 = smul.addr %s208, 4
      %s210 = scalar_lea.vmem %s1, %s209
      %p211 = scmp.lt.s32.totalorder %s15, 1
      %s212 = scalar_select %p211, %s15, 1
      %s213 = smul.addr %s212, 64
      %s214 = smul.addr %s213, 4
      %s215 = scalar_lea.vmem %s2, %s214
      %p216 = scmp.lt.s32.totalorder %s15, 1
      %s217 = scalar_select %p216, %s15, 1
      %s218 = smul.addr %s217, 4
      %s219 = scalar_lea.vmem %s3, %s218
      %v221 = vld [vmem:[%s219] sm:$0xf]
      %p222 = scmp.eq.s32.totalorder %s15, 0
      // Predicated region
      $region37: #{caption_generator_forward.2} parent=35 // pred_check
        %p223 = pneg %p222
      $region38: #{caption_generator_forward.2} parent=35 // pred_check_branch
        %225 = sbr.rel (%p223) target = $region40
      $region39: #{caption_generator_forward.2} parent=35 // pred_region
        %v226 = vld [vmem:[%s0] sm:$0xf]
        %v227 = vld [vmem:[%s0 + $0x4] sm:$0xf]
        %v228 = vld [vmem:[%s0 + $0x8] sm:$0xf]
        %v229 = vld [vmem:[%s0 + $0xc] sm:$0xf]
        %v230 = vld [vmem:[%s0 + $0x10] sm:$0xf]
        %v231 = vld [vmem:[%s0 + $0x14] sm:$0xf]
        %v232 = vld [vmem:[%s0 + $0x18] sm:$0xf]
        %v233 = vld [vmem:[%s0 + $0x1c] sm:$0xf]
        %v234 = vld [vmem:[%s0 + $0x20] sm:$0xf]
        %v235 = vld [vmem:[%s210] sm:$0xff]
        %v236 = vld [vmem:[%s210 + $0x8] sm:$0xff]
        %v237 = vld [vmem:[%s210 + $0x10] sm:$0xff]
        %v238 = vld [vmem:[%s210 + $0x18] sm:$0xff]
        %v239 = vld [vmem:[%s210 + $0x20] sm:$0xff]
        %v240 = vld [vmem:[%s210 + $0x28] sm:$0xff]
        %v241 = vld [vmem:[%s210 + $0x30] sm:$0xff]
        %v242 = vld [vmem:[%s210 + $0x38] sm:$0xff]
        %v243 = vld [vmem:[%s210 + $0x40] sm:$0xff]
        %v244 = vld [vmem:[%s210 + $0x48] sm:$0xff]
        %v245 = vld [vmem:[%s210 + $0x50] sm:$0xff]
        %v246 = vld [vmem:[%s210 + $0x58] sm:$0xff]
        %v247 = vld [vmem:[%s210 + $0x60] sm:$0xff]
        %v248 = vld [vmem:[%s210 + $0x68] sm:$0xff]
        %v249 = vld [vmem:[%s210 + $0x70] sm:$0xff]
        %v250 = vld [vmem:[%s210 + $0x78] sm:$0xff]
        %v251 = vld [vmem:[%s210 + $0x80] sm:$0xff]
        %v252 = vld [vmem:[%s210 + $0x88] sm:$0xff]
        %v253 = vld [vmem:[%s210 + $0x90] sm:$0xff]
        %v254 = vld [vmem:[%s210 + $0x98] sm:$0xff]
        %v255 = vld [vmem:[%s210 + $0xa0] sm:$0xff]
        %v256 = vld [vmem:[%s210 + $0xa8] sm:$0xff]
        %v257 = vld [vmem:[%s210 + $0xb0] sm:$0xff]
        %v258 = vld [vmem:[%s210 + $0xb8] sm:$0xff]
        %v259 = vld [vmem:[%s210 + $0xc0] sm:$0xff]
        %v260 = vld [vmem:[%s210 + $0xc8] sm:$0xff]
        %v261 = vld [vmem:[%s210 + $0xd0] sm:$0xff]
        %v262 = vld [vmem:[%s210 + $0xd8] sm:$0xff]
        %v263 = vld [vmem:[%s210 + $0xe0] sm:$0xff]
        %v264 = vld [vmem:[%s210 + $0xe8] sm:$0xff]
        %v265 = vld [vmem:[%s210 + $0xf0] sm:$0xff]
        %v266 = vld [vmem:[%s210 + $0xf8] sm:$0xff]
        %v268 = vlaneseq
        %v269 = vshrl.u32 %v268, 7
        %v270 = vsub.s32 0, %v269
        %v271 = vrot.slane %v221, %v270
        %v272 = vlaneseq
        %v273 = vshrl.u32 %v272, 7
        %v274 = vsub.s32 1, %v273
        %v275 = vrot.slane %v221, %v274
        %v276 = vlaneseq
        %v277 = vshrl.u32 %v276, 7
        %v278 = vsub.s32 2, %v277
        %v279 = vrot.slane %v221, %v278
        %v280 = vlaneseq
        %v281 = vshrl.u32 %v280, 7
        %v282 = vsub.s32 3, %v281
        %v283 = vrot.slane %v221, %v282
        %v297 = vunpack.c.l.b16 %v226
        %v298 = vunpack.c.l.b16 %v227
        %v299 = vunpack.c.l.b16 %v228
        %v300 = vunpack.c.l.b16 %v229
        %v301 = vunpack.c.l.b16 %v230
        %v302 = vunpack.c.l.b16 %v231
        %v303 = vunpack.c.l.b16 %v232
        %v304 = vunpack.c.l.b16 %v233
        %v305 = vunpack.c.l.b16 %v234
        %v306 = vpack.c.b16 %v298, %v297
        %v307 = vpack.c.b16 %v300, %v299
        %v308 = vpack.c.b16 %v302, %v301
        %v309 = vpack.c.b16 %v304, %v303
        %v310 = vpack.c.b16 %v305, %v305
        %v348 = vunpack.c.l.b16 %v235
        %v349 = vunpack.c.h.b16 %v235
        %v350 = vunpack.c.l.b16 %v236
        %v351 = vunpack.c.h.b16 %v236
        %v352 = vunpack.c.l.b16 %v237
        %v353 = vunpack.c.h.b16 %v237
        %v354 = vunpack.c.l.b16 %v238
        %v355 = vunpack.c.h.b16 %v238
        %v356 = vunpack.c.l.b16 %v239
        %v357 = vunpack.c.h.b16 %v239
        %v358 = vunpack.c.l.b16 %v240
        %v359 = vunpack.c.h.b16 %v240
        %v360 = vunpack.c.l.b16 %v241
        %v361 = vunpack.c.h.b16 %v241
        %v362 = vunpack.c.l.b16 %v242
        %v363 = vunpack.c.h.b16 %v242
        %v364 = vunpack.c.l.b16 %v243
        %v365 = vunpack.c.h.b16 %v243
        %v366 = vunpack.c.l.b16 %v244
        %v367 = vunpack.c.h.b16 %v244
        %v368 = vunpack.c.l.b16 %v245
        %v369 = vunpack.c.h.b16 %v245
        %v370 = vunpack.c.l.b16 %v246
        %v371 = vunpack.c.h.b16 %v246
        %v372 = vunpack.c.l.b16 %v247
        %v373 = vunpack.c.h.b16 %v247
        %v374 = vunpack.c.l.b16 %v248
        %v375 = vunpack.c.h.b16 %v248
        %v376 = vunpack.c.l.b16 %v249
        %v377 = vunpack.c.h.b16 %v249
        %v378 = vunpack.c.l.b16 %v250
        %v379 = vunpack.c.h.b16 %v250
        %v380 = vunpack.c.l.b16 %v251
        %v381 = vunpack.c.h.b16 %v251
        %v382 = vunpack.c.l.b16 %v252
        %v383 = vunpack.c.h.b16 %v252
        %v384 = vunpack.c.l.b16 %v253
        %v385 = vunpack.c.h.b16 %v253
        %v386 = vunpack.c.l.b16 %v254
        %v387 = vunpack.c.h.b16 %v254
        %v388 = vunpack.c.l.b16 %v255
        %v389 = vunpack.c.h.b16 %v255
        %v390 = vunpack.c.l.b16 %v256
        %v391 = vunpack.c.h.b16 %v256
        %v392 = vunpack.c.l.b16 %v257
        %v393 = vunpack.c.h.b16 %v257
        %v394 = vunpack.c.l.b16 %v258
        %v395 = vunpack.c.h.b16 %v258
        %v396 = vunpack.c.l.b16 %v259
        %v397 = vunpack.c.h.b16 %v259
        %v398 = vunpack.c.l.b16 %v260
        %v399 = vunpack.c.h.b16 %v260
        %v400 = vunpack.c.l.b16 %v261
        %v401 = vunpack.c.h.b16 %v261
        %v402 = vunpack.c.l.b16 %v262
        %v403 = vunpack.c.h.b16 %v262
        %v404 = vunpack.c.l.b16 %v263
        %v405 = vunpack.c.h.b16 %v263
        %v406 = vunpack.c.l.b16 %v264
        %v407 = vunpack.c.h.b16 %v264
        %v408 = vunpack.c.l.b16 %v265
        %v409 = vunpack.c.h.b16 %v265
        %v410 = vunpack.c.l.b16 %v266
        %v411 = vunpack.c.h.b16 %v266
        %v412 = vpack.c.b16 %v352, %v348
        %v413 = vpack.c.b16 %v353, %v349
        %v414 = vpack.c.b16 %v354, %v350
        %v415 = vpack.c.b16 %v355, %v351
        %v416 = vpack.c.b16 %v360, %v356
        %v417 = vpack.c.b16 %v361, %v357
        %v418 = vpack.c.b16 %v362, %v358
        %v419 = vpack.c.b16 %v363, %v359
        %v420 = vpack.c.b16 %v368, %v364
        %v421 = vpack.c.b16 %v369, %v365
        %v422 = vpack.c.b16 %v370, %v366
        %v423 = vpack.c.b16 %v371, %v367
        %v424 = vpack.c.b16 %v376, %v372
        %v425 = vpack.c.b16 %v377, %v373
        %v426 = vpack.c.b16 %v378, %v374
        %v427 = vpack.c.b16 %v379, %v375
        %v428 = vpack.c.b16 %v384, %v380
        %v429 = vpack.c.b16 %v385, %v381
        %v430 = vpack.c.b16 %v386, %v382
        %v431 = vpack.c.b16 %v387, %v383
        %v432 = vpack.c.b16 %v392, %v388
        %v433 = vpack.c.b16 %v393, %v389
        %v434 = vpack.c.b16 %v394, %v390
        %v435 = vpack.c.b16 %v395, %v391
        %v436 = vpack.c.b16 %v400, %v396
        %v437 = vpack.c.b16 %v401, %v397
        %v438 = vpack.c.b16 %v402, %v398
        %v439 = vpack.c.b16 %v403, %v399
        %v440 = vpack.c.b16 %v408, %v404
        %v441 = vpack.c.b16 %v409, %v405
        %v442 = vpack.c.b16 %v410, %v406
        %v443 = vpack.c.b16 %v411, %v407
        %476 = vmatprep.subr.bf16.mxu0 %v413
        %477 = vmatpush1.bf16.msra.mxu0 %v412
        %478 = vmatprep.subr.bf16.mxu0 %v417
        %479 = vmatpush1.bf16.msra.mxu0 %v416
        %480 = vmatprep.subr.bf16.mxu0 %v421
        %481 = vmatpush1.bf16.msra.mxu0 %v420
        %482 = vmatprep.subr.bf16.mxu0 %v425
        %483 = vmatpush1.bf16.msra.mxu0 %v424
        %484 = vmatprep.subr.bf16.mxu0 %v429
        %485 = vmatpush1.bf16.msra.mxu0 %v428
        %486 = vmatprep.subr.bf16.mxu0 %v433
        %487 = vmatpush1.bf16.msra.mxu0 %v432
        %488 = vmatprep.subr.bf16.mxu0 %v437
        %489 = vmatpush1.bf16.msra.mxu0 %v436
        %490 = vmatprep.subr.bf16.mxu0 %v441
        %491 = vmatpush1.bf16.msra.mxu0 %v440
        %492 = vmatprep.subr.bf16.mxu0 0
        %493 = vmatpush1.bf16.msra.mxu0 0
        %494 = vmatprep.subr.bf16.mxu0 0
        %495 = vmatpush1.bf16.msra.mxu0 0
        %496 = vmatprep.subr.bf16.mxu0 0
        %497 = vmatpush1.bf16.msra.mxu0 0
        %498 = vmatprep.subr.bf16.mxu0 0
        %499 = vmatpush1.bf16.msra.mxu0 0
        %500 = vmatprep.subr.bf16.mxu0 0
        %501 = vmatpush1.bf16.msra.mxu0 0
        %502 = vmatprep.subr.bf16.mxu0 0
        %503 = vmatpush1.bf16.msra.mxu0 0
        %504 = vmatprep.subr.bf16.mxu0 0
        %505 = vmatpush1.bf16.msra.mxu0 0
        %506 = vmatprep.subr.bf16.mxu0 0
        %507 = vmatpush1.bf16.msra.mxu0 0
        %508 = vmatprep.mubr.bf16.mxu0 0
        %509 = vmatmul.mubr.bf16.gmra.mrb[0].mxu0 %v306
        %v510 = vpop.f32.mrb[0].mxu0
        %v511 = vadd.f32 %v271, %v510
        %v512 = vpop.f32.mrb[0].mxu0
        %v513 = vadd.f32 %v275, %v512
        %v514 = vpop.f32.mrb[0].mxu0
        %v515 = vadd.f32 %v271, %v514
        %v516 = vpop.f32.mrb[0].mxu0
        %v517 = vadd.f32 %v275, %v516
        %518 = vmatprep.mubr.bf16.mxu0 0
        %519 = vmatmul.mubr.bf16.gmra.mrb[0].mxu0 %v307
        %v520 = vpop.f32.mrb[0].mxu0
        %v521 = vadd.f32 %v271, %v520
        %v522 = vpop.f32.mrb[0].mxu0
        %v523 = vadd.f32 %v275, %v522
        %v524 = vpop.f32.mrb[0].mxu0
        %v525 = vadd.f32 %v271, %v524
        %v526 = vpop.f32.mrb[0].mxu0
        %v527 = vadd.f32 %v275, %v526
        %528 = vmatprep.mubr.bf16.mxu0 0
        %529 = vmatmul.mubr.bf16.gmra.mrb[0].mxu0 %v308
        %v530 = vpop.f32.mrb[0].mxu0
        %v531 = vadd.f32 %v271, %v530
        %v532 = vpop.f32.mrb[0].mxu0
        %v533 = vadd.f32 %v275, %v532
        %v534 = vpop.f32.mrb[0].mxu0
        %v535 = vadd.f32 %v271, %v534
        %v536 = vpop.f32.mrb[0].mxu0
        %v537 = vadd.f32 %v275, %v536
        %538 = vmatprep.mubr.bf16.mxu0 0
        %539 = vmatmul.mubr.bf16.gmra.mrb[0].mxu0 %v309
        %v540 = vpop.f32.mrb[0].mxu0
        %v541 = vadd.f32 %v271, %v540
        %v542 = vpop.f32.mrb[0].mxu0
        %v543 = vadd.f32 %v275, %v542
        %v544 = vpop.f32.mrb[0].mxu0
        %v545 = vadd.f32 %v271, %v544
        %v546 = vpop.f32.mrb[0].mxu0
        %v547 = vadd.f32 %v275, %v546
        %548 = vmatprep.mubr.bf16.mxu0 0
        %549 = vmatmul.mubr.bf16.gmra.mrb[0].mxu0 %v310
        %v550 = vpop.f32.mrb[0].mxu0
        %v551 = vadd.f32 %v271, %v550
        %v552 = vpop.f32.mrb[0].mxu0
        %v553 = vadd.f32 %v275, %v552
        %v554 = vpop.f32.mrb[0].mxu0
        %v555 = vpop.f32.mrb[0].mxu0
        %556 = vdwg.mxu0
        %557 = vmatprep.subr.bf16.mxu0 %v415
        %558 = vmatpush1.bf16.msra.mxu0 %v414
        %559 = vmatprep.subr.bf16.mxu0 %v419
        %560 = vmatpush1.bf16.msra.mxu0 %v418
        %561 = vmatprep.subr.bf16.mxu0 %v423
        %562 = vmatpush1.bf16.msra.mxu0 %v422
        %563 = vmatprep.subr.bf16.mxu0 %v427
        %564 = vmatpush1.bf16.msra.mxu0 %v426
        %565 = vmatprep.subr.bf16.mxu0 %v431
        %566 = vmatpush1.bf16.msra.mxu0 %v430
        %567 = vmatprep.subr.bf16.mxu0 %v435
        %568 = vmatpush1.bf16.msra.mxu0 %v434
        %569 = vmatprep.subr.bf16.mxu0 %v439
        %570 = vmatpush1.bf16.msra.mxu0 %v438
        %571 = vmatprep.subr.bf16.mxu0 %v443
        %572 = vmatpush1.bf16.msra.mxu0 %v442
        %573 = vmatprep.subr.bf16.mxu0 0
        %574 = vmatpush1.bf16.msra.mxu0 0
        %575 = vmatprep.subr.bf16.mxu0 0
        %576 = vmatpush1.bf16.msra.mxu0 0
        %577 = vmatprep.subr.bf16.mxu0 0
        %578 = vmatpush1.bf16.msra.mxu0 0
        %579 = vmatprep.subr.bf16.mxu0 0
        %580 = vmatpush1.bf16.msra.mxu0 0
        %581 = vmatprep.subr.bf16.mxu0 0
        %582 = vmatpush1.bf16.msra.mxu0 0
        %583 = vmatprep.subr.bf16.mxu0 0
        %584 = vmatpush1.bf16.msra.mxu0 0
        %585 = vmatprep.subr.bf16.mxu0 0
        %586 = vmatpush1.bf16.msra.mxu0 0
        %587 = vmatprep.subr.bf16.mxu0 0
        %588 = vmatpush1.bf16.msra.mxu0 0
        %589 = vmatprep.mubr.bf16.mxu0 0
        %590 = vmatmul.mubr.bf16.gmra.mrb[0].mxu0 %v306
        %v591 = vpop.f32.mrb[0].mxu0
        %v592 = vadd.f32 %v279, %v591
        %v593 = vpop.f32.mrb[0].mxu0
        %v594 = vadd.f32 %v283, %v593
        %v595 = vpop.f32.mrb[0].mxu0
        %v596 = vadd.f32 %v279, %v595
        %v597 = vpop.f32.mrb[0].mxu0
        %v598 = vadd.f32 %v283, %v597
        %599 = vmatprep.mubr.bf16.mxu0 0
        %600 = vmatmul.mubr.bf16.gmra.mrb[0].mxu0 %v307
        %v601 = vpop.f32.mrb[0].mxu0
        %v602 = vadd.f32 %v279, %v601
        %v603 = vpop.f32.mrb[0].mxu0
        %v604 = vadd.f32 %v283, %v603
        %v605 = vpop.f32.mrb[0].mxu0
        %v606 = vadd.f32 %v279, %v605
        %v607 = vpop.f32.mrb[0].mxu0
        %v608 = vadd.f32 %v283, %v607
        %609 = vmatprep.mubr.bf16.mxu0 0
        %610 = vmatmul.mubr.bf16.gmra.mrb[0].mxu0 %v308
        %v611 = vpop.f32.mrb[0].mxu0
        %v612 = vadd.f32 %v279, %v611
        %v613 = vpop.f32.mrb[0].mxu0
        %v614 = vadd.f32 %v283, %v613
        %v615 = vpop.f32.mrb[0].mxu0
        %v616 = vadd.f32 %v279, %v615
        %v617 = vpop.f32.mrb[0].mxu0
        %v618 = vadd.f32 %v283, %v617
        %619 = vmatprep.mubr.bf16.mxu0 0
        %620 = vmatmul.mubr.bf16.gmra.mrb[0].mxu0 %v309
        %v621 = vpop.f32.mrb[0].mxu0
        %v622 = vadd.f32 %v279, %v621
        %v623 = vpop.f32.mrb[0].mxu0
        %v624 = vadd.f32 %v283, %v623
        %v625 = vpop.f32.mrb[0].mxu0
        %v626 = vadd.f32 %v279, %v625
        %v627 = vpop.f32.mrb[0].mxu0
        %v628 = vadd.f32 %v283, %v627
        %629 = vmatprep.mubr.bf16.mxu0 0
        %630 = vmatmul.mubr.bf16.gmra.mrb[0].mxu0 %v310
        %v631 = vpop.f32.mrb[0].mxu0
        %v632 = vadd.f32 %v279, %v631
        %v633 = vpop.f32.mrb[0].mxu0
        %v634 = vadd.f32 %v283, %v633
        %v635 = vpop.f32.mrb[0].mxu0
        %v636 = vpop.f32.mrb[0].mxu0
        %637 = vdwg.mxu0
        %v638 = vpack.c.bf16 %v511, %v511
        %v639 = vpack.c.bf16 %v513, %v513
        %v640 = vpack.c.bf16 %v592, %v592
        %v641 = vpack.c.bf16 %v594, %v594
        %v642 = vpack.c.bf16 %v515, %v515
        %v643 = vpack.c.bf16 %v517, %v517
        %v644 = vpack.c.bf16 %v596, %v596
        %v645 = vpack.c.bf16 %v598, %v598
        %v646 = vpack.c.bf16 %v521, %v521
        %v647 = vpack.c.bf16 %v523, %v523
        %v648 = vpack.c.bf16 %v602, %v602
        %v649 = vpack.c.bf16 %v604, %v604
        %v650 = vpack.c.bf16 %v525, %v525
        %v651 = vpack.c.bf16 %v527, %v527
        %v652 = vpack.c.bf16 %v606, %v606
        %v653 = vpack.c.bf16 %v608, %v608
        %v654 = vpack.c.bf16 %v531, %v531
        %v655 = vpack.c.bf16 %v533, %v533
        %v656 = vpack.c.bf16 %v612, %v612
        %v657 = vpack.c.bf16 %v614, %v614
        %v658 = vpack.c.bf16 %v535, %v535
        %v659 = vpack.c.bf16 %v537, %v537
        %v660 = vpack.c.bf16 %v616, %v616
        %v661 = vpack.c.bf16 %v618, %v618
        %v662 = vpack.c.bf16 %v541, %v541
        %v663 = vpack.c.bf16 %v543, %v543
        %v664 = vpack.c.bf16 %v622, %v622
        %v665 = vpack.c.bf16 %v624, %v624
        %v666 = vpack.c.bf16 %v545, %v545
        %v667 = vpack.c.bf16 %v547, %v547
        %v668 = vpack.c.bf16 %v626, %v626
        %v669 = vpack.c.bf16 %v628, %v628
        %v670 = vpack.c.bf16 %v551, %v551
        %v671 = vpack.c.bf16 %v553, %v553
        %v672 = vpack.c.bf16 %v632, %v632
        %v673 = vpack.c.bf16 %v634, %v634
        %v710 = vunpack.c.l.b16 %v638
        %v711 = vunpack.c.l.b16 %v639
        %v712 = vunpack.c.l.b16 %v640
        %v713 = vunpack.c.l.b16 %v641
        %v714 = vunpack.c.l.b16 %v642
        %v715 = vunpack.c.l.b16 %v643
        %v716 = vunpack.c.l.b16 %v644
        %v717 = vunpack.c.l.b16 %v645
        %v718 = vunpack.c.l.b16 %v646
        %v719 = vunpack.c.l.b16 %v647
        %v720 = vunpack.c.l.b16 %v648
        %v721 = vunpack.c.l.b16 %v649
        %v722 = vunpack.c.l.b16 %v650
        %v723 = vunpack.c.l.b16 %v651
        %v724 = vunpack.c.l.b16 %v652
        %v725 = vunpack.c.l.b16 %v653
        %v726 = vunpack.c.l.b16 %v654
        %v727 = vunpack.c.l.b16 %v655
        %v728 = vunpack.c.l.b16 %v656
        %v729 = vunpack.c.l.b16 %v657
        %v730 = vunpack.c.l.b16 %v658
        %v731 = vunpack.c.l.b16 %v659
        %v732 = vunpack.c.l.b16 %v660
        %v733 = vunpack.c.l.b16 %v661
        %v734 = vunpack.c.l.b16 %v662
        %v735 = vunpack.c.l.b16 %v663
        %v736 = vunpack.c.l.b16 %v664
        %v737 = vunpack.c.l.b16 %v665
        %v738 = vunpack.c.l.b16 %v666
        %v739 = vunpack.c.l.b16 %v667
        %v740 = vunpack.c.l.b16 %v668
        %v741 = vunpack.c.l.b16 %v669
        %v742 = vunpack.c.l.b16 %v670
        %v743 = vunpack.c.l.b16 %v671
        %v744 = vunpack.c.l.b16 %v672
        %v745 = vunpack.c.l.b16 %v673
        %v746 = vpack.c.b16 %v711, %v710
        %v747 = vpack.c.b16 %v713, %v712
        %v748 = vpack.c.b16 %v715, %v714
        %v749 = vpack.c.b16 %v717, %v716
        %v750 = vpack.c.b16 %v719, %v718
        %v751 = vpack.c.b16 %v721, %v720
        %v752 = vpack.c.b16 %v723, %v722
        %v753 = vpack.c.b16 %v725, %v724
        %v754 = vpack.c.b16 %v727, %v726
        %v755 = vpack.c.b16 %v729, %v728
        %v756 = vpack.c.b16 %v731, %v730
        %v757 = vpack.c.b16 %v733, %v732
        %v758 = vpack.c.b16 %v735, %v734
        %v759 = vpack.c.b16 %v737, %v736
        %v760 = vpack.c.b16 %v739, %v738
        %v761 = vpack.c.b16 %v741, %v740
        %v762 = vpack.c.b16 %v743, %v742
        %v763 = vpack.c.b16 %v745, %v744
        %782 = vst [vmem:[#allocation2] sm:$0xff] %v746
        %783 = vst [vmem:[#allocation2 + $0x8] sm:$0xff] %v747
        %784 = vst [vmem:[#allocation2 + $0x10] sm:$0xff] %v748
        %785 = vst [vmem:[#allocation2 + $0x18] sm:$0xff] %v749
        %786 = vst [vmem:[#allocation2 + $0x20] sm:$0xff] %v750
        %787 = vst [vmem:[#allocation2 + $0x28] sm:$0xff] %v751
        %788 = vst [vmem:[#allocation2 + $0x30] sm:$0xff] %v752
        %789 = vst [vmem:[#allocation2 + $0x38] sm:$0xff] %v753
        %790 = vst [vmem:[#allocation2 + $0x40] sm:$0xff] %v754
        %791 = vst [vmem:[#allocation2 + $0x48] sm:$0xff] %v755
        %792 = vst [vmem:[#allocation2 + $0x50] sm:$0xff] %v756
        %793 = vst [vmem:[#allocation2 + $0x58] sm:$0xff] %v757
        %794 = vst [vmem:[#allocation2 + $0x60] sm:$0xff] %v758
        %795 = vst [vmem:[#allocation2 + $0x68] sm:$0xff] %v759
        %796 = vst [vmem:[#allocation2 + $0x70] sm:$0xff] %v760
        %797 = vst [vmem:[#allocation2 + $0x78] sm:$0xff] %v761
        %798 = vst [vmem:[#allocation2 + $0x80] sm:$0xff] %v762
        %799 = vst [vmem:[#allocation2 + $0x88] sm:$0xff] %v763
      $region40: #{caption_generator_forward.2} parent=35 // pred_fallthru
        _
      %p800 = scmp.gt.s32.totalorder %s15, 0
      // Predicated region
      $region41: #{caption_generator_forward.2} parent=35 // pred_check
        %p801 = pneg %p800
      $region42: #{caption_generator_forward.2} parent=35 // pred_check_branch
        %803 = sbr.rel (%p801) target = $region44
      $region43: #{caption_generator_forward.2} parent=35 // pred_region
        %v804 = vld [vmem:[%s4] sm:$0xf]
        %v805 = vld [vmem:[%s4 + $0x4] sm:$0xf]
        %v806 = vld [vmem:[%s4 + $0x8] sm:$0xf]
        %v807 = vld [vmem:[%s4 + $0xc] sm:$0xf]
        %v808 = vld [vmem:[%s4 + $0x10] sm:$0xf]
        %v809 = vld [vmem:[%s4 + $0x14] sm:$0xf]
        %v810 = vld [vmem:[%s4 + $0x18] sm:$0xf]
        %v811 = vld [vmem:[%s4 + $0x1c] sm:$0xf]
        %v812 = vld [vmem:[%s4 + $0x20] sm:$0xf]
        %v813 = vld [vmem:[%s210] sm:$0xff]
        %v814 = vld [vmem:[%s210 + $0x8] sm:$0xff]
        %v815 = vld [vmem:[%s210 + $0x10] sm:$0xff]
        %v816 = vld [vmem:[%s210 + $0x18] sm:$0xff]
        %v817 = vld [vmem:[%s210 + $0x20] sm:$0xff]
        %v818 = vld [vmem:[%s210 + $0x28] sm:$0xff]
        %v819 = vld [vmem:[%s210 + $0x30] sm:$0xff]
        %v820 = vld [vmem:[%s210 + $0x38] sm:$0xff]
        %v821 = vld [vmem:[%s210 + $0x40] sm:$0xff]
        %v822 = vld [vmem:[%s210 + $0x48] sm:$0xff]
        %v823 = vld [vmem:[%s210 + $0x50] sm:$0xff]
        %v824 = vld [vmem:[%s210 + $0x58] sm:$0xff]
        %v825 = vld [vmem:[%s210 + $0x60] sm:$0xff]
        %v826 = vld [vmem:[%s210 + $0x68] sm:$0xff]
        %v827 = vld [vmem:[%s210 + $0x70] sm:$0xff]
        %v828 = vld [vmem:[%s210 + $0x78] sm:$0xff]
        %v829 = vld [vmem:[%s210 + $0x80] sm:$0xff]
        %v830 = vld [vmem:[%s210 + $0x88] sm:$0xff]
        %v831 = vld [vmem:[%s210 + $0x90] sm:$0xff]
        %v832 = vld [vmem:[%s210 + $0x98] sm:$0xff]
        %v833 = vld [vmem:[%s210 + $0xa0] sm:$0xff]
        %v834 = vld [vmem:[%s210 + $0xa8] sm:$0xff]
        %v835 = vld [vmem:[%s210 + $0xb0] sm:$0xff]
        %v836 = vld [vmem:[%s210 + $0xb8] sm:$0xff]
        %v837 = vld [vmem:[%s210 + $0xc0] sm:$0xff]
        %v838 = vld [vmem:[%s210 + $0xc8] sm:$0xff]
        %v839 = vld [vmem:[%s210 + $0xd0] sm:$0xff]
        %v840 = vld [vmem:[%s210 + $0xd8] sm:$0xff]
        %v841 = vld [vmem:[%s210 + $0xe0] sm:$0xff]
        %v842 = vld [vmem:[%s210 + $0xe8] sm:$0xff]
        %v843 = vld [vmem:[%s210 + $0xf0] sm:$0xff]
        %v844 = vld [vmem:[%s210 + $0xf8] sm:$0xff]
        %v846 = vlaneseq
        %v847 = vshrl.u32 %v846, 7
        %v848 = vsub.s32 0, %v847
        %v849 = vrot.slane %v221, %v848
        %v850 = vlaneseq
        %v851 = vshrl.u32 %v850, 7
        %v852 = vsub.s32 1, %v851
        %v853 = vrot.slane %v221, %v852
        %v854 = vlaneseq
        %v855 = vshrl.u32 %v854, 7
        %v856 = vsub.s32 2, %v855
        %v857 = vrot.slane %v221, %v856
        %v858 = vlaneseq
        %v859 = vshrl.u32 %v858, 7
        %v860 = vsub.s32 3, %v859
        %v861 = vrot.slane %v221, %v860
        %v875 = vunpack.c.l.b16 %v804
        %v876 = vunpack.c.l.b16 %v805
        %v877 = vunpack.c.l.b16 %v806
        %v878 = vunpack.c.l.b16 %v807
        %v879 = vunpack.c.l.b16 %v808
        %v880 = vunpack.c.l.b16 %v809
        %v881 = vunpack.c.l.b16 %v810
        %v882 = vunpack.c.l.b16 %v811
        %v883 = vunpack.c.l.b16 %v812
        %v884 = vpack.c.b16 %v876, %v875
        %v885 = vpack.c.b16 %v878, %v877
        %v886 = vpack.c.b16 %v880, %v879
        %v887 = vpack.c.b16 %v882, %v881
        %v888 = vpack.c.b16 %v883, %v883
        %v926 = vunpack.c.l.b16 %v813
        %v927 = vunpack.c.h.b16 %v813
        %v928 = vunpack.c.l.b16 %v814
        %v929 = vunpack.c.h.b16 %v814
        %v930 = vunpack.c.l.b16 %v815
        %v931 = vunpack.c.h.b16 %v815
        %v932 = vunpack.c.l.b16 %v816
        %v933 = vunpack.c.h.b16 %v816
        %v934 = vunpack.c.l.b16 %v817
        %v935 = vunpack.c.h.b16 %v817
        %v936 = vunpack.c.l.b16 %v818
        %v937 = vunpack.c.h.b16 %v818
        %v938 = vunpack.c.l.b16 %v819
        %v939 = vunpack.c.h.b16 %v819
        %v940 = vunpack.c.l.b16 %v820
        %v941 = vunpack.c.h.b16 %v820
        %v942 = vunpack.c.l.b16 %v821
        %v943 = vunpack.c.h.b16 %v821
        %v944 = vunpack.c.l.b16 %v822
        %v945 = vunpack.c.h.b16 %v822
        %v946 = vunpack.c.l.b16 %v823
        %v947 = vunpack.c.h.b16 %v823
        %v948 = vunpack.c.l.b16 %v824
        %v949 = vunpack.c.h.b16 %v824
        %v950 = vunpack.c.l.b16 %v825
        %v951 = vunpack.c.h.b16 %v825
        %v952 = vunpack.c.l.b16 %v826
        %v953 = vunpack.c.h.b16 %v826
        %v954 = vunpack.c.l.b16 %v827
        %v955 = vunpack.c.h.b16 %v827
        %v956 = vunpack.c.l.b16 %v828
        %v957 = vunpack.c.h.b16 %v828
        %v958 = vunpack.c.l.b16 %v829
        %v959 = vunpack.c.h.b16 %v829
        %v960 = vunpack.c.l.b16 %v830
        %v961 = vunpack.c.h.b16 %v830
        %v962 = vunpack.c.l.b16 %v831
        %v963 = vunpack.c.h.b16 %v831
        %v964 = vunpack.c.l.b16 %v832
        %v965 = vunpack.c.h.b16 %v832
        %v966 = vunpack.c.l.b16 %v833
        %v967 = vunpack.c.h.b16 %v833
        %v968 = vunpack.c.l.b16 %v834
        %v969 = vunpack.c.h.b16 %v834
        %v970 = vunpack.c.l.b16 %v835
        %v971 = vunpack.c.h.b16 %v835
        %v972 = vunpack.c.l.b16 %v836
        %v973 = vunpack.c.h.b16 %v836
        %v974 = vunpack.c.l.b16 %v837
        %v975 = vunpack.c.h.b16 %v837
        %v976 = vunpack.c.l.b16 %v838
        %v977 = vunpack.c.h.b16 %v838
        %v978 = vunpack.c.l.b16 %v839
        %v979 = vunpack.c.h.b16 %v839
        %v980 = vunpack.c.l.b16 %v840
        %v981 = vunpack.c.h.b16 %v840
        %v982 = vunpack.c.l.b16 %v841
        %v983 = vunpack.c.h.b16 %v841
        %v984 = vunpack.c.l.b16 %v842
        %v985 = vunpack.c.h.b16 %v842
        %v986 = vunpack.c.l.b16 %v843
        %v987 = vunpack.c.h.b16 %v843
        %v988 = vunpack.c.l.b16 %v844
        %v989 = vunpack.c.h.b16 %v844
        %v990 = vpack.c.b16 %v930, %v926
        %v991 = vpack.c.b16 %v931, %v927
        %v992 = vpack.c.b16 %v932, %v928
        %v993 = vpack.c.b16 %v933, %v929
        %v994 = vpack.c.b16 %v938, %v934
        %v995 = vpack.c.b16 %v939, %v935
        %v996 = vpack.c.b16 %v940, %v936
        %v997 = vpack.c.b16 %v941, %v937
        %v998 = vpack.c.b16 %v946, %v942
        %v999 = vpack.c.b16 %v947, %v943
        %v1000 = vpack.c.b16 %v948, %v944
        %v1001 = vpack.c.b16 %v949, %v945
        %v1002 = vpack.c.b16 %v954, %v950
        %v1003 = vpack.c.b16 %v955, %v951
        %v1004 = vpack.c.b16 %v956, %v952
        %v1005 = vpack.c.b16 %v957, %v953
        %v1006 = vpack.c.b16 %v962, %v958
        %v1007 = vpack.c.b16 %v963, %v959
        %v1008 = vpack.c.b16 %v964, %v960
        %v1009 = vpack.c.b16 %v965, %v961
        %v1010 = vpack.c.b16 %v970, %v966
        %v1011 = vpack.c.b16 %v971, %v967
        %v1012 = vpack.c.b16 %v972, %v968
        %v1013 = vpack.c.b16 %v973, %v969
        %v1014 = vpack.c.b16 %v978, %v974
        %v1015 = vpack.c.b16 %v979, %v975
        %v1016 = vpack.c.b16 %v980, %v976
        %v1017 = vpack.c.b16 %v981, %v977
        %v1018 = vpack.c.b16 %v986, %v982
        %v1019 = vpack.c.b16 %v987, %v983
        %v1020 = vpack.c.b16 %v988, %v984
        %v1021 = vpack.c.b16 %v989, %v985
        %1054 = vmatprep.subr.bf16.mxu0 %v991
        %1055 = vmatpush1.bf16.msra.mxu0 %v990
        %1056 = vmatprep.subr.bf16.mxu0 %v995
        %1057 = vmatpush1.bf16.msra.mxu0 %v994
        %1058 = vmatprep.subr.bf16.mxu0 %v999
        %1059 = vmatpush1.bf16.msra.mxu0 %v998
        %1060 = vmatprep.subr.bf16.mxu0 %v1003
        %1061 = vmatpush1.bf16.msra.mxu0 %v1002
        %1062 = vmatprep.subr.bf16.mxu0 %v1007
        %1063 = vmatpush1.bf16.msra.mxu0 %v1006
        %1064 = vmatprep.subr.bf16.mxu0 %v1011
        %1065 = vmatpush1.bf16.msra.mxu0 %v1010
        %1066 = vmatprep.subr.bf16.mxu0 %v1015
        %1067 = vmatpush1.bf16.msra.mxu0 %v1014
        %1068 = vmatprep.subr.bf16.mxu0 %v1019
        %1069 = vmatpush1.bf16.msra.mxu0 %v1018
        %1070 = vmatprep.subr.bf16.mxu0 0
        %1071 = vmatpush1.bf16.msra.mxu0 0
        %1072 = vmatprep.subr.bf16.mxu0 0
        %1073 = vmatpush1.bf16.msra.mxu0 0
        %1074 = vmatprep.subr.bf16.mxu0 0
        %1075 = vmatpush1.bf16.msra.mxu0 0
        %1076 = vmatprep.subr.bf16.mxu0 0
        %1077 = vmatpush1.bf16.msra.mxu0 0
        %1078 = vmatprep.subr.bf16.mxu0 0
        %1079 = vmatpush1.bf16.msra.mxu0 0
        %1080 = vmatprep.subr.bf16.mxu0 0
        %1081 = vmatpush1.bf16.msra.mxu0 0
        %1082 = vmatprep.subr.bf16.mxu0 0
        %1083 = vmatpush1.bf16.msra.mxu0 0
        %1084 = vmatprep.subr.bf16.mxu0 0
        %1085 = vmatpush1.bf16.msra.mxu0 0
        %1086 = vmatprep.mubr.bf16.mxu0 0
        %1087 = vmatmul.mubr.bf16.gmra.mrb[0].mxu0 %v884
        %v1088 = vpop.f32.mrb[0].mxu0
        %v1089 = vadd.f32 %v849, %v1088
        %v1090 = vpop.f32.mrb[0].mxu0
        %v1091 = vadd.f32 %v853, %v1090
        %v1092 = vpop.f32.mrb[0].mxu0
        %v1093 = vadd.f32 %v849, %v1092
        %v1094 = vpop.f32.mrb[0].mxu0
        %v1095 = vadd.f32 %v853, %v1094
        %1096 = vmatprep.mubr.bf16.mxu0 0
        %1097 = vmatmul.mubr.bf16.gmra.mrb[0].mxu0 %v885
        %v1098 = vpop.f32.mrb[0].mxu0
        %v1099 = vadd.f32 %v849, %v1098
        %v1100 = vpop.f32.mrb[0].mxu0
        %v1101 = vadd.f32 %v853, %v1100
        %v1102 = vpop.f32.mrb[0].mxu0
        %v1103 = vadd.f32 %v849, %v1102
        %v1104 = vpop.f32.mrb[0].mxu0
        %v1105 = vadd.f32 %v853, %v1104
        %1106 = vmatprep.mubr.bf16.mxu0 0
        %1107 = vmatmul.mubr.bf16.gmra.mrb[0].mxu0 %v886
        %v1108 = vpop.f32.mrb[0].mxu0
        %v1109 = vadd.f32 %v849, %v1108
        %v1110 = vpop.f32.mrb[0].mxu0
        %v1111 = vadd.f32 %v853, %v1110
        %v1112 = vpop.f32.mrb[0].mxu0
        %v1113 = vadd.f32 %v849, %v1112
        %v1114 = vpop.f32.mrb[0].mxu0
        %v1115 = vadd.f32 %v853, %v1114
        %1116 = vmatprep.mubr.bf16.mxu0 0
        %1117 = vmatmul.mubr.bf16.gmra.mrb[0].mxu0 %v887
        %v1118 = vpop.f32.mrb[0].mxu0
        %v1119 = vadd.f32 %v849, %v1118
        %v1120 = vpop.f32.mrb[0].mxu0
        %v1121 = vadd.f32 %v853, %v1120
        %v1122 = vpop.f32.mrb[0].mxu0
        %v1123 = vadd.f32 %v849, %v1122
        %v1124 = vpop.f32.mrb[0].mxu0
        %v1125 = vadd.f32 %v853, %v1124
        %1126 = vmatprep.mubr.bf16.mxu0 0
        %1127 = vmatmul.mubr.bf16.gmra.mrb[0].mxu0 %v888
        %v1128 = vpop.f32.mrb[0].mxu0
        %v1129 = vadd.f32 %v849, %v1128
        %v1130 = vpop.f32.mrb[0].mxu0
        %v1131 = vadd.f32 %v853, %v1130
        %v1132 = vpop.f32.mrb[0].mxu0
        %v1133 = vpop.f32.mrb[0].mxu0
        %1134 = vdwg.mxu0
        %1135 = vmatprep.subr.bf16.mxu0 %v993
        %1136 = vmatpush1.bf16.msra.mxu0 %v992
        %1137 = vmatprep.subr.bf16.mxu0 %v997
        %1138 = vmatpush1.bf16.msra.mxu0 %v996
        %1139 = vmatprep.subr.bf16.mxu0 %v1001
        %1140 = vmatpush1.bf16.msra.mxu0 %v1000
        %1141 = vmatprep.subr.bf16.mxu0 %v1005
        %1142 = vmatpush1.bf16.msra.mxu0 %v1004
        %1143 = vmatprep.subr.bf16.mxu0 %v1009
        %1144 = vmatpush1.bf16.msra.mxu0 %v1008
        %1145 = vmatprep.subr.bf16.mxu0 %v1013
        %1146 = vmatpush1.bf16.msra.mxu0 %v1012
        %1147 = vmatprep.subr.bf16.mxu0 %v1017
        %1148 = vmatpush1.bf16.msra.mxu0 %v1016
        %1149 = vmatprep.subr.bf16.mxu0 %v1021
        %1150 = vmatpush1.bf16.msra.mxu0 %v1020
        %1151 = vmatprep.subr.bf16.mxu0 0
        %1152 = vmatpush1.bf16.msra.mxu0 0
        %1153 = vmatprep.subr.bf16.mxu0 0
        %1154 = vmatpush1.bf16.msra.mxu0 0
        %1155 = vmatprep.subr.bf16.mxu0 0
        %1156 = vmatpush1.bf16.msra.mxu0 0
        %1157 = vmatprep.subr.bf16.mxu0 0
        %1158 = vmatpush1.bf16.msra.mxu0 0
        %1159 = vmatprep.subr.bf16.mxu0 0
        %1160 = vmatpush1.bf16.msra.mxu0 0
        %1161 = vmatprep.subr.bf16.mxu0 0
        %1162 = vmatpush1.bf16.msra.mxu0 0
        %1163 = vmatprep.subr.bf16.mxu0 0
        %1164 = vmatpush1.bf16.msra.mxu0 0
        %1165 = vmatprep.subr.bf16.mxu0 0
        %1166 = vmatpush1.bf16.msra.mxu0 0
        %1167 = vmatprep.mubr.bf16.mxu0 0
        %1168 = vmatmul.mubr.bf16.gmra.mrb[0].mxu0 %v884
        %v1169 = vpop.f32.mrb[0].mxu0
        %v1170 = vadd.f32 %v857, %v1169
        %v1171 = vpop.f32.mrb[0].mxu0
        %v1172 = vadd.f32 %v861, %v1171
        %v1173 = vpop.f32.mrb[0].mxu0
        %v1174 = vadd.f32 %v857, %v1173
        %v1175 = vpop.f32.mrb[0].mxu0
        %v1176 = vadd.f32 %v861, %v1175
        %1177 = vmatprep.mubr.bf16.mxu0 0
        %1178 = vmatmul.mubr.bf16.gmra.mrb[0].mxu0 %v885
        %v1179 = vpop.f32.mrb[0].mxu0
        %v1180 = vadd.f32 %v857, %v1179
        %v1181 = vpop.f32.mrb[0].mxu0
        %v1182 = vadd.f32 %v861, %v1181
        %v1183 = vpop.f32.mrb[0].mxu0
        %v1184 = vadd.f32 %v857, %v1183
        %v1185 = vpop.f32.mrb[0].mxu0
        %v1186 = vadd.f32 %v861, %v1185
        %1187 = vmatprep.mubr.bf16.mxu0 0
        %1188 = vmatmul.mubr.bf16.gmra.mrb[0].mxu0 %v886
        %v1189 = vpop.f32.mrb[0].mxu0
        %v1190 = vadd.f32 %v857, %v1189
        %v1191 = vpop.f32.mrb[0].mxu0
        %v1192 = vadd.f32 %v861, %v1191
        %v1193 = vpop.f32.mrb[0].mxu0
        %v1194 = vadd.f32 %v857, %v1193
        %v1195 = vpop.f32.mrb[0].mxu0
        %v1196 = vadd.f32 %v861, %v1195
        %1197 = vmatprep.mubr.bf16.mxu0 0
        %1198 = vmatmul.mubr.bf16.gmra.mrb[0].mxu0 %v887
        %v1199 = vpop.f32.mrb[0].mxu0
        %v1200 = vadd.f32 %v857, %v1199
        %v1201 = vpop.f32.mrb[0].mxu0
        %v1202 = vadd.f32 %v861, %v1201
        %v1203 = vpop.f32.mrb[0].mxu0
        %v1204 = vadd.f32 %v857, %v1203
        %v1205 = vpop.f32.mrb[0].mxu0
        %v1206 = vadd.f32 %v861, %v1205
        %1207 = vmatprep.mubr.bf16.mxu0 0
        %1208 = vmatmul.mubr.bf16.gmra.mrb[0].mxu0 %v888
        %v1209 = vpop.f32.mrb[0].mxu0
        %v1210 = vadd.f32 %v857, %v1209
        %v1211 = vpop.f32.mrb[0].mxu0
        %v1212 = vadd.f32 %v861, %v1211
        %v1213 = vpop.f32.mrb[0].mxu0
        %v1214 = vpop.f32.mrb[0].mxu0
        %1215 = vdwg.mxu0
        %v1216 = vpack.c.bf16 %v1089, %v1089
        %v1217 = vpack.c.bf16 %v1091, %v1091
        %v1218 = vpack.c.bf16 %v1170, %v1170
        %v1219 = vpack.c.bf16 %v1172, %v1172
        %v1220 = vpack.c.bf16 %v1093, %v1093
        %v1221 = vpack.c.bf16 %v1095, %v1095
        %v1222 = vpack.c.bf16 %v1174, %v1174
        %v1223 = vpack.c.bf16 %v1176, %v1176
        %v1224 = vpack.c.bf16 %v1099, %v1099
        %v1225 = vpack.c.bf16 %v1101, %v1101
        %v1226 = vpack.c.bf16 %v1180, %v1180
        %v1227 = vpack.c.bf16 %v1182, %v1182
        %v1228 = vpack.c.bf16 %v1103, %v1103
        %v1229 = vpack.c.bf16 %v1105, %v1105
        %v1230 = vpack.c.bf16 %v1184, %v1184
        %v1231 = vpack.c.bf16 %v1186, %v1186
        %v1232 = vpack.c.bf16 %v1109, %v1109
        %v1233 = vpack.c.bf16 %v1111, %v1111
        %v1234 = vpack.c.bf16 %v1190, %v1190
        %v1235 = vpack.c.bf16 %v1192, %v1192
        %v1236 = vpack.c.bf16 %v1113, %v1113
        %v1237 = vpack.c.bf16 %v1115, %v1115
        %v1238 = vpack.c.bf16 %v1194, %v1194
        %v1239 = vpack.c.bf16 %v1196, %v1196
        %v1240 = vpack.c.bf16 %v1119, %v1119
        %v1241 = vpack.c.bf16 %v1121, %v1121
        %v1242 = vpack.c.bf16 %v1200, %v1200
        %v1243 = vpack.c.bf16 %v1202, %v1202
        %v1244 = vpack.c.bf16 %v1123, %v1123
        %v1245 = vpack.c.bf16 %v1125, %v1125
        %v1246 = vpack.c.bf16 %v1204, %v1204
        %v1247 = vpack.c.bf16 %v1206, %v1206
        %v1248 = vpack.c.bf16 %v1129, %v1129
        %v1249 = vpack.c.bf16 %v1131, %v1131
        %v1250 = vpack.c.bf16 %v1210, %v1210
        %v1251 = vpack.c.bf16 %v1212, %v1212
        %v1288 = vunpack.c.l.b16 %v1216
        %v1289 = vunpack.c.l.b16 %v1217
        %v1290 = vunpack.c.l.b16 %v1218
        %v1291 = vunpack.c.l.b16 %v1219
        %v1292 = vunpack.c.l.b16 %v1220
        %v1293 = vunpack.c.l.b16 %v1221
        %v1294 = vunpack.c.l.b16 %v1222
        %v1295 = vunpack.c.l.b16 %v1223
        %v1296 = vunpack.c.l.b16 %v1224
        %v1297 = vunpack.c.l.b16 %v1225
        %v1298 = vunpack.c.l.b16 %v1226
        %v1299 = vunpack.c.l.b16 %v1227
        %v1300 = vunpack.c.l.b16 %v1228
        %v1301 = vunpack.c.l.b16 %v1229
        %v1302 = vunpack.c.l.b16 %v1230
        %v1303 = vunpack.c.l.b16 %v1231
        %v1304 = vunpack.c.l.b16 %v1232
        %v1305 = vunpack.c.l.b16 %v1233
        %v1306 = vunpack.c.l.b16 %v1234
        %v1307 = vunpack.c.l.b16 %v1235
        %v1308 = vunpack.c.l.b16 %v1236
        %v1309 = vunpack.c.l.b16 %v1237
        %v1310 = vunpack.c.l.b16 %v1238
        %v1311 = vunpack.c.l.b16 %v1239
        %v1312 = vunpack.c.l.b16 %v1240
        %v1313 = vunpack.c.l.b16 %v1241
        %v1314 = vunpack.c.l.b16 %v1242
        %v1315 = vunpack.c.l.b16 %v1243
        %v1316 = vunpack.c.l.b16 %v1244
        %v1317 = vunpack.c.l.b16 %v1245
        %v1318 = vunpack.c.l.b16 %v1246
        %v1319 = vunpack.c.l.b16 %v1247
        %v1320 = vunpack.c.l.b16 %v1248
        %v1321 = vunpack.c.l.b16 %v1249
        %v1322 = vunpack.c.l.b16 %v1250
        %v1323 = vunpack.c.l.b16 %v1251
        %v1324 = vpack.c.b16 %v1289, %v1288
        %v1325 = vpack.c.b16 %v1291, %v1290
        %v1326 = vpack.c.b16 %v1293, %v1292
        %v1327 = vpack.c.b16 %v1295, %v1294
        %v1328 = vpack.c.b16 %v1297, %v1296
        %v1329 = vpack.c.b16 %v1299, %v1298
        %v1330 = vpack.c.b16 %v1301, %v1300
        %v1331 = vpack.c.b16 %v1303, %v1302
        %v1332 = vpack.c.b16 %v1305, %v1304
        %v1333 = vpack.c.b16 %v1307, %v1306
        %v1334 = vpack.c.b16 %v1309, %v1308
        %v1335 = vpack.c.b16 %v1311, %v1310
        %v1336 = vpack.c.b16 %v1313, %v1312
        %v1337 = vpack.c.b16 %v1315, %v1314
        %v1338 = vpack.c.b16 %v1317, %v1316
        %v1339 = vpack.c.b16 %v1319, %v1318
        %v1340 = vpack.c.b16 %v1321, %v1320
        %v1341 = vpack.c.b16 %v1323, %v1322
        %1360 = vst [vmem:[#allocation2] sm:$0xff] %v1324
        %1361 = vst [vmem:[#allocation2 + $0x8] sm:$0xff] %v1325
        %1362 = vst [vmem:[#allocation2 + $0x10] sm:$0xff] %v1326
        %1363 = vst [vmem:[#allocation2 + $0x18] sm:$0xff] %v1327
        %1364 = vst [vmem:[#allocation2 + $0x20] sm:$0xff] %v1328
        %1365 = vst [vmem:[#allocation2 + $0x28] sm:$0xff] %v1329
        %1366 = vst [vmem:[#allocation2 + $0x30] sm:$0xff] %v1330
        %1367 = vst [vmem:[#allocation2 + $0x38] sm:$0xff] %v1331
        %1368 = vst [vmem:[#allocation2 + $0x40] sm:$0xff] %v1332
        %1369 = vst [vmem:[#allocation2 + $0x48] sm:$0xff] %v1333
        %1370 = vst [vmem:[#allocation2 + $0x50] sm:$0xff] %v1334
        %1371 = vst [vmem:[#allocation2 + $0x58] sm:$0xff] %v1335
        %1372 = vst [vmem:[#allocation2 + $0x60] sm:$0xff] %v1336
        %1373 = vst [vmem:[#allocation2 + $0x68] sm:$0xff] %v1337
        %1374 = vst [vmem:[#allocation2 + $0x70] sm:$0xff] %v1338
        %1375 = vst [vmem:[#allocation2 + $0x78] sm:$0xff] %v1339
        %1376 = vst [vmem:[#allocation2 + $0x80] sm:$0xff] %v1340
        %1377 = vst [vmem:[#allocation2 + $0x88] sm:$0xff] %v1341
      $region44: #{caption_generator_forward.2} parent=35 // pred_fallthru
        _
      %v1378 = vld [vmem:[%s215] sm:$0xff]
      %v1379 = vld [vmem:[%s215 + $0x8] sm:$0xff]
      %v1380 = vld [vmem:[%s215 + $0x10] sm:$0xff]
      %v1381 = vld [vmem:[%s215 + $0x18] sm:$0xff]
      %v1382 = vld [vmem:[%s215 + $0x20] sm:$0xff]
      %v1383 = vld [vmem:[%s215 + $0x28] sm:$0xff]
      %v1384 = vld [vmem:[%s215 + $0x30] sm:$0xff]
      %v1385 = vld [vmem:[%s215 + $0x38] sm:$0xff]
      %v1386 = vld [vmem:[%s215 + $0x40] sm:$0xff]
      %v1387 = vld [vmem:[%s215 + $0x48] sm:$0xff]
      %v1388 = vld [vmem:[%s215 + $0x50] sm:$0xff]
      %v1389 = vld [vmem:[%s215 + $0x58] sm:$0xff]
      %v1390 = vld [vmem:[%s215 + $0x60] sm:$0xff]
      %v1391 = vld [vmem:[%s215 + $0x68] sm:$0xff]
      %v1392 = vld [vmem:[%s215 + $0x70] sm:$0xff]
      %v1393 = vld [vmem:[%s215 + $0x78] sm:$0xff]
      %v1394 = vld [vmem:[%s215 + $0x80] sm:$0xff]
      %v1395 = vld [vmem:[%s215 + $0x88] sm:$0xff]
      %v1396 = vld [vmem:[%s215 + $0x90] sm:$0xff]
      %v1397 = vld [vmem:[%s215 + $0x98] sm:$0xff]
      %v1398 = vld [vmem:[%s215 + $0xa0] sm:$0xff]
      %v1399 = vld [vmem:[%s215 + $0xa8] sm:$0xff]
      %v1400 = vld [vmem:[%s215 + $0xb0] sm:$0xff]
      %v1401 = vld [vmem:[%s215 + $0xb8] sm:$0xff]
      %v1402 = vld [vmem:[%s215 + $0xc0] sm:$0xff]
      %v1403 = vld [vmem:[%s215 + $0xc8] sm:$0xff]
      %v1404 = vld [vmem:[%s215 + $0xd0] sm:$0xff]
      %v1405 = vld [vmem:[%s215 + $0xd8] sm:$0xff]
      %v1406 = vld [vmem:[%s215 + $0xe0] sm:$0xff]
      %v1407 = vld [vmem:[%s215 + $0xe8] sm:$0xff]
      %v1408 = vld [vmem:[%s215 + $0xf0] sm:$0xff]
      %v1409 = vld [vmem:[%s215 + $0xf8] sm:$0xff]
      %v1410 = vld [vmem:[#allocation2] sm:$0xff]
      %v1411 = vld [vmem:[#allocation2 + $0x8] sm:$0xff]
      %v1412 = vunpack.c.l.bf16 %v1410
      %v1413 = vunpack.c.h.bf16 %v1410
      %v1414 = vunpack.c.l.bf16 %v1411
      %v1415 = vunpack.c.h.bf16 %v1411
      %v1448 = vunpack.c.l.b16 %v1378
      %v1449 = vunpack.c.h.b16 %v1378
      %v1450 = vunpack.c.l.b16 %v1379
      %v1451 = vunpack.c.h.b16 %v1379
      %v1452 = vunpack.c.l.b16 %v1380
      %v1453 = vunpack.c.h.b16 %v1380
      %v1454 = vunpack.c.l.b16 %v1381
      %v1455 = vunpack.c.h.b16 %v1381
      %v1456 = vunpack.c.l.b16 %v1382
      %v1457 = vunpack.c.h.b16 %v1382
      %v1458 = vunpack.c.l.b16 %v1383
      %v1459 = vunpack.c.h.b16 %v1383
      %v1460 = vunpack.c.l.b16 %v1384
      %v1461 = vunpack.c.h.b16 %v1384
      %v1462 = vunpack.c.l.b16 %v1385
      %v1463 = vunpack.c.h.b16 %v1385
      %v1464 = vunpack.c.l.b16 %v1386
      %v1465 = vunpack.c.h.b16 %v1386
      %v1466 = vunpack.c.l.b16 %v1387
      %v1467 = vunpack.c.h.b16 %v1387
      %v1468 = vunpack.c.l.b16 %v1388
      %v1469 = vunpack.c.h.b16 %v1388
      %v1470 = vunpack.c.l.b16 %v1389
      %v1471 = vunpack.c.h.b16 %v1389
      %v1472 = vunpack.c.l.b16 %v1390
      %v1473 = vunpack.c.h.b16 %v1390
      %v1474 = vunpack.c.l.b16 %v1391
      %v1475 = vunpack.c.h.b16 %v1391
      %v1476 = vunpack.c.l.b16 %v1392
      %v1477 = vunpack.c.h.b16 %v1392
      %v1478 = vunpack.c.l.b16 %v1393
      %v1479 = vunpack.c.h.b16 %v1393
      %v1480 = vunpack.c.l.b16 %v1394
      %v1481 = vunpack.c.h.b16 %v1394
      %v1482 = vunpack.c.l.b16 %v1395
      %v1483 = vunpack.c.h.b16 %v1395
      %v1484 = vunpack.c.l.b16 %v1396
      %v1485 = vunpack.c.h.b16 %v1396
      %v1486 = vunpack.c.l.b16 %v1397
      %v1487 = vunpack.c.h.b16 %v1397
      %v1488 = vunpack.c.l.b16 %v1398
      %v1489 = vunpack.c.h.b16 %v1398
      %v1490 = vunpack.c.l.b16 %v1399
      %v1491 = vunpack.c.h.b16 %v1399
      %v1492 = vunpack.c.l.b16 %v1400
      %v1493 = vunpack.c.h.b16 %v1400
      %v1494 = vunpack.c.l.b16 %v1401
      %v1495 = vunpack.c.h.b16 %v1401
      %v1496 = vunpack.c.l.b16 %v1402
      %v1497 = vunpack.c.h.b16 %v1402
      %v1498 = vunpack.c.l.b16 %v1403
      %v1499 = vunpack.c.h.b16 %v1403
      %v1500 = vunpack.c.l.b16 %v1404
      %v1501 = vunpack.c.h.b16 %v1404
      %v1502 = vunpack.c.l.b16 %v1405
      %v1503 = vunpack.c.h.b16 %v1405
      %v1504 = vunpack.c.l.b16 %v1406
      %v1505 = vunpack.c.h.b16 %v1406
      %v1506 = vunpack.c.l.b16 %v1407
      %v1507 = vunpack.c.h.b16 %v1407
      %v1508 = vunpack.c.l.b16 %v1408
      %v1509 = vunpack.c.h.b16 %v1408
      %v1510 = vunpack.c.l.b16 %v1409
      %v1511 = vunpack.c.h.b16 %v1409
      %v1512 = vpack.c.b16 %v1452, %v1448
      %v1513 = vpack.c.b16 %v1453, %v1449
      %v1514 = vpack.c.b16 %v1454, %v1450
      %v1515 = vpack.c.b16 %v1455, %v1451
      %v1516 = vpack.c.b16 %v1460, %v1456
      %v1517 = vpack.c.b16 %v1461, %v1457
      %v1518 = vpack.c.b16 %v1462, %v1458
      %v1519 = vpack.c.b16 %v1463, %v1459
      %v1520 = vpack.c.b16 %v1468, %v1464
      %v1521 = vpack.c.b16 %v1469, %v1465
      %v1522 = vpack.c.b16 %v1470, %v1466
      %v1523 = vpack.c.b16 %v1471, %v1467
      %v1524 = vpack.c.b16 %v1476, %v1472
      %v1525 = vpack.c.b16 %v1477, %v1473
      %v1526 = vpack.c.b16 %v1478, %v1474
      %v1527 = vpack.c.b16 %v1479, %v1475
      %v1528 = vpack.c.b16 %v1484, %v1480
      %v1529 = vpack.c.b16 %v1485, %v1481
      %v1530 = vpack.c.b16 %v1486, %v1482
      %v1531 = vpack.c.b16 %v1487, %v1483
      %v1532 = vpack.c.b16 %v1492, %v1488
      %v1533 = vpack.c.b16 %v1493, %v1489
      %v1534 = vpack.c.b16 %v1494, %v1490
      %v1535 = vpack.c.b16 %v1495, %v1491
      %v1536 = vpack.c.b16 %v1500, %v1496
      %v1537 = vpack.c.b16 %v1501, %v1497
      %v1538 = vpack.c.b16 %v1502, %v1498
      %v1539 = vpack.c.b16 %v1503, %v1499
      %v1540 = vpack.c.b16 %v1508, %v1504
      %v1541 = vpack.c.b16 %v1509, %v1505
      %v1542 = vpack.c.b16 %v1510, %v1506
      %v1543 = vpack.c.b16 %v1511, %v1507
      %1576 = vmatprep.subr.bf16.mxu0 %v1513
      %1577 = vmatpush1.bf16.msra.mxu0 %v1512
      %1578 = vmatprep.subr.bf16.mxu0 %v1517
      %1579 = vmatpush1.bf16.msra.mxu0 %v1516
      %1580 = vmatprep.subr.bf16.mxu0 %v1521
      %1581 = vmatpush1.bf16.msra.mxu0 %v1520
      %1582 = vmatprep.subr.bf16.mxu0 %v1525
      %1583 = vmatpush1.bf16.msra.mxu0 %v1524
      %1584 = vmatprep.subr.bf16.mxu0 %v1529
      %1585 = vmatpush1.bf16.msra.mxu0 %v1528
      %1586 = vmatprep.subr.bf16.mxu0 %v1533
      %1587 = vmatpush1.bf16.msra.mxu0 %v1532
      %1588 = vmatprep.subr.bf16.mxu0 %v1537
      %1589 = vmatpush1.bf16.msra.mxu0 %v1536
      %1590 = vmatprep.subr.bf16.mxu0 %v1541
      %1591 = vmatpush1.bf16.msra.mxu0 %v1540
      %1592 = vmatprep.subr.bf16.mxu0 0
      %1593 = vmatpush1.bf16.msra.mxu0 0
      %1594 = vmatprep.subr.bf16.mxu0 0
      %1595 = vmatpush1.bf16.msra.mxu0 0
      %1596 = vmatprep.subr.bf16.mxu0 0
      %1597 = vmatpush1.bf16.msra.mxu0 0
      %1598 = vmatprep.subr.bf16.mxu0 0
      %1599 = vmatpush1.bf16.msra.mxu0 0
      %1600 = vmatprep.subr.bf16.mxu0 0
      %1601 = vmatpush1.bf16.msra.mxu0 0
      %1602 = vmatprep.subr.bf16.mxu0 0
      %1603 = vmatpush1.bf16.msra.mxu0 0
      %1604 = vmatprep.subr.bf16.mxu0 0
      %1605 = vmatpush1.bf16.msra.mxu0 0
      %1606 = vmatprep.subr.bf16.mxu0 0
      %1607 = vmatpush1.bf16.msra.mxu0 0
      %1608 = vmatprep.mubr.bf16.mxu0 0
      %1609 = vmatmul.mubr.bf16.gmra.mrb[0].mxu0 0
      %v1610 = vpop.f32.mrb[0].mxu0
      %v1611 = vadd.f32 0.0, %v1610
      %v1612 = vpop.f32.mrb[0].mxu0
      %v1613 = vadd.f32 0.0, %v1612
      %v1614 = vpop.f32.mrb[0].mxu0
      %v1615 = vpop.f32.mrb[0].mxu0
      %1616 = vdwg.mxu0
      %1617 = vmatprep.subr.bf16.mxu0 %v1515
      %1618 = vmatpush1.bf16.msra.mxu0 %v1514
      %1619 = vmatprep.subr.bf16.mxu0 %v1519
      %1620 = vmatpush1.bf16.msra.mxu0 %v1518
      %1621 = vmatprep.subr.bf16.mxu0 %v1523
      %1622 = vmatpush1.bf16.msra.mxu0 %v1522
      %1623 = vmatprep.subr.bf16.mxu0 %v1527
      %1624 = vmatpush1.bf16.msra.mxu0 %v1526
      %1625 = vmatprep.subr.bf16.mxu0 %v1531
      %1626 = vmatpush1.bf16.msra.mxu0 %v1530
      %1627 = vmatprep.subr.bf16.mxu0 %v1535
      %1628 = vmatpush1.bf16.msra.mxu0 %v1534
      %1629 = vmatprep.subr.bf16.mxu0 %v1539
      %1630 = vmatpush1.bf16.msra.mxu0 %v1538
      %1631 = vmatprep.subr.bf16.mxu0 %v1543
      %1632 = vmatpush1.bf16.msra.mxu0 %v1542
      %1633 = vmatprep.subr.bf16.mxu0 0
      %1634 = vmatpush1.bf16.msra.mxu0 0
      %1635 = vmatprep.subr.bf16.mxu0 0
      %1636 = vmatpush1.bf16.msra.mxu0 0
      %1637 = vmatprep.subr.bf16.mxu0 0
      %1638 = vmatpush1.bf16.msra.mxu0 0
      %1639 = vmatprep.subr.bf16.mxu0 0
      %1640 = vmatpush1.bf16.msra.mxu0 0
      %1641 = vmatprep.subr.bf16.mxu0 0
      %1642 = vmatpush1.bf16.msra.mxu0 0
      %1643 = vmatprep.subr.bf16.mxu0 0
      %1644 = vmatpush1.bf16.msra.mxu0 0
      %1645 = vmatprep.subr.bf16.mxu0 0
      %1646 = vmatpush1.bf16.msra.mxu0 0
      %1647 = vmatprep.subr.bf16.mxu0 0
      %1648 = vmatpush1.bf16.msra.mxu0 0
      %1649 = vmatprep.mubr.bf16.mxu0 0
      %1650 = vmatmul.mubr.bf16.gmra.mrb[0].mxu0 0
      %v1651 = vpop.f32.mrb[0].mxu0
      %v1652 = vadd.f32 0.0, %v1651
      %v1653 = vpop.f32.mrb[0].mxu0
      %v1654 = vadd.f32 0.0, %v1653
      %v1655 = vpop.f32.mrb[0].mxu0
      %v1656 = vpop.f32.mrb[0].mxu0
      %1657 = vdwg.mxu0
      %v1658 = vadd.f32 %v1412, %v1611
      %v1659 = vadd.f32 %v1413, %v1613
      %v1660 = vadd.f32 %v1414, %v1652
      %v1661 = vadd.f32 %v1415, %v1654
      %v1662 = vxor.u32 %v1658, 2147483648
      %v1663 = vmul.f32 %v1662, 1.442695
      %v1664 = vpow.pop %v1663
      %v1665 = vadd.f32 %v1664, 1.0
      %v1666 = vrcp.pop %v1665
      %v1667 = vmul.f32 1.0, %v1666
      %v1668 = vxor.u32 %v1659, 2147483648
      %v1669 = vmul.f32 %v1668, 1.442695
      %v1670 = vpow.pop %v1669
      %v1671 = vadd.f32 %v1670, 1.0
      %v1672 = vrcp.pop %v1671
      %v1673 = vmul.f32 1.0, %v1672
      %v1674 = vtanh.pop %v1660
      %v1675 = vxor.u32 %v1661, 2147483648
      %v1676 = vmul.f32 %v1675, 1.442695
      %v1677 = vpow.pop %v1676
      %v1678 = vadd.f32 %v1677, 1.0
      %v1679 = vrcp.pop %v1678
      %v1680 = vmul.f32 1.0, %v1679
      %v1681 = vmul.f32 %v1673, 0.0
      %v1682 = vmul.f32 %v1667, %v1674
      %v1683 = vadd.f32 %v1681, %v1682
      %v1684 = vtanh.pop %v1683
      %v1685 = vmul.f32 %v1680, %v1684
      %v1686 = vpack.c.bf16 %v1685, %v1685
      %1687 = vst [vmem:[%s4] sm:$0xf] %v1686
      %s1688 = scalar_lea.vmem [#allocation2], 16
      %v1689 = vld [vmem:[%s1688] sm:$0xff]
      %v1690 = vld [vmem:[%s1688 + $0x8] sm:$0xff]
      %v1691 = vunpack.c.l.bf16 %v1689
      %v1692 = vunpack.c.h.bf16 %v1689
      %v1693 = vunpack.c.l.bf16 %v1690
      %v1694 = vunpack.c.h.bf16 %v1690
      %1695 = vmatprep.subr.bf16.mxu0 %v1513
      %1696 = vmatpush1.bf16.msra.mxu0 %v1512
      %1697 = vmatprep.subr.bf16.mxu0 %v1517
      %1698 = vmatpush1.bf16.msra.mxu0 %v1516
      %1699 = vmatprep.subr.bf16.mxu0 %v1521
      %1700 = vmatpush1.bf16.msra.mxu0 %v1520
      %1701 = vmatprep.subr.bf16.mxu0 %v1525
      %1702 = vmatpush1.bf16.msra.mxu0 %v1524
      %1703 = vmatprep.subr.bf16.mxu0 %v1529
      %1704 = vmatpush1.bf16.msra.mxu0 %v1528
      %1705 = vmatprep.subr.bf16.mxu0 %v1533
      %1706 = vmatpush1.bf16.msra.mxu0 %v1532
      %1707 = vmatprep.subr.bf16.mxu0 %v1537
      %1708 = vmatpush1.bf16.msra.mxu0 %v1536
      %1709 = vmatprep.subr.bf16.mxu0 %v1541
      %1710 = vmatpush1.bf16.msra.mxu0 %v1540
      %1711 = vmatprep.subr.bf16.mxu0 0
      %1712 = vmatpush1.bf16.msra.mxu0 0
      %1713 = vmatprep.subr.bf16.mxu0 0
      %1714 = vmatpush1.bf16.msra.mxu0 0
      %1715 = vmatprep.subr.bf16.mxu0 0
      %1716 = vmatpush1.bf16.msra.mxu0 0
      %1717 = vmatprep.subr.bf16.mxu0 0
      %1718 = vmatpush1.bf16.msra.mxu0 0
      %1719 = vmatprep.subr.bf16.mxu0 0
      %1720 = vmatpush1.bf16.msra.mxu0 0
      %1721 = vmatprep.subr.bf16.mxu0 0
      %1722 = vmatpush1.bf16.msra.mxu0 0
      %1723 = vmatprep.subr.bf16.mxu0 0
      %1724 = vmatpush1.bf16.msra.mxu0 0
      %1725 = vmatprep.subr.bf16.mxu0 0
      %1726 = vmatpush1.bf16.msra.mxu0 0
      %1727 = vmatprep.mubr.bf16.mxu0 0
      %1728 = vmatmul.mubr.bf16.gmra.mrb[0].mxu0 %v1686
      %v1729 = vpop.f32.mrb[0].mxu0
      %v1730 = vadd.f32 0.0, %v1729
      %v1731 = vpop.f32.mrb[0].mxu0
      %v1732 = vadd.f32 0.0, %v1731
      %v1733 = vpop.f32.mrb[0].mxu0
      %v1734 = vpop.f32.mrb[0].mxu0
      %1735 = vdwg.mxu0
      %1736 = vmatprep.subr.bf16.mxu0 %v1515
      %1737 = vmatpush1.bf16.msra.mxu0 %v1514
      %1738 = vmatprep.subr.bf16.mxu0 %v1519
      %1739 = vmatpush1.bf16.msra.mxu0 %v1518
      %1740 = vmatprep.subr.bf16.mxu0 %v1523
      %1741 = vmatpush1.bf16.msra.mxu0 %v1522
      %1742 = vmatprep.subr.bf16.mxu0 %v1527
      %1743 = vmatpush1.bf16.msra.mxu0 %v1526
      %1744 = vmatprep.subr.bf16.mxu0 %v1531
      %1745 = vmatpush1.bf16.msra.mxu0 %v1530
      %1746 = vmatprep.subr.bf16.mxu0 %v1535
      %1747 = vmatpush1.bf16.msra.mxu0 %v1534
      %1748 = vmatprep.subr.bf16.mxu0 %v1539
      %1749 = vmatpush1.bf16.msra.mxu0 %v1538
      %1750 = vmatprep.subr.bf16.mxu0 %v1543
      %1751 = vmatpush1.bf16.msra.mxu0 %v1542
      %1752 = vmatprep.subr.bf16.mxu0 0
      %1753 = vmatpush1.bf16.msra.mxu0 0
      %1754 = vmatprep.subr.bf16.mxu0 0
      %1755 = vmatpush1.bf16.msra.mxu0 0
      %1756 = vmatprep.subr.bf16.mxu0 0
      %1757 = vmatpush1.bf16.msra.mxu0 0
      %1758 = vmatprep.subr.bf16.mxu0 0
      %1759 = vmatpush1.bf16.msra.mxu0 0
      %1760 = vmatprep.subr.bf16.mxu0 0
      %1761 = vmatpush1.bf16.msra.mxu0 0
      %1762 = vmatprep.subr.bf16.mxu0 0
      %1763 = vmatpush1.bf16.msra.mxu0 0
      %1764 = vmatprep.subr.bf16.mxu0 0
      %1765 = vmatpush1.bf16.msra.mxu0 0
      %1766 = vmatprep.subr.bf16.mxu0 0
      %1767 = vmatpush1.bf16.msra.mxu0 0
      %1768 = vmatprep.mubr.bf16.mxu0 0
      %1769 = vmatmul.mubr.bf16.gmra.mrb[0].mxu0 %v1686
      %v1770 = vpop.f32.mrb[0].mxu0
      %v1771 = vadd.f32 0.0, %v1770
      %v1772 = vpop.f32.mrb[0].mxu0
      %v1773 = vadd.f32 0.0, %v1772
      %v1774 = vpop.f32.mrb[0].mxu0
      %v1775 = vpop.f32.mrb[0].mxu0
      %1776 = vdwg.mxu0
      %v1777 = vadd.f32 %v1691, %v1730
      %v1778 = vadd.f32 %v1692, %v1732
      %v1779 = vadd.f32 %v1693, %v1771
      %v1780 = vadd.f32 %v1694, %v1773
      %v1781 = vxor.u32 %v1777, 2147483648
      %v1782 = vmul.f32 %v1781, 1.442695
      %v1783 = vpow.pop %v1782
      %v1784 = vadd.f32 %v1783, 1.0
      %v1785 = vrcp.pop %v1784
      %v1786 = vmul.f32 1.0, %v1785
      %v1787 = vxor.u32 %v1778, 2147483648
      %v1788 = vmul.f32 %v1787, 1.442695
      %v1789 = vpow.pop %v1788
      %v1790 = vadd.f32 %v1789, 1.0
      %v1791 = vrcp.pop %v1790
      %v1792 = vmul.f32 1.0, %v1791
      %v1793 = vtanh.pop %v1779
      %v1794 = vxor.u32 %v1780, 2147483648
      %v1795 = vmul.f32 %v1794, 1.442695
      %v1796 = vpow.pop %v1795
      %v1797 = vadd.f32 %v1796, 1.0
      %v1798 = vrcp.pop %v1797
      %v1799 = vmul.f32 1.0, %v1798
      %v1800 = vmul.f32 %v1792, %v1683
      %v1801 = vmul.f32 %v1786, %v1793
      %v1802 = vadd.f32 %v1800, %v1801
      %v1803 = vtanh.pop %v1802
      %v1804 = vmul.f32 %v1799, %v1803
      %v1805 = vpack.c.bf16 %v1804, %v1804
      %s1806 = scalar_lea.vmem %s4, 4
      %1807 = vst [vmem:[%s1806] sm:$0xf] %v1805
      %s1808 = scalar_lea.vmem [#allocation2], 32
      %v1809 = vld [vmem:[%s1808] sm:$0xff]
      %v1810 = vld [vmem:[%s1808 + $0x8] sm:$0xff]
      %v1811 = vunpack.c.l.bf16 %v1809
      %v1812 = vunpack.c.h.bf16 %v1809
      %v1813 = vunpack.c.l.bf16 %v1810
      %v1814 = vunpack.c.h.bf16 %v1810
      %1815 = vmatprep.subr.bf16.mxu0 %v1513
      %1816 = vmatpush1.bf16.msra.mxu0 %v1512
      %1817 = vmatprep.subr.bf16.mxu0 %v1517
      %1818 = vmatpush1.bf16.msra.mxu0 %v1516
      %1819 = vmatprep.subr.bf16.mxu0 %v1521
      %1820 = vmatpush1.bf16.msra.mxu0 %v1520
      %1821 = vmatprep.subr.bf16.mxu0 %v1525
      %1822 = vmatpush1.bf16.msra.mxu0 %v1524
      %1823 = vmatprep.subr.bf16.mxu0 %v1529
      %1824 = vmatpush1.bf16.msra.mxu0 %v1528
      %1825 = vmatprep.subr.bf16.mxu0 %v1533
      %1826 = vmatpush1.bf16.msra.mxu0 %v1532
      %1827 = vmatprep.subr.bf16.mxu0 %v1537
      %1828 = vmatpush1.bf16.msra.mxu0 %v1536
      %1829 = vmatprep.subr.bf16.mxu0 %v1541
      %1830 = vmatpush1.bf16.msra.mxu0 %v1540
      %1831 = vmatprep.subr.bf16.mxu0 0
      %1832 = vmatpush1.bf16.msra.mxu0 0
      %1833 = vmatprep.subr.bf16.mxu0 0
      %1834 = vmatpush1.bf16.msra.mxu0 0
      %1835 = vmatprep.subr.bf16.mxu0 0
      %1836 = vmatpush1.bf16.msra.mxu0 0
      %1837 = vmatprep.subr.bf16.mxu0 0
      %1838 = vmatpush1.bf16.msra.mxu0 0
      %1839 = vmatprep.subr.bf16.mxu0 0
      %1840 = vmatpush1.bf16.msra.mxu0 0
      %1841 = vmatprep.subr.bf16.mxu0 0
      %1842 = vmatpush1.bf16.msra.mxu0 0
      %1843 = vmatprep.subr.bf16.mxu0 0
      %1844 = vmatpush1.bf16.msra.mxu0 0
      %1845 = vmatprep.subr.bf16.mxu0 0
      %1846 = vmatpush1.bf16.msra.mxu0 0
      %1847 = vmatprep.mubr.bf16.mxu0 0
      %1848 = vmatmul.mubr.bf16.gmra.mrb[0].mxu0 %v1805
      %v1849 = vpop.f32.mrb[0].mxu0
      %v1850 = vadd.f32 0.0, %v1849
      %v1851 = vpop.f32.mrb[0].mxu0
      %v1852 = vadd.f32 0.0, %v1851
      %v1853 = vpop.f32.mrb[0].mxu0
      %v1854 = vpop.f32.mrb[0].mxu0
      %1855 = vdwg.mxu0
      %1856 = vmatprep.subr.bf16.mxu0 %v1515
      %1857 = vmatpush1.bf16.msra.mxu0 %v1514
      %1858 = vmatprep.subr.bf16.mxu0 %v1519
      %1859 = vmatpush1.bf16.msra.mxu0 %v1518
      %1860 = vmatprep.subr.bf16.mxu0 %v1523
      %1861 = vmatpush1.bf16.msra.mxu0 %v1522
      %1862 = vmatprep.subr.bf16.mxu0 %v1527
      %1863 = vmatpush1.bf16.msra.mxu0 %v1526
      %1864 = vmatprep.subr.bf16.mxu0 %v1531
      %1865 = vmatpush1.bf16.msra.mxu0 %v1530
      %1866 = vmatprep.subr.bf16.mxu0 %v1535
      %1867 = vmatpush1.bf16.msra.mxu0 %v1534
      %1868 = vmatprep.subr.bf16.mxu0 %v1539
      %1869 = vmatpush1.bf16.msra.mxu0 %v1538
      %1870 = vmatprep.subr.bf16.mxu0 %v1543
      %1871 = vmatpush1.bf16.msra.mxu0 %v1542
      %1872 = vmatprep.subr.bf16.mxu0 0
      %1873 = vmatpush1.bf16.msra.mxu0 0
      %1874 = vmatprep.subr.bf16.mxu0 0
      %1875 = vmatpush1.bf16.msra.mxu0 0
      %1876 = vmatprep.subr.bf16.mxu0 0
      %1877 = vmatpush1.bf16.msra.mxu0 0
      %1878 = vmatprep.subr.bf16.mxu0 0
      %1879 = vmatpush1.bf16.msra.mxu0 0
      %1880 = vmatprep.subr.bf16.mxu0 0
      %1881 = vmatpush1.bf16.msra.mxu0 0
      %1882 = vmatprep.subr.bf16.mxu0 0
      %1883 = vmatpush1.bf16.msra.mxu0 0
      %1884 = vmatprep.subr.bf16.mxu0 0
      %1885 = vmatpush1.bf16.msra.mxu0 0
      %1886 = vmatprep.subr.bf16.mxu0 0
      %1887 = vmatpush1.bf16.msra.mxu0 0
      %1888 = vmatprep.mubr.bf16.mxu0 0
      %1889 = vmatmul.mubr.bf16.gmra.mrb[0].mxu0 %v1805
      %v1890 = vpop.f32.mrb[0].mxu0
      %v1891 = vadd.f32 0.0, %v1890
      %v1892 = vpop.f32.mrb[0].mxu0
      %v1893 = vadd.f32 0.0, %v1892
      %v1894 = vpop.f32.mrb[0].mxu0
      %v1895 = vpop.f32.mrb[0].mxu0
      %1896 = vdwg.mxu0
      %v1897 = vadd.f32 %v1811, %v1850
      %v1898 = vadd.f32 %v1812, %v1852
      %v1899 = vadd.f32 %v1813, %v1891
      %v1900 = vadd.f32 %v1814, %v1893
      %v1901 = vxor.u32 %v1897, 2147483648
      %v1902 = vmul.f32 %v1901, 1.442695
      %v1903 = vpow.pop %v1902
      %v1904 = vadd.f32 %v1903, 1.0
      %v1905 = vrcp.pop %v1904
      %v1906 = vmul.f32 1.0, %v1905
      %v1907 = vxor.u32 %v1898, 2147483648
      %v1908 = vmul.f32 %v1907, 1.442695
      %v1909 = vpow.pop %v1908
      %v1910 = vadd.f32 %v1909, 1.0
      %v1911 = vrcp.pop %v1910
      %v1912 = vmul.f32 1.0, %v1911
      %v1913 = vtanh.pop %v1899
      %v1914 = vxor.u32 %v1900, 2147483648
      %v1915 = vmul.f32 %v1914, 1.442695
      %v1916 = vpow.pop %v1915
      %v1917 = vadd.f32 %v1916, 1.0
      %v1918 = vrcp.pop %v1917
      %v1919 = vmul.f32 1.0, %v1918
      %v1920 = vmul.f32 %v1912, %v1802
      %v1921 = vmul.f32 %v1906, %v1913
      %v1922 = vadd.f32 %v1920, %v1921
      %v1923 = vtanh.pop %v1922
      %v1924 = vmul.f32 %v1919, %v1923
      %v1925 = vpack.c.bf16 %v1924, %v1924
      %s1926 = scalar_lea.vmem %s4, 8
      %1927 = vst [vmem:[%s1926] sm:$0xf] %v1925
      %s1928 = scalar_lea.vmem [#allocation2], 48
      %v1929 = vld [vmem:[%s1928] sm:$0xff]
      %v1930 = vld [vmem:[%s1928 + $0x8] sm:$0xff]
      %v1931 = vunpack.c.l.bf16 %v1929
      %v1932 = vunpack.c.h.bf16 %v1929
      %v1933 = vunpack.c.l.bf16 %v1930
      %v1934 = vunpack.c.h.bf16 %v1930
      %1935 = vmatprep.subr.bf16.mxu0 %v1513
      %1936 = vmatpush1.bf16.msra.mxu0 %v1512
      %1937 = vmatprep.subr.bf16.mxu0 %v1517
      %1938 = vmatpush1.bf16.msra.mxu0 %v1516
      %1939 = vmatprep.subr.bf16.mxu0 %v1521
      %1940 = vmatpush1.bf16.msra.mxu0 %v1520
      %1941 = vmatprep.subr.bf16.mxu0 %v1525
      %1942 = vmatpush1.bf16.msra.mxu0 %v1524
      %1943 = vmatprep.subr.bf16.mxu0 %v1529
      %1944 = vmatpush1.bf16.msra.mxu0 %v1528
      %1945 = vmatprep.subr.bf16.mxu0 %v1533
      %1946 = vmatpush1.bf16.msra.mxu0 %v1532
      %1947 = vmatprep.subr.bf16.mxu0 %v1537
      %1948 = vmatpush1.bf16.msra.mxu0 %v1536
      %1949 = vmatprep.subr.bf16.mxu0 %v1541
      %1950 = vmatpush1.bf16.msra.mxu0 %v1540
      %1951 = vmatprep.subr.bf16.mxu0 0
      %1952 = vmatpush1.bf16.msra.mxu0 0
      %1953 = vmatprep.subr.bf16.mxu0 0
      %1954 = vmatpush1.bf16.msra.mxu0 0
      %1955 = vmatprep.subr.bf16.mxu0 0
      %1956 = vmatpush1.bf16.msra.mxu0 0
      %1957 = vmatprep.subr.bf16.mxu0 0
      %1958 = vmatpush1.bf16.msra.mxu0 0
      %1959 = vmatprep.subr.bf16.mxu0 0
      %1960 = vmatpush1.bf16.msra.mxu0 0
      %1961 = vmatprep.subr.bf16.mxu0 0
      %1962 = vmatpush1.bf16.msra.mxu0 0
      %1963 = vmatprep.subr.bf16.mxu0 0
      %1964 = vmatpush1.bf16.msra.mxu0 0
      %1965 = vmatprep.subr.bf16.mxu0 0
      %1966 = vmatpush1.bf16.msra.mxu0 0
      %1967 = vmatprep.mubr.bf16.mxu0 0
      %1968 = vmatmul.mubr.bf16.gmra.mrb[0].mxu0 %v1925
      %v1969 = vpop.f32.mrb[0].mxu0
      %v1970 = vadd.f32 0.0, %v1969
      %v1971 = vpop.f32.mrb[0].mxu0
      %v1972 = vadd.f32 0.0, %v1971
      %v1973 = vpop.f32.mrb[0].mxu0
      %v1974 = vpop.f32.mrb[0].mxu0
      %1975 = vdwg.mxu0
      %1976 = vmatprep.subr.bf16.mxu0 %v1515
      %1977 = vmatpush1.bf16.msra.mxu0 %v1514
      %1978 = vmatprep.subr.bf16.mxu0 %v1519
      %1979 = vmatpush1.bf16.msra.mxu0 %v1518
      %1980 = vmatprep.subr.bf16.mxu0 %v1523
      %1981 = vmatpush1.bf16.msra.mxu0 %v1522
      %1982 = vmatprep.subr.bf16.mxu0 %v1527
      %1983 = vmatpush1.bf16.msra.mxu0 %v1526
      %1984 = vmatprep.subr.bf16.mxu0 %v1531
      %1985 = vmatpush1.bf16.msra.mxu0 %v1530
      %1986 = vmatprep.subr.bf16.mxu0 %v1535
      %1987 = vmatpush1.bf16.msra.mxu0 %v1534
      %1988 = vmatprep.subr.bf16.mxu0 %v1539
      %1989 = vmatpush1.bf16.msra.mxu0 %v1538
      %1990 = vmatprep.subr.bf16.mxu0 %v1543
      %1991 = vmatpush1.bf16.msra.mxu0 %v1542
      %1992 = vmatprep.subr.bf16.mxu0 0
      %1993 = vmatpush1.bf16.msra.mxu0 0
      %1994 = vmatprep.subr.bf16.mxu0 0
      %1995 = vmatpush1.bf16.msra.mxu0 0
      %1996 = vmatprep.subr.bf16.mxu0 0
      %1997 = vmatpush1.bf16.msra.mxu0 0
      %1998 = vmatprep.subr.bf16.mxu0 0
      %1999 = vmatpush1.bf16.msra.mxu0 0
      %2000 = vmatprep.subr.bf16.mxu0 0
      %2001 = vmatpush1.bf16.msra.mxu0 0
      %2002 = vmatprep.subr.bf16.mxu0 0
      %2003 = vmatpush1.bf16.msra.mxu0 0
      %2004 = vmatprep.subr.bf16.mxu0 0
      %2005 = vmatpush1.bf16.msra.mxu0 0
      %2006 = vmatprep.subr.bf16.mxu0 0
      %2007 = vmatpush1.bf16.msra.mxu0 0
      %2008 = vmatprep.mubr.bf16.mxu0 0
      %2009 = vmatmul.mubr.bf16.gmra.mrb[0].mxu0 %v1925
      %v2010 = vpop.f32.mrb[0].mxu0
      %v2011 = vadd.f32 0.0, %v2010
      %v2012 = vpop.f32.mrb[0].mxu0
      %v2013 = vadd.f32 0.0, %v2012
      %v2014 = vpop.f32.mrb[0].mxu0
      %v2015 = vpop.f32.mrb[0].mxu0
      %2016 = vdwg.mxu0
      %v2017 = vadd.f32 %v1931, %v1970
      %v2018 = vadd.f32 %v1932, %v1972
      %v2019 = vadd.f32 %v1933, %v2011
      %v2020 = vadd.f32 %v1934, %v2013
      %v2021 = vxor.u32 %v2017, 2147483648
      %v2022 = vmul.f32 %v2021, 1.442695
      %v2023 = vpow.pop %v2022
      %v2024 = vadd.f32 %v2023, 1.0
      %v2025 = vrcp.pop %v2024
      %v2026 = vmul.f32 1.0, %v2025
      %v2027 = vxor.u32 %v2018, 2147483648
      %v2028 = vmul.f32 %v2027, 1.442695
      %v2029 = vpow.pop %v2028
      %v2030 = vadd.f32 %v2029, 1.0
      %v2031 = vrcp.pop %v2030
      %v2032 = vmul.f32 1.0, %v2031
      %v2033 = vtanh.pop %v2019
      %v2034 = vxor.u32 %v2020, 2147483648
      %v2035 = vmul.f32 %v2034, 1.442695
      %v2036 = vpow.pop %v2035
      %v2037 = vadd.f32 %v2036, 1.0
      %v2038 = vrcp.pop %v2037
      %v2039 = vmul.f32 1.0, %v2038
      %v2040 = vmul.f32 %v2032, %v1922
      %v2041 = vmul.f32 %v2026, %v2033
      %v2042 = vadd.f32 %v2040, %v2041
      %v2043 = vtanh.pop %v2042
      %v2044 = vmul.f32 %v2039, %v2043
      %v2045 = vpack.c.bf16 %v2044, %v2044
      %s2046 = scalar_lea.vmem %s4, 12
      %2047 = vst [vmem:[%s2046] sm:$0xf] %v2045
      %s2048 = scalar_lea.vmem [#allocation2], 64
      %v2049 = vld [vmem:[%s2048] sm:$0xff]
      %v2050 = vld [vmem:[%s2048 + $0x8] sm:$0xff]
      %v2051 = vunpack.c.l.bf16 %v2049
      %v2052 = vunpack.c.h.bf16 %v2049
      %v2053 = vunpack.c.l.bf16 %v2050
      %v2054 = vunpack.c.h.bf16 %v2050
      %2055 = vmatprep.subr.bf16.mxu0 %v1513
      %2056 = vmatpush1.bf16.msra.mxu0 %v1512
      %2057 = vmatprep.subr.bf16.mxu0 %v1517
      %2058 = vmatpush1.bf16.msra.mxu0 %v1516
      %2059 = vmatprep.subr.bf16.mxu0 %v1521
      %2060 = vmatpush1.bf16.msra.mxu0 %v1520
      %2061 = vmatprep.subr.bf16.mxu0 %v1525
      %2062 = vmatpush1.bf16.msra.mxu0 %v1524
      %2063 = vmatprep.subr.bf16.mxu0 %v1529
      %2064 = vmatpush1.bf16.msra.mxu0 %v1528
      %2065 = vmatprep.subr.bf16.mxu0 %v1533
      %2066 = vmatpush1.bf16.msra.mxu0 %v1532
      %2067 = vmatprep.subr.bf16.mxu0 %v1537
      %2068 = vmatpush1.bf16.msra.mxu0 %v1536
      %2069 = vmatprep.subr.bf16.mxu0 %v1541
      %2070 = vmatpush1.bf16.msra.mxu0 %v1540
      %2071 = vmatprep.subr.bf16.mxu0 0
      %2072 = vmatpush1.bf16.msra.mxu0 0
      %2073 = vmatprep.subr.bf16.mxu0 0
      %2074 = vmatpush1.bf16.msra.mxu0 0
      %2075 = vmatprep.subr.bf16.mxu0 0
      %2076 = vmatpush1.bf16.msra.mxu0 0
      %2077 = vmatprep.subr.bf16.mxu0 0
      %2078 = vmatpush1.bf16.msra.mxu0 0
      %2079 = vmatprep.subr.bf16.mxu0 0
      %2080 = vmatpush1.bf16.msra.mxu0 0
      %2081 = vmatprep.subr.bf16.mxu0 0
      %2082 = vmatpush1.bf16.msra.mxu0 0
      %2083 = vmatprep.subr.bf16.mxu0 0
      %2084 = vmatpush1.bf16.msra.mxu0 0
      %2085 = vmatprep.subr.bf16.mxu0 0
      %2086 = vmatpush1.bf16.msra.mxu0 0
      %2087 = vmatprep.mubr.bf16.mxu0 0
      %2088 = vmatmul.mubr.bf16.gmra.mrb[0].mxu0 %v2045
      %v2089 = vpop.f32.mrb[0].mxu0
      %v2090 = vadd.f32 0.0, %v2089
      %v2091 = vpop.f32.mrb[0].mxu0
      %v2092 = vadd.f32 0.0, %v2091
      %v2093 = vpop.f32.mrb[0].mxu0
      %v2094 = vpop.f32.mrb[0].mxu0
      %2095 = vdwg.mxu0
      %2096 = vmatprep.subr.bf16.mxu0 %v1515
      %2097 = vmatpush1.bf16.msra.mxu0 %v1514
      %2098 = vmatprep.subr.bf16.mxu0 %v1519
      %2099 = vmatpush1.bf16.msra.mxu0 %v1518
      %2100 = vmatprep.subr.bf16.mxu0 %v1523
      %2101 = vmatpush1.bf16.msra.mxu0 %v1522
      %2102 = vmatprep.subr.bf16.mxu0 %v1527
      %2103 = vmatpush1.bf16.msra.mxu0 %v1526
      %2104 = vmatprep.subr.bf16.mxu0 %v1531
      %2105 = vmatpush1.bf16.msra.mxu0 %v1530
      %2106 = vmatprep.subr.bf16.mxu0 %v1535
      %2107 = vmatpush1.bf16.msra.mxu0 %v1534
      %2108 = vmatprep.subr.bf16.mxu0 %v1539
      %2109 = vmatpush1.bf16.msra.mxu0 %v1538
      %2110 = vmatprep.subr.bf16.mxu0 %v1543
      %2111 = vmatpush1.bf16.msra.mxu0 %v1542
      %2112 = vmatprep.subr.bf16.mxu0 0
      %2113 = vmatpush1.bf16.msra.mxu0 0
      %2114 = vmatprep.subr.bf16.mxu0 0
      %2115 = vmatpush1.bf16.msra.mxu0 0
      %2116 = vmatprep.subr.bf16.mxu0 0
      %2117 = vmatpush1.bf16.msra.mxu0 0
      %2118 = vmatprep.subr.bf16.mxu0 0
      %2119 = vmatpush1.bf16.msra.mxu0 0
      %2120 = vmatprep.subr.bf16.mxu0 0
      %2121 = vmatpush1.bf16.msra.mxu0 0
      %2122 = vmatprep.subr.bf16.mxu0 0
      %2123 = vmatpush1.bf16.msra.mxu0 0
      %2124 = vmatprep.subr.bf16.mxu0 0
      %2125 = vmatpush1.bf16.msra.mxu0 0
      %2126 = vmatprep.subr.bf16.mxu0 0
      %2127 = vmatpush1.bf16.msra.mxu0 0
      %2128 = vmatprep.mubr.bf16.mxu0 0
      %2129 = vmatmul.mubr.bf16.gmra.mrb[0].mxu0 %v2045
      %v2130 = vpop.f32.mrb[0].mxu0
      %v2131 = vadd.f32 0.0, %v2130
      %v2132 = vpop.f32.mrb[0].mxu0
      %v2133 = vadd.f32 0.0, %v2132
      %v2134 = vpop.f32.mrb[0].mxu0
      %v2135 = vpop.f32.mrb[0].mxu0
      %2136 = vdwg.mxu0
      %v2137 = vadd.f32 %v2051, %v2090
      %v2138 = vadd.f32 %v2052, %v2092
      %v2139 = vadd.f32 %v2053, %v2131
      %v2140 = vadd.f32 %v2054, %v2133
      %v2141 = vxor.u32 %v2137, 2147483648
      %v2142 = vmul.f32 %v2141, 1.442695
      %v2143 = vpow.pop %v2142
      %v2144 = vadd.f32 %v2143, 1.0
      %v2145 = vrcp.pop %v2144
      %v2146 = vmul.f32 1.0, %v2145
      %v2147 = vxor.u32 %v2138, 2147483648
      %v2148 = vmul.f32 %v2147, 1.442695
      %v2149 = vpow.pop %v2148
      %v2150 = vadd.f32 %v2149, 1.0
      %v2151 = vrcp.pop %v2150
      %v2152 = vmul.f32 1.0, %v2151
      %v2153 = vtanh.pop %v2139
      %v2154 = vxor.u32 %v2140, 2147483648
      %v2155 = vmul.f32 %v2154, 1.442695
      %v2156 = vpow.pop %v2155
      %v2157 = vadd.f32 %v2156, 1.0
      %v2158 = vrcp.pop %v2157
      %v2159 = vmul.f32 1.0, %v2158
      %v2160 = vmul.f32 %v2152, %v2042
      %v2161 = vmul.f32 %v2146, %v2153
      %v2162 = vadd.f32 %v2160, %v2161
      %v2163 = vtanh.pop %v2162
      %v2164 = vmul.f32 %v2159, %v2163
      %v2165 = vpack.c.bf16 %v2164, %v2164
      %s2166 = scalar_lea.vmem %s4, 16
      %2167 = vst [vmem:[%s2166] sm:$0xf] %v2165
      %s2168 = scalar_lea.vmem [#allocation2], 80
      %v2169 = vld [vmem:[%s2168] sm:$0xff]
      %v2170 = vld [vmem:[%s2168 + $0x8] sm:$0xff]
      %v2171 = vunpack.c.l.bf16 %v2169
      %v2172 = vunpack.c.h.bf16 %v2169
      %v2173 = vunpack.c.l.bf16 %v2170
      %v2174 = vunpack.c.h.bf16 %v2170
      %2175 = vmatprep.subr.bf16.mxu0 %v1513
      %2176 = vmatpush1.bf16.msra.mxu0 %v1512
      %2177 = vmatprep.subr.bf16.mxu0 %v1517
      %2178 = vmatpush1.bf16.msra.mxu0 %v1516
      %2179 = vmatprep.subr.bf16.mxu0 %v1521
      %2180 = vmatpush1.bf16.msra.mxu0 %v1520
      %2181 = vmatprep.subr.bf16.mxu0 %v1525
      %2182 = vmatpush1.bf16.msra.mxu0 %v1524
      %2183 = vmatprep.subr.bf16.mxu0 %v1529
      %2184 = vmatpush1.bf16.msra.mxu0 %v1528
      %2185 = vmatprep.subr.bf16.mxu0 %v1533
      %2186 = vmatpush1.bf16.msra.mxu0 %v1532
      %2187 = vmatprep.subr.bf16.mxu0 %v1537
      %2188 = vmatpush1.bf16.msra.mxu0 %v1536
      %2189 = vmatprep.subr.bf16.mxu0 %v1541
      %2190 = vmatpush1.bf16.msra.mxu0 %v1540
      %2191 = vmatprep.subr.bf16.mxu0 0
      %2192 = vmatpush1.bf16.msra.mxu0 0
      %2193 = vmatprep.subr.bf16.mxu0 0
      %2194 = vmatpush1.bf16.msra.mxu0 0
      %2195 = vmatprep.subr.bf16.mxu0 0
      %2196 = vmatpush1.bf16.msra.mxu0 0
      %2197 = vmatprep.subr.bf16.mxu0 0
      %2198 = vmatpush1.bf16.msra.mxu0 0
      %2199 = vmatprep.subr.bf16.mxu0 0
      %2200 = vmatpush1.bf16.msra.mxu0 0
      %2201 = vmatprep.subr.bf16.mxu0 0
      %2202 = vmatpush1.bf16.msra.mxu0 0
      %2203 = vmatprep.subr.bf16.mxu0 0
      %2204 = vmatpush1.bf16.msra.mxu0 0
      %2205 = vmatprep.subr.bf16.mxu0 0
      %2206 = vmatpush1.bf16.msra.mxu0 0
      %2207 = vmatprep.mubr.bf16.mxu0 0
      %2208 = vmatmul.mubr.bf16.gmra.mrb[0].mxu0 %v2165
      %v2209 = vpop.f32.mrb[0].mxu0
      %v2210 = vadd.f32 0.0, %v2209
      %v2211 = vpop.f32.mrb[0].mxu0
      %v2212 = vadd.f32 0.0, %v2211
      %v2213 = vpop.f32.mrb[0].mxu0
      %v2214 = vpop.f32.mrb[0].mxu0
      %2215 = vdwg.mxu0
      %2216 = vmatprep.subr.bf16.mxu0 %v1515
      %2217 = vmatpush1.bf16.msra.mxu0 %v1514
      %2218 = vmatprep.subr.bf16.mxu0 %v1519
      %2219 = vmatpush1.bf16.msra.mxu0 %v1518
      %2220 = vmatprep.subr.bf16.mxu0 %v1523
      %2221 = vmatpush1.bf16.msra.mxu0 %v1522
      %2222 = vmatprep.subr.bf16.mxu0 %v1527
      %2223 = vmatpush1.bf16.msra.mxu0 %v1526
      %2224 = vmatprep.subr.bf16.mxu0 %v1531
      %2225 = vmatpush1.bf16.msra.mxu0 %v1530
      %2226 = vmatprep.subr.bf16.mxu0 %v1535
      %2227 = vmatpush1.bf16.msra.mxu0 %v1534
      %2228 = vmatprep.subr.bf16.mxu0 %v1539
      %2229 = vmatpush1.bf16.msra.mxu0 %v1538
      %2230 = vmatprep.subr.bf16.mxu0 %v1543
      %2231 = vmatpush1.bf16.msra.mxu0 %v1542
      %2232 = vmatprep.subr.bf16.mxu0 0
      %2233 = vmatpush1.bf16.msra.mxu0 0
      %2234 = vmatprep.subr.bf16.mxu0 0
      %2235 = vmatpush1.bf16.msra.mxu0 0
      %2236 = vmatprep.subr.bf16.mxu0 0
      %2237 = vmatpush1.bf16.msra.mxu0 0
      %2238 = vmatprep.subr.bf16.mxu0 0
      %2239 = vmatpush1.bf16.msra.mxu0 0
      %2240 = vmatprep.subr.bf16.mxu0 0
      %2241 = vmatpush1.bf16.msra.mxu0 0
      %2242 = vmatprep.subr.bf16.mxu0 0
      %2243 = vmatpush1.bf16.msra.mxu0 0
      %2244 = vmatprep.subr.bf16.mxu0 0
      %2245 = vmatpush1.bf16.msra.mxu0 0
      %2246 = vmatprep.subr.bf16.mxu0 0
      %2247 = vmatpush1.bf16.msra.mxu0 0
      %2248 = vmatprep.mubr.bf16.mxu0 0
      %2249 = vmatmul.mubr.bf16.gmra.mrb[0].mxu0 %v2165
      %v2250 = vpop.f32.mrb[0].mxu0
      %v2251 = vadd.f32 0.0, %v2250
      %v2252 = vpop.f32.mrb[0].mxu0
      %v2253 = vadd.f32 0.0, %v2252
      %v2254 = vpop.f32.mrb[0].mxu0
      %v2255 = vpop.f32.mrb[0].mxu0
      %2256 = vdwg.mxu0
      %v2257 = vadd.f32 %v2171, %v2210
      %v2258 = vadd.f32 %v2172, %v2212
      %v2259 = vadd.f32 %v2173, %v2251
      %v2260 = vadd.f32 %v2174, %v2253
      %v2261 = vxor.u32 %v2257, 2147483648
      %v2262 = vmul.f32 %v2261, 1.442695
      %v2263 = vpow.pop %v2262
      %v2264 = vadd.f32 %v2263, 1.0
      %v2265 = vrcp.pop %v2264
      %v2266 = vmul.f32 1.0, %v2265
      %v2267 = vxor.u32 %v2258, 2147483648
      %v2268 = vmul.f32 %v2267, 1.442695
      %v2269 = vpow.pop %v2268
      %v2270 = vadd.f32 %v2269, 1.0
      %v2271 = vrcp.pop %v2270
      %v2272 = vmul.f32 1.0, %v2271
      %v2273 = vtanh.pop %v2259
      %v2274 = vxor.u32 %v2260, 2147483648
      %v2275 = vmul.f32 %v2274, 1.442695
      %v2276 = vpow.pop %v2275
      %v2277 = vadd.f32 %v2276, 1.0
      %v2278 = vrcp.pop %v2277
      %v2279 = vmul.f32 1.0, %v2278
      %v2280 = vmul.f32 %v2272, %v2162
      %v2281 = vmul.f32 %v2266, %v2273
      %v2282 = vadd.f32 %v2280, %v2281
      %v2283 = vtanh.pop %v2282
      %v2284 = vmul.f32 %v2279, %v2283
      %v2285 = vpack.c.bf16 %v2284, %v2284
      %s2286 = scalar_lea.vmem %s4, 20
      %2287 = vst [vmem:[%s2286] sm:$0xf] %v2285
      %s2288 = scalar_lea.vmem [#allocation2], 96
      %v2289 = vld [vmem:[%s2288] sm:$0xff]
      %v2290 = vld [vmem:[%s2288 + $0x8] sm:$0xff]
      %v2291 = vunpack.c.l.bf16 %v2289
      %v2292 = vunpack.c.h.bf16 %v2289
      %v2293 = vunpack.c.l.bf16 %v2290
      %v2294 = vunpack.c.h.bf16 %v2290
      %2295 = vmatprep.subr.bf16.mxu0 %v1513
      %2296 = vmatpush1.bf16.msra.mxu0 %v1512
      %2297 = vmatprep.subr.bf16.mxu0 %v1517
      %2298 = vmatpush1.bf16.msra.mxu0 %v1516
      %2299 = vmatprep.subr.bf16.mxu0 %v1521
      %2300 = vmatpush1.bf16.msra.mxu0 %v1520
      %2301 = vmatprep.subr.bf16.mxu0 %v1525
      %2302 = vmatpush1.bf16.msra.mxu0 %v1524
      %2303 = vmatprep.subr.bf16.mxu0 %v1529
      %2304 = vmatpush1.bf16.msra.mxu0 %v1528
      %2305 = vmatprep.subr.bf16.mxu0 %v1533
      %2306 = vmatpush1.bf16.msra.mxu0 %v1532
      %2307 = vmatprep.subr.bf16.mxu0 %v1537
      %2308 = vmatpush1.bf16.msra.mxu0 %v1536
      %2309 = vmatprep.subr.bf16.mxu0 %v1541
      %2310 = vmatpush1.bf16.msra.mxu0 %v1540
      %2311 = vmatprep.subr.bf16.mxu0 0
      %2312 = vmatpush1.bf16.msra.mxu0 0
      %2313 = vmatprep.subr.bf16.mxu0 0
      %2314 = vmatpush1.bf16.msra.mxu0 0
      %2315 = vmatprep.subr.bf16.mxu0 0
      %2316 = vmatpush1.bf16.msra.mxu0 0
      %2317 = vmatprep.subr.bf16.mxu0 0
      %2318 = vmatpush1.bf16.msra.mxu0 0
      %2319 = vmatprep.subr.bf16.mxu0 0
      %2320 = vmatpush1.bf16.msra.mxu0 0
      %2321 = vmatprep.subr.bf16.mxu0 0
      %2322 = vmatpush1.bf16.msra.mxu0 0
      %2323 = vmatprep.subr.bf16.mxu0 0
      %2324 = vmatpush1.bf16.msra.mxu0 0
      %2325 = vmatprep.subr.bf16.mxu0 0
      %2326 = vmatpush1.bf16.msra.mxu0 0
      %2327 = vmatprep.mubr.bf16.mxu0 0
      %2328 = vmatmul.mubr.bf16.gmra.mrb[0].mxu0 %v2285
      %v2329 = vpop.f32.mrb[0].mxu0
      %v2330 = vadd.f32 0.0, %v2329
      %v2331 = vpop.f32.mrb[0].mxu0
      %v2332 = vadd.f32 0.0, %v2331
      %v2333 = vpop.f32.mrb[0].mxu0
      %v2334 = vpop.f32.mrb[0].mxu0
      %2335 = vdwg.mxu0
      %2336 = vmatprep.subr.bf16.mxu0 %v1515
      %2337 = vmatpush1.bf16.msra.mxu0 %v1514
      %2338 = vmatprep.subr.bf16.mxu0 %v1519
      %2339 = vmatpush1.bf16.msra.mxu0 %v1518
      %2340 = vmatprep.subr.bf16.mxu0 %v1523
      %2341 = vmatpush1.bf16.msra.mxu0 %v1522
      %2342 = vmatprep.subr.bf16.mxu0 %v1527
      %2343 = vmatpush1.bf16.msra.mxu0 %v1526
      %2344 = vmatprep.subr.bf16.mxu0 %v1531
      %2345 = vmatpush1.bf16.msra.mxu0 %v1530
      %2346 = vmatprep.subr.bf16.mxu0 %v1535
      %2347 = vmatpush1.bf16.msra.mxu0 %v1534
      %2348 = vmatprep.subr.bf16.mxu0 %v1539
      %2349 = vmatpush1.bf16.msra.mxu0 %v1538
      %2350 = vmatprep.subr.bf16.mxu0 %v1543
      %2351 = vmatpush1.bf16.msra.mxu0 %v1542
      %2352 = vmatprep.subr.bf16.mxu0 0
      %2353 = vmatpush1.bf16.msra.mxu0 0
      %2354 = vmatprep.subr.bf16.mxu0 0
      %2355 = vmatpush1.bf16.msra.mxu0 0
      %2356 = vmatprep.subr.bf16.mxu0 0
      %2357 = vmatpush1.bf16.msra.mxu0 0
      %2358 = vmatprep.subr.bf16.mxu0 0
      %2359 = vmatpush1.bf16.msra.mxu0 0
      %2360 = vmatprep.subr.bf16.mxu0 0
      %2361 = vmatpush1.bf16.msra.mxu0 0
      %2362 = vmatprep.subr.bf16.mxu0 0
      %2363 = vmatpush1.bf16.msra.mxu0 0
      %2364 = vmatprep.subr.bf16.mxu0 0
      %2365 = vmatpush1.bf16.msra.mxu0 0
      %2366 = vmatprep.subr.bf16.mxu0 0
      %2367 = vmatpush1.bf16.msra.mxu0 0
      %2368 = vmatprep.mubr.bf16.mxu0 0
      %2369 = vmatmul.mubr.bf16.gmra.mrb[0].mxu0 %v2285
      %v2370 = vpop.f32.mrb[0].mxu0
      %v2371 = vadd.f32 0.0, %v2370
      %v2372 = vpop.f32.mrb[0].mxu0
      %v2373 = vadd.f32 0.0, %v2372
      %v2374 = vpop.f32.mrb[0].mxu0
      %v2375 = vpop.f32.mrb[0].mxu0
      %2376 = vdwg.mxu0
      %v2377 = vadd.f32 %v2291, %v2330
      %v2378 = vadd.f32 %v2292, %v2332
      %v2379 = vadd.f32 %v2293, %v2371
      %v2380 = vadd.f32 %v2294, %v2373
      %v2381 = vxor.u32 %v2377, 2147483648
      %v2382 = vmul.f32 %v2381, 1.442695
      %v2383 = vpow.pop %v2382
      %v2384 = vadd.f32 %v2383, 1.0
      %v2385 = vrcp.pop %v2384
      %v2386 = vmul.f32 1.0, %v2385
      %v2387 = vxor.u32 %v2378, 2147483648
      %v2388 = vmul.f32 %v2387, 1.442695
      %v2389 = vpow.pop %v2388
      %v2390 = vadd.f32 %v2389, 1.0
      %v2391 = vrcp.pop %v2390
      %v2392 = vmul.f32 1.0, %v2391
      %v2393 = vtanh.pop %v2379
      %v2394 = vxor.u32 %v2380, 2147483648
      %v2395 = vmul.f32 %v2394, 1.442695
      %v2396 = vpow.pop %v2395
      %v2397 = vadd.f32 %v2396, 1.0
      %v2398 = vrcp.pop %v2397
      %v2399 = vmul.f32 1.0, %v2398
      %v2400 = vmul.f32 %v2392, %v2282
      %v2401 = vmul.f32 %v2386, %v2393
      %v2402 = vadd.f32 %v2400, %v2401
      %v2403 = vtanh.pop %v2402
      %v2404 = vmul.f32 %v2399, %v2403
      %v2405 = vpack.c.bf16 %v2404, %v2404
      %s2406 = scalar_lea.vmem %s4, 24
      %2407 = vst [vmem:[%s2406] sm:$0xf] %v2405
      %s2408 = scalar_lea.vmem [#allocation2], 112
      %v2409 = vld [vmem:[%s2408] sm:$0xff]
      %v2410 = vld [vmem:[%s2408 + $0x8] sm:$0xff]
      %v2411 = vunpack.c.l.bf16 %v2409
      %v2412 = vunpack.c.h.bf16 %v2409
      %v2413 = vunpack.c.l.bf16 %v2410
      %v2414 = vunpack.c.h.bf16 %v2410
      %2415 = vmatprep.subr.bf16.mxu0 %v1513
      %2416 = vmatpush1.bf16.msra.mxu0 %v1512
      %2417 = vmatprep.subr.bf16.mxu0 %v1517
      %2418 = vmatpush1.bf16.msra.mxu0 %v1516
      %2419 = vmatprep.subr.bf16.mxu0 %v1521
      %2420 = vmatpush1.bf16.msra.mxu0 %v1520
      %2421 = vmatprep.subr.bf16.mxu0 %v1525
      %2422 = vmatpush1.bf16.msra.mxu0 %v1524
      %2423 = vmatprep.subr.bf16.mxu0 %v1529
      %2424 = vmatpush1.bf16.msra.mxu0 %v1528
      %2425 = vmatprep.subr.bf16.mxu0 %v1533
      %2426 = vmatpush1.bf16.msra.mxu0 %v1532
      %2427 = vmatprep.subr.bf16.mxu0 %v1537
      %2428 = vmatpush1.bf16.msra.mxu0 %v1536
      %2429 = vmatprep.subr.bf16.mxu0 %v1541
      %2430 = vmatpush1.bf16.msra.mxu0 %v1540
      %2431 = vmatprep.subr.bf16.mxu0 0
      %2432 = vmatpush1.bf16.msra.mxu0 0
      %2433 = vmatprep.subr.bf16.mxu0 0
      %2434 = vmatpush1.bf16.msra.mxu0 0
      %2435 = vmatprep.subr.bf16.mxu0 0
      %2436 = vmatpush1.bf16.msra.mxu0 0
      %2437 = vmatprep.subr.bf16.mxu0 0
      %2438 = vmatpush1.bf16.msra.mxu0 0
      %2439 = vmatprep.subr.bf16.mxu0 0
      %2440 = vmatpush1.bf16.msra.mxu0 0
      %2441 = vmatprep.subr.bf16.mxu0 0
      %2442 = vmatpush1.bf16.msra.mxu0 0
      %2443 = vmatprep.subr.bf16.mxu0 0
      %2444 = vmatpush1.bf16.msra.mxu0 0
      %2445 = vmatprep.subr.bf16.mxu0 0
      %2446 = vmatpush1.bf16.msra.mxu0 0
      %2447 = vmatprep.mubr.bf16.mxu0 0
      %2448 = vmatmul.mubr.bf16.gmra.mrb[0].mxu0 %v2405
      %v2449 = vpop.f32.mrb[0].mxu0
      %v2450 = vadd.f32 0.0, %v2449
      %v2451 = vpop.f32.mrb[0].mxu0
      %v2452 = vadd.f32 0.0, %v2451
      %v2453 = vpop.f32.mrb[0].mxu0
      %v2454 = vpop.f32.mrb[0].mxu0
      %2455 = vdwg.mxu0
      %2456 = vmatprep.subr.bf16.mxu0 %v1515
      %2457 = vmatpush1.bf16.msra.mxu0 %v1514
      %2458 = vmatprep.subr.bf16.mxu0 %v1519
      %2459 = vmatpush1.bf16.msra.mxu0 %v1518
      %2460 = vmatprep.subr.bf16.mxu0 %v1523
      %2461 = vmatpush1.bf16.msra.mxu0 %v1522
      %2462 = vmatprep.subr.bf16.mxu0 %v1527
      %2463 = vmatpush1.bf16.msra.mxu0 %v1526
      %2464 = vmatprep.subr.bf16.mxu0 %v1531
      %2465 = vmatpush1.bf16.msra.mxu0 %v1530
      %2466 = vmatprep.subr.bf16.mxu0 %v1535
      %2467 = vmatpush1.bf16.msra.mxu0 %v1534
      %2468 = vmatprep.subr.bf16.mxu0 %v1539
      %2469 = vmatpush1.bf16.msra.mxu0 %v1538
      %2470 = vmatprep.subr.bf16.mxu0 %v1543
      %2471 = vmatpush1.bf16.msra.mxu0 %v1542
      %2472 = vmatprep.subr.bf16.mxu0 0
      %2473 = vmatpush1.bf16.msra.mxu0 0
      %2474 = vmatprep.subr.bf16.mxu0 0
      %2475 = vmatpush1.bf16.msra.mxu0 0
      %2476 = vmatprep.subr.bf16.mxu0 0
      %2477 = vmatpush1.bf16.msra.mxu0 0
      %2478 = vmatprep.subr.bf16.mxu0 0
      %2479 = vmatpush1.bf16.msra.mxu0 0
      %2480 = vmatprep.subr.bf16.mxu0 0
      %2481 = vmatpush1.bf16.msra.mxu0 0
      %2482 = vmatprep.subr.bf16.mxu0 0
      %2483 = vmatpush1.bf16.msra.mxu0 0
      %2484 = vmatprep.subr.bf16.mxu0 0
      %2485 = vmatpush1.bf16.msra.mxu0 0
      %2486 = vmatprep.subr.bf16.mxu0 0
      %2487 = vmatpush1.bf16.msra.mxu0 0
      %2488 = vmatprep.mubr.bf16.mxu0 0
      %2489 = vmatmul.mubr.bf16.gmra.mrb[0].mxu0 %v2405
      %v2490 = vpop.f32.mrb[0].mxu0
      %v2491 = vadd.f32 0.0, %v2490
      %v2492 = vpop.f32.mrb[0].mxu0
      %v2493 = vadd.f32 0.0, %v2492
      %v2494 = vpop.f32.mrb[0].mxu0
      %v2495 = vpop.f32.mrb[0].mxu0
      %2496 = vdwg.mxu0
      %v2497 = vadd.f32 %v2411, %v2450
      %v2498 = vadd.f32 %v2412, %v2452
      %v2499 = vadd.f32 %v2413, %v2491
      %v2500 = vadd.f32 %v2414, %v2493
      %v2501 = vxor.u32 %v2497, 2147483648
      %v2502 = vmul.f32 %v2501, 1.442695
      %v2503 = vpow.pop %v2502
      %v2504 = vadd.f32 %v2503, 1.0
      %v2505 = vrcp.pop %v2504
      %v2506 = vmul.f32 1.0, %v2505
      %v2507 = vxor.u32 %v2498, 2147483648
      %v2508 = vmul.f32 %v2507, 1.442695
      %v2509 = vpow.pop %v2508
      %v2510 = vadd.f32 %v2509, 1.0
      %v2511 = vrcp.pop %v2510
      %v2512 = vmul.f32 1.0, %v2511
      %v2513 = vtanh.pop %v2499
      %v2514 = vxor.u32 %v2500, 2147483648
      %v2515 = vmul.f32 %v2514, 1.442695
      %v2516 = vpow.pop %v2515
      %v2517 = vadd.f32 %v2516, 1.0
      %v2518 = vrcp.pop %v2517
      %v2519 = vmul.f32 1.0, %v2518
      %v2520 = vmul.f32 %v2512, %v2402
      %v2521 = vmul.f32 %v2506, %v2513
      %v2522 = vadd.f32 %v2520, %v2521
      %v2523 = vtanh.pop %v2522
      %v2524 = vmul.f32 %v2519, %v2523
      %v2525 = vpack.c.bf16 %v2524, %v2524
      %s2526 = scalar_lea.vmem %s4, 28
      %2527 = vst [vmem:[%s2526] sm:$0xf] %v2525
      %s2528 = scalar_lea.vmem [#allocation2], 128
      %v2529 = vld [vmem:[%s2528] sm:$0xff]
      %v2530 = vld [vmem:[%s2528 + $0x8] sm:$0xff]
      %v2531 = vunpack.c.l.bf16 %v2529
      %v2532 = vunpack.c.h.bf16 %v2529
      %v2533 = vunpack.c.l.bf16 %v2530
      %v2534 = vunpack.c.h.bf16 %v2530
      %2535 = vmatprep.subr.bf16.mxu0 %v1513
      %2536 = vmatpush1.bf16.msra.mxu0 %v1512
      %2537 = vmatprep.subr.bf16.mxu0 %v1517
      %2538 = vmatpush1.bf16.msra.mxu0 %v1516
      %2539 = vmatprep.subr.bf16.mxu0 %v1521
      %2540 = vmatpush1.bf16.msra.mxu0 %v1520
      %2541 = vmatprep.subr.bf16.mxu0 %v1525
      %2542 = vmatpush1.bf16.msra.mxu0 %v1524
      %2543 = vmatprep.subr.bf16.mxu0 %v1529
      %2544 = vmatpush1.bf16.msra.mxu0 %v1528
      %2545 = vmatprep.subr.bf16.mxu0 %v1533
      %2546 = vmatpush1.bf16.msra.mxu0 %v1532
      %2547 = vmatprep.subr.bf16.mxu0 %v1537
      %2548 = vmatpush1.bf16.msra.mxu0 %v1536
      %2549 = vmatprep.subr.bf16.mxu0 %v1541
      %2550 = vmatpush1.bf16.msra.mxu0 %v1540
      %2551 = vmatprep.subr.bf16.mxu0 0
      %2552 = vmatpush1.bf16.msra.mxu0 0
      %2553 = vmatprep.subr.bf16.mxu0 0
      %2554 = vmatpush1.bf16.msra.mxu0 0
      %2555 = vmatprep.subr.bf16.mxu0 0
      %2556 = vmatpush1.bf16.msra.mxu0 0
      %2557 = vmatprep.subr.bf16.mxu0 0
      %2558 = vmatpush1.bf16.msra.mxu0 0
      %2559 = vmatprep.subr.bf16.mxu0 0
      %2560 = vmatpush1.bf16.msra.mxu0 0
      %2561 = vmatprep.subr.bf16.mxu0 0
      %2562 = vmatpush1.bf16.msra.mxu0 0
      %2563 = vmatprep.subr.bf16.mxu0 0
      %2564 = vmatpush1.bf16.msra.mxu0 0
      %2565 = vmatprep.subr.bf16.mxu0 0
      %2566 = vmatpush1.bf16.msra.mxu0 0
      %2567 = vmatprep.mubr.bf16.mxu0 0
      %2568 = vmatmul.mubr.bf16.gmra.mrb[0].mxu0 %v2525
      %v2569 = vpop.f32.mrb[0].mxu0
      %v2570 = vadd.f32 0.0, %v2569
      %v2571 = vpop.f32.mrb[0].mxu0
      %v2572 = vadd.f32 0.0, %v2571
      %v2573 = vpop.f32.mrb[0].mxu0
      %v2574 = vpop.f32.mrb[0].mxu0
      %2575 = vdwg.mxu0
      %2576 = vmatprep.subr.bf16.mxu0 %v1515
      %2577 = vmatpush1.bf16.msra.mxu0 %v1514
      %2578 = vmatprep.subr.bf16.mxu0 %v1519
      %2579 = vmatpush1.bf16.msra.mxu0 %v1518
      %2580 = vmatprep.subr.bf16.mxu0 %v1523
      %2581 = vmatpush1.bf16.msra.mxu0 %v1522
      %2582 = vmatprep.subr.bf16.mxu0 %v1527
      %2583 = vmatpush1.bf16.msra.mxu0 %v1526
      %2584 = vmatprep.subr.bf16.mxu0 %v1531
      %2585 = vmatpush1.bf16.msra.mxu0 %v1530
      %2586 = vmatprep.subr.bf16.mxu0 %v1535
      %2587 = vmatpush1.bf16.msra.mxu0 %v1534
      %2588 = vmatprep.subr.bf16.mxu0 %v1539
      %2589 = vmatpush1.bf16.msra.mxu0 %v1538
      %2590 = vmatprep.subr.bf16.mxu0 %v1543
      %2591 = vmatpush1.bf16.msra.mxu0 %v1542
      %2592 = vmatprep.subr.bf16.mxu0 0
      %2593 = vmatpush1.bf16.msra.mxu0 0
      %2594 = vmatprep.subr.bf16.mxu0 0
      %2595 = vmatpush1.bf16.msra.mxu0 0
      %2596 = vmatprep.subr.bf16.mxu0 0
      %2597 = vmatpush1.bf16.msra.mxu0 0
      %2598 = vmatprep.subr.bf16.mxu0 0
      %2599 = vmatpush1.bf16.msra.mxu0 0
      %2600 = vmatprep.subr.bf16.mxu0 0
      %2601 = vmatpush1.bf16.msra.mxu0 0
      %2602 = vmatprep.subr.bf16.mxu0 0
      %2603 = vmatpush1.bf16.msra.mxu0 0
      %2604 = vmatprep.subr.bf16.mxu0 0
      %2605 = vmatpush1.bf16.msra.mxu0 0
      %2606 = vmatprep.subr.bf16.mxu0 0
      %2607 = vmatpush1.bf16.msra.mxu0 0
      %2608 = vmatprep.mubr.bf16.mxu0 0
      %2609 = vmatmul.mubr.bf16.gmra.mrb[0].mxu0 %v2525
      %v2610 = vpop.f32.mrb[0].mxu0
      %v2611 = vadd.f32 0.0, %v2610
      %v2612 = vpop.f32.mrb[0].mxu0
      %v2613 = vadd.f32 0.0, %v2612
      %v2614 = vpop.f32.mrb[0].mxu0
      %v2615 = vpop.f32.mrb[0].mxu0
      %2616 = vdwg.mxu0
      %v2617 = vadd.f32 %v2531, %v2570
      %v2618 = vadd.f32 %v2532, %v2572
      %v2619 = vadd.f32 %v2533, %v2611
      %v2620 = vadd.f32 %v2534, %v2613
      %v2621 = vxor.u32 %v2617, 2147483648
      %v2622 = vmul.f32 %v2621, 1.442695
      %v2623 = vpow.pop %v2622
      %v2624 = vadd.f32 %v2623, 1.0
      %v2625 = vrcp.pop %v2624
      %v2626 = vmul.f32 1.0, %v2625
      %v2627 = vxor.u32 %v2618, 2147483648
      %v2628 = vmul.f32 %v2627, 1.442695
      %v2629 = vpow.pop %v2628
      %v2630 = vadd.f32 %v2629, 1.0
      %v2631 = vrcp.pop %v2630
      %v2632 = vmul.f32 1.0, %v2631
      %v2633 = vtanh.pop %v2619
      %v2634 = vxor.u32 %v2620, 2147483648
      %v2635 = vmul.f32 %v2634, 1.442695
      %v2636 = vpow.pop %v2635
      %v2637 = vadd.f32 %v2636, 1.0
      %v2638 = vrcp.pop %v2637
      %v2639 = vmul.f32 1.0, %v2638
      %v2640 = vmul.f32 %v2632, %v2522
      %v2641 = vmul.f32 %v2626, %v2633
      %v2642 = vadd.f32 %v2640, %v2641
      %v2643 = vtanh.pop %v2642
      %v2644 = vmul.f32 %v2639, %v2643
      %v2645 = vpack.c.bf16 %v2644, %v2644
      %s2646 = scalar_lea.vmem %s4, 32
      %2647 = vst [vmem:[%s2646] sm:$0xf] %v2645
      // Predicated region
      $region45: #{caption_generator_forward.2} parent=35 // pred_check
        %p2648 = pneg %p127
      $region46: #{caption_generator_forward.2} parent=35 // pred_check_branch
        %2650 = sbr.rel (%p2648) target = $region48
      $region47: #{caption_generator_forward.2} parent=35 // pred_region
        _
      $region48: #{caption_generator_forward.2} parent=35 // pred_fallthru
        _
      // Predicated region
      $region49: #{caption_generator_forward.2} parent=35 // pred_check
        %p2651 = pneg %p127
      $region50: #{caption_generator_forward.2} parent=35 // pred_check_branch
        %2653 = sbr.rel (%p2651) target = $region52
      $region51: #{caption_generator_forward.2} parent=35 // pred_region
        _
      $region52: #{caption_generator_forward.2} parent=35 // pred_fallthru
        _
    $region36: #{caption_generator_forward.2} parent=5 // pred_fallthru
      _
    %p2654 = scmp.le.s32.totalorder 2, %s10
    // Predicated region
    $region53: #{caption_generator_forward.2} parent=5 // pred_check
      %p2655 = pneg %p2654
    $region54: #{caption_generator_forward.2} parent=5 // pred_check_branch
      %2657 = sbr.rel (%p2655) target = $region56
    $region55: #{caption_generator_forward.2} parent=5 // pred_region
      %s2658 = ssub.s32 %s10, 2
    $region56: #{caption_generator_forward.2} parent=5 // pred_fallthru
      _
  $region6: #{caption_generator_forward.2} parent=0 // loop_footer
    %s14 = sadd.s32 1, %s10
  $region7: #{caption_generator_forward.2} parent=0 // loop_footer_branch
    %9 = sbr.rel target = $region3
  $region8: #{caption_generator_forward.2} parent=0 // loop_exit
    _

</llo_original>
